<compile_context>
chip_gen: v7x
topology: tpu7x:2x2x1
jax: 0.10.0
libtpu: 0.0.40
codegen_flags: <defaults>
</compile_context>

<pallas_src>
import jax
import jax.numpy as jnp
from jax.experimental import pallas as pl
from jax.experimental.pallas import tpu as pltpu

# Set to jnp.bfloat16 on v6e/v7x for ~3x lower per-step MXU latency (f32
# accumulation is kept via preferred_element_type).  Default f32 keeps the
# tight tolerance against the f32 PyTorch-semantics reference below.
MXU_DTYPE = jnp.float32


def _full_spec(shape):
    """Full-array block (no grid); index_map accepts zero args."""
    return pl.BlockSpec(shape, lambda *_: (0,) * len(shape))


# ----------------------------------------------------------------------------
# Fused Pallas kernel (all layers + fc head, single invocation)
# ----------------------------------------------------------------------------
def make_fused_gru_kernel(L, T, Bp, H, GW):
    """Refs:
      x_ref    (T*Bp, D_pad)  time-major, batch/feature padded, flattened
      wih_ref  (L, D_pad, GW) fused r|z|n input weights, pre-transposed
      whh_ref  (L, H,     GW) fused r|z|n hidden weights, pre-transposed
      bias_ref (L, 2,     GW) row0: bias added to gi (bir+bhr | biz+bhz | bin)
                              row1: bias added to gh (0 | 0 | bhn)
      fc_ref   (2, H)         row0: fc weight row, row1[0]: fc bias
      out_ref  (Bp, 1)
    """

    def kernel(x_ref, wih_ref, whh_ref, bias_ref, fc_ref, out_ref):
        prev = None          # per-timestep hiddens of the layer below
        h = None
        for l in range(L):
            w_hh = whh_ref[l]                       # (H, GW)   fused r|z|n
            bl = bias_ref[l]                        # (2, GW)
            b_gi = bl[0:1, :]
            b_gh = bl[1:2, :]

            if l == 0:
                # Input projection hoisted over ALL timesteps: one big matmul,
                # off the serial critical chain.
                gi_all = (
                    jnp.dot(x_ref[...].astype(MXU_DTYPE), wih_ref[0],
                            preferred_element_type=jnp.float32)
                    + b_gi
                )
            else:
                w_ih = wih_ref[l][:H, :]            # (H, GW)

            h = jnp.zeros((Bp, H), jnp.float32)     # h0 = zeros (PyTorch)
            cur = []
            for t in range(T):
                if l == 0:
                    gi = gi_all[t * Bp:(t + 1) * Bp, :]
                else:
                    # Wavefront: cell (l, t) depends only on (l-1, t) and
                    # (l, t-1) -> critical chain is T+L-1 cells, not T*L.
                    gi = (
                        jnp.dot(prev[t].astype(MXU_DTYPE), w_ih,
                                preferred_element_type=jnp.float32)
                        + b_gi
                    )
                # ONE fused hidden matmul per step; r/z/n are static lane
                # slices (offsets 0, H, 2H) of the GW-wide result.
                gh = jnp.dot(h.astype(MXU_DTYPE), w_hh,
                             preferred_element_type=jnp.float32) + b_gh

                r = jax.nn.sigmoid(gi[:, 0:H] + gh[:, 0:H])
                z = jax.nn.sigmoid(gi[:, H:2 * H] + gh[:, H:2 * H])
                n = jnp.tanh(gi[:, 2 * H:3 * H] + r * gh[:, 2 * H:3 * H])
                h = (1.0 - z) * n + z * h
                cur.append(h)
            prev = cur

        # FC head on VPU + XLU (multiply + lane reduce) — avoids an MXU
        # push/drain for a single output column.
        fc = fc_ref[...]                            # (2, H)
        out_ref[...] = (
            jnp.sum(h * fc[0:1, :], axis=-1, keepdims=True) + fc[1:2, 0:1]
        )

    return kernel


# ----------------------------------------------------------------------------
# One-time parameter packing: fused gates, transposed, merged biases, slabs
# ----------------------------------------------------------------------------
def preprocess_params(params):
    layers = params["gru_layers"]
    L = len(layers)
    H = layers[0]["w_hh"].shape[1]
    I = layers[0]["w_ih"].shape[1]
    D_pad = max(I, H)                               # common layer-input width
    GW = ((3 * H + 127) // 128) * 128               # lane-dense fused gate width

    w_ih_all = jnp.zeros((L, D_pad, GW), jnp.float32)
    w_hh_all = jnp.zeros((L, H, GW), jnp.float32)
    bias_all = jnp.zeros((L, 2, GW), jnp.float32)
    for l, layer in enumerate(layers):
        w_ih, w_hh = layer["w_ih"], layer["w_hh"]   # (3H, D_l), (3H, H)
        b_ih, b_hh = layer["b_ih"], layer["b_hh"]   # (3H,)
        D_l = w_ih.shape[1]
        w_ih_all = w_ih_all.at[l, :D_l, :3 * H].set(jnp.transpose(w_ih, (1, 0)))
        w_hh_all = w_hh_all.at[l, :, :3 * H].set(jnp.transpose(w_hh, (1, 0)))
        # Row 0: bias added to gi = [b_ir+b_hr | b_iz+b_hz | b_in]
        bias_all = bias_all.at[l, 0, 0:2 * H].set(b_ih[0:2 * H] + b_hh[0:2 * H])
        bias_all = bias_all.at[l, 0, 2 * H:3 * H].set(b_ih[2 * H:3 * H])
        # Row 1: bias added to gh = [0 | 0 | b_hn]  (needed for r * (...+b_hn))
        bias_all = bias_all.at[l, 1, 2 * H:3 * H].set(b_hh[2 * H:3 * H])

    fc_slab = jnp.zeros((2, H), jnp.float32)
    fc_slab = fc_slab.at[0, :].set(params["fc_w"][0, :])
    fc_slab = fc_slab.at[1, 0].set(params["fc_b"][0])

    return {
        "w_ih": w_ih_all.astype(MXU_DTYPE),
        "w_hh": w_hh_all.astype(MXU_DTYPE),
        "bias": bias_all,
        "fc": fc_slab,
    }


# ----------------------------------------------------------------------------
# Wrapper
# ----------------------------------------------------------------------------
@jax.jit
def gru_forward(x_bti, prep):
    """x_bti: (B, T, I) batch_first. Returns (B, 1)."""
    B, T, I = x_bti.shape
    L, D_pad, GW = prep["w_ih"].shape
    H = prep["w_hh"].shape[1]
    Bp = ((B + 7) // 8) * 8                         # sublane-aligned batch

    # Time-major; batch padded to a sublane multiple, features padded to the
    # common layer-input width; flattened to 2-D for rank-2 MXU matmuls.
    x_tbi = jnp.transpose(x_bti, (1, 0, 2))
    x_pad = jnp.zeros((T, Bp, D_pad), jnp.float32).at[:, :B, :I].set(x_tbi)
    x2d = x_pad.reshape(T * Bp, D_pad)

    kernel = make_fused_gru_kernel(L, T, Bp, H, GW)

    out = pl.pallas_call(
        kernel,
        out_shape=jax.ShapeDtypeStruct((Bp, 1), jnp.float32),
        in_specs=[
            _full_spec((T * Bp, D_pad)),
            _full_spec(prep["w_ih"].shape),
            _full_spec(prep["w_hh"].shape),
            _full_spec(prep["bias"].shape),
            _full_spec(prep["fc"].shape),
        ],
        out_specs=_full_spec((Bp, 1)),
        compiler_params=pltpu.CompilerParams(vmem_limit_bytes=32 * 1024 * 1024),
        # TODO(synk): at production T/B/H, add a "parallel" batch grid axis
        # (uses v7x's 2nd TensorCore) and chunk T on an "arbitrary" axis so the
        # resident activations fit v7x's 64 MiB VMEM.
    )(x2d, prep["w_ih"], prep["w_hh"], prep["bias"], prep["fc"])
    return out[:B]


# ----------------------------------------------------------------------------
# Pure-JAX reference (correctness check; original PyTorch layout/semantics)
# ----------------------------------------------------------------------------
def gru_forward_ref(x_bti, params):
    B = x_bti.shape[0]
    seq = jnp.transpose(x_bti, (1, 0, 2))
    for layer in params["gru_layers"]:
        H = layer["w_hh"].shape[1]
        w_ih_t = layer["w_ih"].T
        w_hh_t = layer["w_hh"].T
        b_ih, b_hh = layer["b_ih"], layer["b_hh"]

        def step(h, x_t):
            gi = x_t @ w_ih_t + b_ih
            gh = h @ w_hh_t + b_hh
            r = jax.nn.sigmoid(gi[:, 0:H] + gh[:, 0:H])
            z = jax.nn.sigmoid(gi[:, H:2 * H] + gh[:, H:2 * H])
            n = jnp.tanh(gi[:, 2 * H:3 * H] + r * gh[:, 2 * H:3 * H])
            h_new = (1.0 - z) * n + z * h
            return h_new, h_new

        h0 = jnp.zeros((B, H), jnp.float32)
        _, seq = jax.lax.scan(step, h0, seq)
    return seq[-1] @ params["fc_w"].T + params["fc_b"]


# ----------------------------------------------------------------------------
# Deterministic parameter construction (PyTorch-style uniform init)
# ----------------------------------------------------------------------------
def init_params(key, input_size, hidden_size, num_layers):
    s = 1.0 / jnp.sqrt(jnp.asarray(hidden_size, jnp.float32))
    layers = []
    for layer_idx in range(num_layers):
        in_dim = input_size if layer_idx == 0 else hidden_size
        key, k1, k2, k3, k4 = jax.random.split(key, 5)
        layers.append({
            "w_ih": jax.random.uniform(k1, (3 * hidden_size, in_dim), jnp.float32, -s, s),
            "w_hh": jax.random.uniform(k2, (3 * hidden_size, hidden_size), jnp.float32, -s, s),
            "b_ih": jax.random.uniform(k3, (3 * hidden_size,), jnp.float32, -s, s),
            "b_hh": jax.random.uniform(k4, (3 * hidden_size,), jnp.float32, -s, s),
        })
    key, k5, k6 = jax.random.split(key, 3)
    return {
        "gru_layers": layers,
        "fc_w": jax.random.uniform(k5, (1, hidden_size), jnp.float32, -s, s),
        "fc_b": jax.random.uniform(k6, (1,), jnp.float32, -s, s),
    }


if __name__ == "__main__":
    BATCH, SEQ, INPUT_SIZE, HIDDEN, LAYERS = 2, 8, 4, 32, 2

    key = jax.random.PRNGKey(0)
    key, kx = jax.random.split(key)
    x = jax.random.normal(kx, (BATCH, SEQ, INPUT_SIZE), jnp.float32)
    params = init_params(key, INPUT_SIZE, HIDDEN, LAYERS)
    prep = preprocess_params(params)

    out = jax.block_until_ready(gru_forward(x, prep))
    ref = jax.block_until_ready(gru_forward_ref(x, params))

    assert out.shape == (BATCH, 1)
    assert jnp.allclose(out, ref, rtol=1e-4, atol=1e-5), (out, ref)

    print("KERNEL_OK")
</pallas_src>

<mosaic_0001>
module attributes {stable_mosaic.version = 11 : i64} {
  func.func @kernel(%arg0: memref<64x32xf32, #tpu.memory_space<vmem>>, %arg1: memref<2x32x128xf32, #tpu.memory_space<vmem>>, %arg2: memref<2x32x128xf32, #tpu.memory_space<vmem>>, %arg3: memref<2x2x128xf32, #tpu.memory_space<vmem>>, %arg4: memref<2x32xf32, #tpu.memory_space<vmem>>, %arg5: memref<8x1xf32, #tpu.memory_space<vmem>>) attributes {dimension_semantics = [], scalar_prefetch = 0 : i64, scratch_operands = 0 : i64, tpu.core_type = #tpu.core_type<tc>} {
    %c0 = arith.constant 0 : index
    %c0_0 = arith.constant 0 : index
    %c0_1 = arith.constant 0 : index
    %0 = vector.load %arg2[%c0, %c0_0, %c0_1] : memref<2x32x128xf32, #tpu.memory_space<vmem>>, vector<1x32x128xf32>
    %1 = vector.shape_cast %0 : vector<1x32x128xf32> to vector<32x128xf32>
    %c0_2 = arith.constant 0 : index
    %c0_3 = arith.constant 0 : index
    %c0_4 = arith.constant 0 : index
    %2 = vector.load %arg3[%c0_2, %c0_3, %c0_4] : memref<2x2x128xf32, #tpu.memory_space<vmem>>, vector<1x2x128xf32>
    %3 = vector.shape_cast %2 : vector<1x2x128xf32> to vector<2x128xf32>
    %4 = vector.extract_strided_slice %3 {offsets = [0, 0], sizes = [1, 128], strides = [1, 1]} : vector<2x128xf32> to vector<1x128xf32>
    %5 = vector.extract_strided_slice %3 {offsets = [1, 0], sizes = [1, 128], strides = [1, 1]} : vector<2x128xf32> to vector<1x128xf32>
    %c0_5 = arith.constant 0 : index
    %c0_6 = arith.constant 0 : index
    %6 = vector.load %arg0[%c0_5, %c0_6] : memref<64x32xf32, #tpu.memory_space<vmem>>, vector<64x32xf32>
    %c0_7 = arith.constant 0 : index
    %c0_8 = arith.constant 0 : index
    %c0_9 = arith.constant 0 : index
    %7 = vector.load %arg1[%c0_7, %c0_8, %c0_9] : memref<2x32x128xf32, #tpu.memory_space<vmem>>, vector<1x32x128xf32>
    %8 = vector.shape_cast %7 : vector<1x32x128xf32> to vector<32x128xf32>
    %cst = arith.constant dense<0.000000e+00> : vector<64x128xf32>
    %9 = tpu.matmul %6, %8, %cst {dimension_numbers = #tpu.dot_dimension_numbers<[1], [0], [0], [1], [0, 0, 1, 1], [], []>} : vector<64x32xf32>, vector<32x128xf32>, vector<64x128xf32> -> vector<64x128xf32>
    %10 = vector.broadcast %4 : vector<1x128xf32> to vector<64x128xf32>
    %11 = arith.addf %9, %10 : vector<64x128xf32>
    %cst_10 = arith.constant 0.000000e+00 : f32
    %12 = vector.broadcast %cst_10 : f32 to vector<8x32xf32>
    %13 = vector.extract_strided_slice %11 {offsets = [0, 0], sizes = [8, 128], strides = [1, 1]} : vector<64x128xf32> to vector<8x128xf32>
    %cst_11 = arith.constant dense<0.000000e+00> : vector<8x128xf32>
    %14 = tpu.matmul %12, %1, %cst_11 {dimension_numbers = #tpu.dot_dimension_numbers<[1], [0], [0], [1], [0, 0, 1, 1], [], []>} : vector<8x32xf32>, vector<32x128xf32>, vector<8x128xf32> -> vector<8x128xf32>
    %15 = vector.broadcast %5 : vector<1x128xf32> to vector<8x128xf32>
    %16 = arith.addf %14, %15 : vector<8x128xf32>
    %17 = vector.extract_strided_slice %13 {offsets = [0, 0], sizes = [8, 32], strides = [1, 1]} : vector<8x128xf32> to vector<8x32xf32>
    %18 = vector.extract_strided_slice %16 {offsets = [0, 0], sizes = [8, 32], strides = [1, 1]} : vector<8x128xf32> to vector<8x32xf32>
    %19 = arith.addf %17, %18 : vector<8x32xf32>
    %20 = arith.negf %19 : vector<8x32xf32>
    %21 = math.exp %20 : vector<8x32xf32>
    %cst_12 = arith.constant 1.000000e+00 : f32
    %22 = vector.broadcast %cst_12 : f32 to vector<8x32xf32>
    %23 = arith.addf %22, %21 : vector<8x32xf32>
    %24 = arith.divf %22, %23 : vector<8x32xf32>
    %25 = vector.extract_strided_slice %13 {offsets = [0, 32], sizes = [8, 32], strides = [1, 1]} : vector<8x128xf32> to vector<8x32xf32>
    %26 = vector.extract_strided_slice %16 {offsets = [0, 32], sizes = [8, 32], strides = [1, 1]} : vector<8x128xf32> to vector<8x32xf32>
    %27 = arith.addf %25, %26 : vector<8x32xf32>
    %28 = arith.negf %27 : vector<8x32xf32>
    %29 = math.exp %28 : vector<8x32xf32>
    %cst_13 = arith.constant 1.000000e+00 : f32
    %30 = vector.broadcast %cst_13 : f32 to vector<8x32xf32>
    %31 = arith.addf %30, %29 : vector<8x32xf32>
    %32 = arith.divf %30, %31 : vector<8x32xf32>
    %33 = vector.extract_strided_slice %13 {offsets = [0, 64], sizes = [8, 32], strides = [1, 1]} : vector<8x128xf32> to vector<8x32xf32>
    %34 = vector.extract_strided_slice %16 {offsets = [0, 64], sizes = [8, 32], strides = [1, 1]} : vector<8x128xf32> to vector<8x32xf32>
    %35 = arith.mulf %24, %34 : vector<8x32xf32>
    %36 = arith.addf %33, %35 : vector<8x32xf32>
    %37 = math.tanh %36 : vector<8x32xf32>
    %cst_14 = arith.constant 1.000000e+00 : f32
    %38 = vector.broadcast %cst_14 : f32 to vector<8x32xf32>
    %39 = arith.subf %38, %32 : vector<8x32xf32>
    %40 = arith.mulf %39, %37 : vector<8x32xf32>
    %41 = arith.mulf %32, %12 : vector<8x32xf32>
    %42 = arith.addf %40, %41 : vector<8x32xf32>
    %43 = vector.extract_strided_slice %11 {offsets = [8, 0], sizes = [8, 128], strides = [1, 1]} : vector<64x128xf32> to vector<8x128xf32>
    %cst_15 = arith.constant dense<0.000000e+00> : vector<8x128xf32>
    %44 = tpu.matmul %42, %1, %cst_15 {dimension_numbers = #tpu.dot_dimension_numbers<[1], [0], [0], [1], [0, 0, 1, 1], [], []>} : vector<8x32xf32>, vector<32x128xf32>, vector<8x128xf32> -> vector<8x128xf32>
    %45 = vector.broadcast %5 : vector<1x128xf32> to vector<8x128xf32>
    %46 = arith.addf %44, %45 : vector<8x128xf32>
    %47 = vector.extract_strided_slice %43 {offsets = [0, 0], sizes = [8, 32], strides = [1, 1]} : vector<8x128xf32> to vector<8x32xf32>
    %48 = vector.extract_strided_slice %46 {offsets = [0, 0], sizes = [8, 32], strides = [1, 1]} : vector<8x128xf32> to vector<8x32xf32>
    %49 = arith.addf %47, %48 : vector<8x32xf32>
    %50 = arith.negf %49 : vector<8x32xf32>
    %51 = math.exp %50 : vector<8x32xf32>
    %cst_16 = arith.constant 1.000000e+00 : f32
    %52 = vector.broadcast %cst_16 : f32 to vector<8x32xf32>
    %53 = arith.addf %52, %51 : vector<8x32xf32>
    %54 = arith.divf %52, %53 : vector<8x32xf32>
    %55 = vector.extract_strided_slice %43 {offsets = [0, 32], sizes = [8, 32], strides = [1, 1]} : vector<8x128xf32> to vector<8x32xf32>
    %56 = vector.extract_strided_slice %46 {offsets = [0, 32], sizes = [8, 32], strides = [1, 1]} : vector<8x128xf32> to vector<8x32xf32>
    %57 = arith.addf %55, %56 : vector<8x32xf32>
    %58 = arith.negf %57 : vector<8x32xf32>
    %59 = math.exp %58 : vector<8x32xf32>
    %cst_17 = arith.constant 1.000000e+00 : f32
    %60 = vector.broadcast %cst_17 : f32 to vector<8x32xf32>
    %61 = arith.addf %60, %59 : vector<8x32xf32>
    %62 = arith.divf %60, %61 : vector<8x32xf32>
    %63 = vector.extract_strided_slice %43 {offsets = [0, 64], sizes = [8, 32], strides = [1, 1]} : vector<8x128xf32> to vector<8x32xf32>
    %64 = vector.extract_strided_slice %46 {offsets = [0, 64], sizes = [8, 32], strides = [1, 1]} : vector<8x128xf32> to vector<8x32xf32>
    %65 = arith.mulf %54, %64 : vector<8x32xf32>
    %66 = arith.addf %63, %65 : vector<8x32xf32>
    %67 = math.tanh %66 : vector<8x32xf32>
    %cst_18 = arith.constant 1.000000e+00 : f32
    %68 = vector.broadcast %cst_18 : f32 to vector<8x32xf32>
    %69 = arith.subf %68, %62 : vector<8x32xf32>
    %70 = arith.mulf %69, %67 : vector<8x32xf32>
    %71 = arith.mulf %62, %42 : vector<8x32xf32>
    %72 = arith.addf %70, %71 : vector<8x32xf32>
    %73 = vector.extract_strided_slice %11 {offsets = [16, 0], sizes = [8, 128], strides = [1, 1]} : vector<64x128xf32> to vector<8x128xf32>
    %cst_19 = arith.constant dense<0.000000e+00> : vector<8x128xf32>
    %74 = tpu.matmul %72, %1, %cst_19 {dimension_numbers = #tpu.dot_dimension_numbers<[1], [0], [0], [1], [0, 0, 1, 1], [], []>} : vector<8x32xf32>, vector<32x128xf32>, vector<8x128xf32> -> vector<8x128xf32>
    %75 = vector.broadcast %5 : vector<1x128xf32> to vector<8x128xf32>
    %76 = arith.addf %74, %75 : vector<8x128xf32>
    %77 = vector.extract_strided_slice %73 {offsets = [0, 0], sizes = [8, 32], strides = [1, 1]} : vector<8x128xf32> to vector<8x32xf32>
    %78 = vector.extract_strided_slice %76 {offsets = [0, 0], sizes = [8, 32], strides = [1, 1]} : vector<8x128xf32> to vector<8x32xf32>
    %79 = arith.addf %77, %78 : vector<8x32xf32>
    %80 = arith.negf %79 : vector<8x32xf32>
    %81 = math.exp %80 : vector<8x32xf32>
    %cst_20 = arith.constant 1.000000e+00 : f32
    %82 = vector.broadcast %cst_20 : f32 to vector<8x32xf32>
    %83 = arith.addf %82, %81 : vector<8x32xf32>
    %84 = arith.divf %82, %83 : vector<8x32xf32>
    %85 = vector.extract_strided_slice %73 {offsets = [0, 32], sizes = [8, 32], strides = [1, 1]} : vector<8x128xf32> to vector<8x32xf32>
    %86 = vector.extract_strided_slice %76 {offsets = [0, 32], sizes = [8, 32], strides = [1, 1]} : vector<8x128xf32> to vector<8x32xf32>
    %87 = arith.addf %85, %86 : vector<8x32xf32>
    %88 = arith.negf %87 : vector<8x32xf32>
    %89 = math.exp %88 : vector<8x32xf32>
    %cst_21 = arith.constant 1.000000e+00 : f32
    %90 = vector.broadcast %cst_21 : f32 to vector<8x32xf32>
    %91 = arith.addf %90, %89 : vector<8x32xf32>
    %92 = arith.divf %90, %91 : vector<8x32xf32>
    %93 = vector.extract_strided_slice %73 {offsets = [0, 64], sizes = [8, 32], strides = [1, 1]} : vector<8x128xf32> to vector<8x32xf32>
    %94 = vector.extract_strided_slice %76 {offsets = [0, 64], sizes = [8, 32], strides = [1, 1]} : vector<8x128xf32> to vector<8x32xf32>
    %95 = arith.mulf %84, %94 : vector<8x32xf32>
    %96 = arith.addf %93, %95 : vector<8x32xf32>
    %97 = math.tanh %96 : vector<8x32xf32>
    %cst_22 = arith.constant 1.000000e+00 : f32
    %98 = vector.broadcast %cst_22 : f32 to vector<8x32xf32>
    %99 = arith.subf %98, %92 : vector<8x32xf32>
    %100 = arith.mulf %99, %97 : vector<8x32xf32>
    %101 = arith.mulf %92, %72 : vector<8x32xf32>
    %102 = arith.addf %100, %101 : vector<8x32xf32>
    %103 = vector.extract_strided_slice %11 {offsets = [24, 0], sizes = [8, 128], strides = [1, 1]} : vector<64x128xf32> to vector<8x128xf32>
    %cst_23 = arith.constant dense<0.000000e+00> : vector<8x128xf32>
    %104 = tpu.matmul %102, %1, %cst_23 {dimension_numbers = #tpu.dot_dimension_numbers<[1], [0], [0], [1], [0, 0, 1, 1], [], []>} : vector<8x32xf32>, vector<32x128xf32>, vector<8x128xf32> -> vector<8x128xf32>
    %105 = vector.broadcast %5 : vector<1x128xf32> to vector<8x128xf32>
    %106 = arith.addf %104, %105 : vector<8x128xf32>
    %107 = vector.extract_strided_slice %103 {offsets = [0, 0], sizes = [8, 32], strides = [1, 1]} : vector<8x128xf32> to vector<8x32xf32>
    %108 = vector.extract_strided_slice %106 {offsets = [0, 0], sizes = [8, 32], strides = [1, 1]} : vector<8x128xf32> to vector<8x32xf32>
    %109 = arith.addf %107, %108 : vector<8x32xf32>
    %110 = arith.negf %109 : vector<8x32xf32>
    %111 = math.exp %110 : vector<8x32xf32>
    %cst_24 = arith.constant 1.000000e+00 : f32
    %112 = vector.broadcast %cst_24 : f32 to vector<8x32xf32>
    %113 = arith.addf %112, %111 : vector<8x32xf32>
    %114 = arith.divf %112, %113 : vector<8x32xf32>
    %115 = vector.extract_strided_slice %103 {offsets = [0, 32], sizes = [8, 32], strides = [1, 1]} : vector<8x128xf32> to vector<8x32xf32>
    %116 = vector.extract_strided_slice %106 {offsets = [0, 32], sizes = [8, 32], strides = [1, 1]} : vector<8x128xf32> to vector<8x32xf32>
    %117 = arith.addf %115, %116 : vector<8x32xf32>
    %118 = arith.negf %117 : vector<8x32xf32>
    %119 = math.exp %118 : vector<8x32xf32>
    %cst_25 = arith.constant 1.000000e+00 : f32
    %120 = vector.broadcast %cst_25 : f32 to vector<8x32xf32>
    %121 = arith.addf %120, %119 : vector<8x32xf32>
    %122 = arith.divf %120, %121 : vector<8x32xf32>
    %123 = vector.extract_strided_slice %103 {offsets = [0, 64], sizes = [8, 32], strides = [1, 1]} : vector<8x128xf32> to vector<8x32xf32>
    %124 = vector.extract_strided_slice %106 {offsets = [0, 64], sizes = [8, 32], strides = [1, 1]} : vector<8x128xf32> to vector<8x32xf32>
    %125 = arith.mulf %114, %124 : vector<8x32xf32>
    %126 = arith.addf %123, %125 : vector<8x32xf32>
    %127 = math.tanh %126 : vector<8x32xf32>
    %cst_26 = arith.constant 1.000000e+00 : f32
    %128 = vector.broadcast %cst_26 : f32 to vector<8x32xf32>
    %129 = arith.subf %128, %122 : vector<8x32xf32>
    %130 = arith.mulf %129, %127 : vector<8x32xf32>
    %131 = arith.mulf %122, %102 : vector<8x32xf32>
    %132 = arith.addf %130, %131 : vector<8x32xf32>
    %133 = vector.extract_strided_slice %11 {offsets = [32, 0], sizes = [8, 128], strides = [1, 1]} : vector<64x128xf32> to vector<8x128xf32>
    %cst_27 = arith.constant dense<0.000000e+00> : vector<8x128xf32>
    %134 = tpu.matmul %132, %1, %cst_27 {dimension_numbers = #tpu.dot_dimension_numbers<[1], [0], [0], [1], [0, 0, 1, 1], [], []>} : vector<8x32xf32>, vector<32x128xf32>, vector<8x128xf32> -> vector<8x128xf32>
    %135 = vector.broadcast %5 : vector<1x128xf32> to vector<8x128xf32>
    %136 = arith.addf %134, %135 : vector<8x128xf32>
    %137 = vector.extract_strided_slice %133 {offsets = [0, 0], sizes = [8, 32], strides = [1, 1]} : vector<8x128xf32> to vector<8x32xf32>
    %138 = vector.extract_strided_slice %136 {offsets = [0, 0], sizes = [8, 32], strides = [1, 1]} : vector<8x128xf32> to vector<8x32xf32>
    %139 = arith.addf %137, %138 : vector<8x32xf32>
    %140 = arith.negf %139 : vector<8x32xf32>
    %141 = math.exp %140 : vector<8x32xf32>
    %cst_28 = arith.constant 1.000000e+00 : f32
    %142 = vector.broadcast %cst_28 : f32 to vector<8x32xf32>
    %143 = arith.addf %142, %141 : vector<8x32xf32>
    %144 = arith.divf %142, %143 : vector<8x32xf32>
    %145 = vector.extract_strided_slice %133 {offsets = [0, 32], sizes = [8, 32], strides = [1, 1]} : vector<8x128xf32> to vector<8x32xf32>
    %146 = vector.extract_strided_slice %136 {offsets = [0, 32], sizes = [8, 32], strides = [1, 1]} : vector<8x128xf32> to vector<8x32xf32>
    %147 = arith.addf %145, %146 : vector<8x32xf32>
    %148 = arith.negf %147 : vector<8x32xf32>
    %149 = math.exp %148 : vector<8x32xf32>
    %cst_29 = arith.constant 1.000000e+00 : f32
    %150 = vector.broadcast %cst_29 : f32 to vector<8x32xf32>
    %151 = arith.addf %150, %149 : vector<8x32xf32>
    %152 = arith.divf %150, %151 : vector<8x32xf32>
    %153 = vector.extract_strided_slice %133 {offsets = [0, 64], sizes = [8, 32], strides = [1, 1]} : vector<8x128xf32> to vector<8x32xf32>
    %154 = vector.extract_strided_slice %136 {offsets = [0, 64], sizes = [8, 32], strides = [1, 1]} : vector<8x128xf32> to vector<8x32xf32>
    %155 = arith.mulf %144, %154 : vector<8x32xf32>
    %156 = arith.addf %153, %155 : vector<8x32xf32>
    %157 = math.tanh %156 : vector<8x32xf32>
    %cst_30 = arith.constant 1.000000e+00 : f32
    %158 = vector.broadcast %cst_30 : f32 to vector<8x32xf32>
    %159 = arith.subf %158, %152 : vector<8x32xf32>
    %160 = arith.mulf %159, %157 : vector<8x32xf32>
    %161 = arith.mulf %152, %132 : vector<8x32xf32>
    %162 = arith.addf %160, %161 : vector<8x32xf32>
    %163 = vector.extract_strided_slice %11 {offsets = [40, 0], sizes = [8, 128], strides = [1, 1]} : vector<64x128xf32> to vector<8x128xf32>
    %cst_31 = arith.constant dense<0.000000e+00> : vector<8x128xf32>
    %164 = tpu.matmul %162, %1, %cst_31 {dimension_numbers = #tpu.dot_dimension_numbers<[1], [0], [0], [1], [0, 0, 1, 1], [], []>} : vector<8x32xf32>, vector<32x128xf32>, vector<8x128xf32> -> vector<8x128xf32>
    %165 = vector.broadcast %5 : vector<1x128xf32> to vector<8x128xf32>
    %166 = arith.addf %164, %165 : vector<8x128xf32>
    %167 = vector.extract_strided_slice %163 {offsets = [0, 0], sizes = [8, 32], strides = [1, 1]} : vector<8x128xf32> to vector<8x32xf32>
    %168 = vector.extract_strided_slice %166 {offsets = [0, 0], sizes = [8, 32], strides = [1, 1]} : vector<8x128xf32> to vector<8x32xf32>
    %169 = arith.addf %167, %168 : vector<8x32xf32>
    %170 = arith.negf %169 : vector<8x32xf32>
    %171 = math.exp %170 : vector<8x32xf32>
    %cst_32 = arith.constant 1.000000e+00 : f32
    %172 = vector.broadcast %cst_32 : f32 to vector<8x32xf32>
    %173 = arith.addf %172, %171 : vector<8x32xf32>
    %174 = arith.divf %172, %173 : vector<8x32xf32>
    %175 = vector.extract_strided_slice %163 {offsets = [0, 32], sizes = [8, 32], strides = [1, 1]} : vector<8x128xf32> to vector<8x32xf32>
    %176 = vector.extract_strided_slice %166 {offsets = [0, 32], sizes = [8, 32], strides = [1, 1]} : vector<8x128xf32> to vector<8x32xf32>
    %177 = arith.addf %175, %176 : vector<8x32xf32>
    %178 = arith.negf %177 : vector<8x32xf32>
    %179 = math.exp %178 : vector<8x32xf32>
    %cst_33 = arith.constant 1.000000e+00 : f32
    %180 = vector.broadcast %cst_33 : f32 to vector<8x32xf32>
    %181 = arith.addf %180, %179 : vector<8x32xf32>
    %182 = arith.divf %180, %181 : vector<8x32xf32>
    %183 = vector.extract_strided_slice %163 {offsets = [0, 64], sizes = [8, 32], strides = [1, 1]} : vector<8x128xf32> to vector<8x32xf32>
    %184 = vector.extract_strided_slice %166 {offsets = [0, 64], sizes = [8, 32], strides = [1, 1]} : vector<8x128xf32> to vector<8x32xf32>
    %185 = arith.mulf %174, %184 : vector<8x32xf32>
    %186 = arith.addf %183, %185 : vector<8x32xf32>
    %187 = math.tanh %186 : vector<8x32xf32>
    %cst_34 = arith.constant 1.000000e+00 : f32
    %188 = vector.broadcast %cst_34 : f32 to vector<8x32xf32>
    %189 = arith.subf %188, %182 : vector<8x32xf32>
    %190 = arith.mulf %189, %187 : vector<8x32xf32>
    %191 = arith.mulf %182, %162 : vector<8x32xf32>
    %192 = arith.addf %190, %191 : vector<8x32xf32>
    %193 = vector.extract_strided_slice %11 {offsets = [48, 0], sizes = [8, 128], strides = [1, 1]} : vector<64x128xf32> to vector<8x128xf32>
    %cst_35 = arith.constant dense<0.000000e+00> : vector<8x128xf32>
    %194 = tpu.matmul %192, %1, %cst_35 {dimension_numbers = #tpu.dot_dimension_numbers<[1], [0], [0], [1], [0, 0, 1, 1], [], []>} : vector<8x32xf32>, vector<32x128xf32>, vector<8x128xf32> -> vector<8x128xf32>
    %195 = vector.broadcast %5 : vector<1x128xf32> to vector<8x128xf32>
    %196 = arith.addf %194, %195 : vector<8x128xf32>
    %197 = vector.extract_strided_slice %193 {offsets = [0, 0], sizes = [8, 32], strides = [1, 1]} : vector<8x128xf32> to vector<8x32xf32>
    %198 = vector.extract_strided_slice %196 {offsets = [0, 0], sizes = [8, 32], strides = [1, 1]} : vector<8x128xf32> to vector<8x32xf32>
    %199 = arith.addf %197, %198 : vector<8x32xf32>
    %200 = arith.negf %199 : vector<8x32xf32>
    %201 = math.exp %200 : vector<8x32xf32>
    %cst_36 = arith.constant 1.000000e+00 : f32
    %202 = vector.broadcast %cst_36 : f32 to vector<8x32xf32>
    %203 = arith.addf %202, %201 : vector<8x32xf32>
    %204 = arith.divf %202, %203 : vector<8x32xf32>
    %205 = vector.extract_strided_slice %193 {offsets = [0, 32], sizes = [8, 32], strides = [1, 1]} : vector<8x128xf32> to vector<8x32xf32>
    %206 = vector.extract_strided_slice %196 {offsets = [0, 32], sizes = [8, 32], strides = [1, 1]} : vector<8x128xf32> to vector<8x32xf32>
    %207 = arith.addf %205, %206 : vector<8x32xf32>
    %208 = arith.negf %207 : vector<8x32xf32>
    %209 = math.exp %208 : vector<8x32xf32>
    %cst_37 = arith.constant 1.000000e+00 : f32
    %210 = vector.broadcast %cst_37 : f32 to vector<8x32xf32>
    %211 = arith.addf %210, %209 : vector<8x32xf32>
    %212 = arith.divf %210, %211 : vector<8x32xf32>
    %213 = vector.extract_strided_slice %193 {offsets = [0, 64], sizes = [8, 32], strides = [1, 1]} : vector<8x128xf32> to vector<8x32xf32>
    %214 = vector.extract_strided_slice %196 {offsets = [0, 64], sizes = [8, 32], strides = [1, 1]} : vector<8x128xf32> to vector<8x32xf32>
    %215 = arith.mulf %204, %214 : vector<8x32xf32>
    %216 = arith.addf %213, %215 : vector<8x32xf32>
    %217 = math.tanh %216 : vector<8x32xf32>
    %cst_38 = arith.constant 1.000000e+00 : f32
    %218 = vector.broadcast %cst_38 : f32 to vector<8x32xf32>
    %219 = arith.subf %218, %212 : vector<8x32xf32>
    %220 = arith.mulf %219, %217 : vector<8x32xf32>
    %221 = arith.mulf %212, %192 : vector<8x32xf32>
    %222 = arith.addf %220, %221 : vector<8x32xf32>
    %223 = vector.extract_strided_slice %11 {offsets = [56, 0], sizes = [8, 128], strides = [1, 1]} : vector<64x128xf32> to vector<8x128xf32>
    %cst_39 = arith.constant dense<0.000000e+00> : vector<8x128xf32>
    %224 = tpu.matmul %222, %1, %cst_39 {dimension_numbers = #tpu.dot_dimension_numbers<[1], [0], [0], [1], [0, 0, 1, 1], [], []>} : vector<8x32xf32>, vector<32x128xf32>, vector<8x128xf32> -> vector<8x128xf32>
    %225 = vector.broadcast %5 : vector<1x128xf32> to vector<8x128xf32>
    %226 = arith.addf %224, %225 : vector<8x128xf32>
    %227 = vector.extract_strided_slice %223 {offsets = [0, 0], sizes = [8, 32], strides = [1, 1]} : vector<8x128xf32> to vector<8x32xf32>
    %228 = vector.extract_strided_slice %226 {offsets = [0, 0], sizes = [8, 32], strides = [1, 1]} : vector<8x128xf32> to vector<8x32xf32>
    %229 = arith.addf %227, %228 : vector<8x32xf32>
    %230 = arith.negf %229 : vector<8x32xf32>
    %231 = math.exp %230 : vector<8x32xf32>
    %cst_40 = arith.constant 1.000000e+00 : f32
    %232 = vector.broadcast %cst_40 : f32 to vector<8x32xf32>
    %233 = arith.addf %232, %231 : vector<8x32xf32>
    %234 = arith.divf %232, %233 : vector<8x32xf32>
    %235 = vector.extract_strided_slice %223 {offsets = [0, 32], sizes = [8, 32], strides = [1, 1]} : vector<8x128xf32> to vector<8x32xf32>
    %236 = vector.extract_strided_slice %226 {offsets = [0, 32], sizes = [8, 32], strides = [1, 1]} : vector<8x128xf32> to vector<8x32xf32>
    %237 = arith.addf %235, %236 : vector<8x32xf32>
    %238 = arith.negf %237 : vector<8x32xf32>
    %239 = math.exp %238 : vector<8x32xf32>
    %cst_41 = arith.constant 1.000000e+00 : f32
    %240 = vector.broadcast %cst_41 : f32 to vector<8x32xf32>
    %241 = arith.addf %240, %239 : vector<8x32xf32>
    %242 = arith.divf %240, %241 : vector<8x32xf32>
    %243 = vector.extract_strided_slice %223 {offsets = [0, 64], sizes = [8, 32], strides = [1, 1]} : vector<8x128xf32> to vector<8x32xf32>
    %244 = vector.extract_strided_slice %226 {offsets = [0, 64], sizes = [8, 32], strides = [1, 1]} : vector<8x128xf32> to vector<8x32xf32>
    %245 = arith.mulf %234, %244 : vector<8x32xf32>
    %246 = arith.addf %243, %245 : vector<8x32xf32>
    %247 = math.tanh %246 : vector<8x32xf32>
    %cst_42 = arith.constant 1.000000e+00 : f32
    %248 = vector.broadcast %cst_42 : f32 to vector<8x32xf32>
    %249 = arith.subf %248, %242 : vector<8x32xf32>
    %250 = arith.mulf %249, %247 : vector<8x32xf32>
    %251 = arith.mulf %242, %222 : vector<8x32xf32>
    %252 = arith.addf %250, %251 : vector<8x32xf32>
    %c1 = arith.constant 1 : index
    %c0_43 = arith.constant 0 : index
    %c0_44 = arith.constant 0 : index
    %253 = vector.load %arg2[%c1, %c0_43, %c0_44] : memref<2x32x128xf32, #tpu.memory_space<vmem>>, vector<1x32x128xf32>
    %254 = vector.shape_cast %253 : vector<1x32x128xf32> to vector<32x128xf32>
    %c1_45 = arith.constant 1 : index
    %c0_46 = arith.constant 0 : index
    %c0_47 = arith.constant 0 : index
    %255 = vector.load %arg3[%c1_45, %c0_46, %c0_47] : memref<2x2x128xf32, #tpu.memory_space<vmem>>, vector<1x2x128xf32>
    %256 = vector.shape_cast %255 : vector<1x2x128xf32> to vector<2x128xf32>
    %257 = vector.extract_strided_slice %256 {offsets = [0, 0], sizes = [1, 128], strides = [1, 1]} : vector<2x128xf32> to vector<1x128xf32>
    %258 = vector.extract_strided_slice %256 {offsets = [1, 0], sizes = [1, 128], strides = [1, 1]} : vector<2x128xf32> to vector<1x128xf32>
    %c1_48 = arith.constant 1 : index
    %c0_49 = arith.constant 0 : index
    %c0_50 = arith.constant 0 : index
    %259 = vector.load %arg1[%c1_48, %c0_49, %c0_50] : memref<2x32x128xf32, #tpu.memory_space<vmem>>, vector<1x32x128xf32>
    %260 = vector.shape_cast %259 : vector<1x32x128xf32> to vector<32x128xf32>
    %cst_51 = arith.constant 0.000000e+00 : f32
    %261 = vector.broadcast %cst_51 : f32 to vector<8x32xf32>
    %cst_52 = arith.constant dense<0.000000e+00> : vector<8x128xf32>
    %262 = tpu.matmul %42, %260, %cst_52 {dimension_numbers = #tpu.dot_dimension_numbers<[1], [0], [0], [1], [0, 0, 1, 1], [], []>} : vector<8x32xf32>, vector<32x128xf32>, vector<8x128xf32> -> vector<8x128xf32>
    %263 = vector.broadcast %257 : vector<1x128xf32> to vector<8x128xf32>
    %264 = arith.addf %262, %263 : vector<8x128xf32>
    %cst_53 = arith.constant dense<0.000000e+00> : vector<8x128xf32>
    %265 = tpu.matmul %261, %254, %cst_53 {dimension_numbers = #tpu.dot_dimension_numbers<[1], [0], [0], [1], [0, 0, 1, 1], [], []>} : vector<8x32xf32>, vector<32x128xf32>, vector<8x128xf32> -> vector<8x128xf32>
    %266 = vector.broadcast %258 : vector<1x128xf32> to vector<8x128xf32>
    %267 = arith.addf %265, %266 : vector<8x128xf32>
    %268 = vector.extract_strided_slice %264 {offsets = [0, 0], sizes = [8, 32], strides = [1, 1]} : vector<8x128xf32> to vector<8x32xf32>
    %269 = vector.extract_strided_slice %267 {offsets = [0, 0], sizes = [8, 32], strides = [1, 1]} : vector<8x128xf32> to vector<8x32xf32>
    %270 = arith.addf %268, %269 : vector<8x32xf32>
    %271 = arith.negf %270 : vector<8x32xf32>
    %272 = math.exp %271 : vector<8x32xf32>
    %cst_54 = arith.constant 1.000000e+00 : f32
    %273 = vector.broadcast %cst_54 : f32 to vector<8x32xf32>
    %274 = arith.addf %273, %272 : vector<8x32xf32>
    %275 = arith.divf %273, %274 : vector<8x32xf32>
    %276 = vector.extract_strided_slice %264 {offsets = [0, 32], sizes = [8, 32], strides = [1, 1]} : vector<8x128xf32> to vector<8x32xf32>
    %277 = vector.extract_strided_slice %267 {offsets = [0, 32], sizes = [8, 32], strides = [1, 1]} : vector<8x128xf32> to vector<8x32xf32>
    %278 = arith.addf %276, %277 : vector<8x32xf32>
    %279 = arith.negf %278 : vector<8x32xf32>
    %280 = math.exp %279 : vector<8x32xf32>
    %cst_55 = arith.constant 1.000000e+00 : f32
    %281 = vector.broadcast %cst_55 : f32 to vector<8x32xf32>
    %282 = arith.addf %281, %280 : vector<8x32xf32>
    %283 = arith.divf %281, %282 : vector<8x32xf32>
    %284 = vector.extract_strided_slice %264 {offsets = [0, 64], sizes = [8, 32], strides = [1, 1]} : vector<8x128xf32> to vector<8x32xf32>
    %285 = vector.extract_strided_slice %267 {offsets = [0, 64], sizes = [8, 32], strides = [1, 1]} : vector<8x128xf32> to vector<8x32xf32>
    %286 = arith.mulf %275, %285 : vector<8x32xf32>
    %287 = arith.addf %284, %286 : vector<8x32xf32>
    %288 = math.tanh %287 : vector<8x32xf32>
    %cst_56 = arith.constant 1.000000e+00 : f32
    %289 = vector.broadcast %cst_56 : f32 to vector<8x32xf32>
    %290 = arith.subf %289, %283 : vector<8x32xf32>
    %291 = arith.mulf %290, %288 : vector<8x32xf32>
    %292 = arith.mulf %283, %261 : vector<8x32xf32>
    %293 = arith.addf %291, %292 : vector<8x32xf32>
    %cst_57 = arith.constant dense<0.000000e+00> : vector<8x128xf32>
    %294 = tpu.matmul %72, %260, %cst_57 {dimension_numbers = #tpu.dot_dimension_numbers<[1], [0], [0], [1], [0, 0, 1, 1], [], []>} : vector<8x32xf32>, vector<32x128xf32>, vector<8x128xf32> -> vector<8x128xf32>
    %295 = vector.broadcast %257 : vector<1x128xf32> to vector<8x128xf32>
    %296 = arith.addf %294, %295 : vector<8x128xf32>
    %cst_58 = arith.constant dense<0.000000e+00> : vector<8x128xf32>
    %297 = tpu.matmul %293, %254, %cst_58 {dimension_numbers = #tpu.dot_dimension_numbers<[1], [0], [0], [1], [0, 0, 1, 1], [], []>} : vector<8x32xf32>, vector<32x128xf32>, vector<8x128xf32> -> vector<8x128xf32>
    %298 = vector.broadcast %258 : vector<1x128xf32> to vector<8x128xf32>
    %299 = arith.addf %297, %298 : vector<8x128xf32>
    %300 = vector.extract_strided_slice %296 {offsets = [0, 0], sizes = [8, 32], strides = [1, 1]} : vector<8x128xf32> to vector<8x32xf32>
    %301 = vector.extract_strided_slice %299 {offsets = [0, 0], sizes = [8, 32], strides = [1, 1]} : vector<8x128xf32> to vector<8x32xf32>
    %302 = arith.addf %300, %301 : vector<8x32xf32>
    %303 = arith.negf %302 : vector<8x32xf32>
    %304 = math.exp %303 : vector<8x32xf32>
    %cst_59 = arith.constant 1.000000e+00 : f32
    %305 = vector.broadcast %cst_59 : f32 to vector<8x32xf32>
    %306 = arith.addf %305, %304 : vector<8x32xf32>
    %307 = arith.divf %305, %306 : vector<8x32xf32>
    %308 = vector.extract_strided_slice %296 {offsets = [0, 32], sizes = [8, 32], strides = [1, 1]} : vector<8x128xf32> to vector<8x32xf32>
    %309 = vector.extract_strided_slice %299 {offsets = [0, 32], sizes = [8, 32], strides = [1, 1]} : vector<8x128xf32> to vector<8x32xf32>
    %310 = arith.addf %308, %309 : vector<8x32xf32>
    %311 = arith.negf %310 : vector<8x32xf32>
    %312 = math.exp %311 : vector<8x32xf32>
    %cst_60 = arith.constant 1.000000e+00 : f32
    %313 = vector.broadcast %cst_60 : f32 to vector<8x32xf32>
    %314 = arith.addf %313, %312 : vector<8x32xf32>
    %315 = arith.divf %313, %314 : vector<8x32xf32>
    %316 = vector.extract_strided_slice %296 {offsets = [0, 64], sizes = [8, 32], strides = [1, 1]} : vector<8x128xf32> to vector<8x32xf32>
    %317 = vector.extract_strided_slice %299 {offsets = [0, 64], sizes = [8, 32], strides = [1, 1]} : vector<8x128xf32> to vector<8x32xf32>
    %318 = arith.mulf %307, %317 : vector<8x32xf32>
    %319 = arith.addf %316, %318 : vector<8x32xf32>
    %320 = math.tanh %319 : vector<8x32xf32>
    %cst_61 = arith.constant 1.000000e+00 : f32
    %321 = vector.broadcast %cst_61 : f32 to vector<8x32xf32>
    %322 = arith.subf %321, %315 : vector<8x32xf32>
    %323 = arith.mulf %322, %320 : vector<8x32xf32>
    %324 = arith.mulf %315, %293 : vector<8x32xf32>
    %325 = arith.addf %323, %324 : vector<8x32xf32>
    %cst_62 = arith.constant dense<0.000000e+00> : vector<8x128xf32>
    %326 = tpu.matmul %102, %260, %cst_62 {dimension_numbers = #tpu.dot_dimension_numbers<[1], [0], [0], [1], [0, 0, 1, 1], [], []>} : vector<8x32xf32>, vector<32x128xf32>, vector<8x128xf32> -> vector<8x128xf32>
    %327 = vector.broadcast %257 : vector<1x128xf32> to vector<8x128xf32>
    %328 = arith.addf %326, %327 : vector<8x128xf32>
    %cst_63 = arith.constant dense<0.000000e+00> : vector<8x128xf32>
    %329 = tpu.matmul %325, %254, %cst_63 {dimension_numbers = #tpu.dot_dimension_numbers<[1], [0], [0], [1], [0, 0, 1, 1], [], []>} : vector<8x32xf32>, vector<32x128xf32>, vector<8x128xf32> -> vector<8x128xf32>
    %330 = vector.broadcast %258 : vector<1x128xf32> to vector<8x128xf32>
    %331 = arith.addf %329, %330 : vector<8x128xf32>
    %332 = vector.extract_strided_slice %328 {offsets = [0, 0], sizes = [8, 32], strides = [1, 1]} : vector<8x128xf32> to vector<8x32xf32>
    %333 = vector.extract_strided_slice %331 {offsets = [0, 0], sizes = [8, 32], strides = [1, 1]} : vector<8x128xf32> to vector<8x32xf32>
    %334 = arith.addf %332, %333 : vector<8x32xf32>
    %335 = arith.negf %334 : vector<8x32xf32>
    %336 = math.exp %335 : vector<8x32xf32>
    %cst_64 = arith.constant 1.000000e+00 : f32
    %337 = vector.broadcast %cst_64 : f32 to vector<8x32xf32>
    %338 = arith.addf %337, %336 : vector<8x32xf32>
    %339 = arith.divf %337, %338 : vector<8x32xf32>
    %340 = vector.extract_strided_slice %328 {offsets = [0, 32], sizes = [8, 32], strides = [1, 1]} : vector<8x128xf32> to vector<8x32xf32>
    %341 = vector.extract_strided_slice %331 {offsets = [0, 32], sizes = [8, 32], strides = [1, 1]} : vector<8x128xf32> to vector<8x32xf32>
    %342 = arith.addf %340, %341 : vector<8x32xf32>
    %343 = arith.negf %342 : vector<8x32xf32>
    %344 = math.exp %343 : vector<8x32xf32>
    %cst_65 = arith.constant 1.000000e+00 : f32
    %345 = vector.broadcast %cst_65 : f32 to vector<8x32xf32>
    %346 = arith.addf %345, %344 : vector<8x32xf32>
    %347 = arith.divf %345, %346 : vector<8x32xf32>
    %348 = vector.extract_strided_slice %328 {offsets = [0, 64], sizes = [8, 32], strides = [1, 1]} : vector<8x128xf32> to vector<8x32xf32>
    %349 = vector.extract_strided_slice %331 {offsets = [0, 64], sizes = [8, 32], strides = [1, 1]} : vector<8x128xf32> to vector<8x32xf32>
    %350 = arith.mulf %339, %349 : vector<8x32xf32>
    %351 = arith.addf %348, %350 : vector<8x32xf32>
    %352 = math.tanh %351 : vector<8x32xf32>
    %cst_66 = arith.constant 1.000000e+00 : f32
    %353 = vector.broadcast %cst_66 : f32 to vector<8x32xf32>
    %354 = arith.subf %353, %347 : vector<8x32xf32>
    %355 = arith.mulf %354, %352 : vector<8x32xf32>
    %356 = arith.mulf %347, %325 : vector<8x32xf32>
    %357 = arith.addf %355, %356 : vector<8x32xf32>
    %cst_67 = arith.constant dense<0.000000e+00> : vector<8x128xf32>
    %358 = tpu.matmul %132, %260, %cst_67 {dimension_numbers = #tpu.dot_dimension_numbers<[1], [0], [0], [1], [0, 0, 1, 1], [], []>} : vector<8x32xf32>, vector<32x128xf32>, vector<8x128xf32> -> vector<8x128xf32>
    %359 = vector.broadcast %257 : vector<1x128xf32> to vector<8x128xf32>
    %360 = arith.addf %358, %359 : vector<8x128xf32>
    %cst_68 = arith.constant dense<0.000000e+00> : vector<8x128xf32>
    %361 = tpu.matmul %357, %254, %cst_68 {dimension_numbers = #tpu.dot_dimension_numbers<[1], [0], [0], [1], [0, 0, 1, 1], [], []>} : vector<8x32xf32>, vector<32x128xf32>, vector<8x128xf32> -> vector<8x128xf32>
    %362 = vector.broadcast %258 : vector<1x128xf32> to vector<8x128xf32>
    %363 = arith.addf %361, %362 : vector<8x128xf32>
    %364 = vector.extract_strided_slice %360 {offsets = [0, 0], sizes = [8, 32], strides = [1, 1]} : vector<8x128xf32> to vector<8x32xf32>
    %365 = vector.extract_strided_slice %363 {offsets = [0, 0], sizes = [8, 32], strides = [1, 1]} : vector<8x128xf32> to vector<8x32xf32>
    %366 = arith.addf %364, %365 : vector<8x32xf32>
    %367 = arith.negf %366 : vector<8x32xf32>
    %368 = math.exp %367 : vector<8x32xf32>
    %cst_69 = arith.constant 1.000000e+00 : f32
    %369 = vector.broadcast %cst_69 : f32 to vector<8x32xf32>
    %370 = arith.addf %369, %368 : vector<8x32xf32>
    %371 = arith.divf %369, %370 : vector<8x32xf32>
    %372 = vector.extract_strided_slice %360 {offsets = [0, 32], sizes = [8, 32], strides = [1, 1]} : vector<8x128xf32> to vector<8x32xf32>
    %373 = vector.extract_strided_slice %363 {offsets = [0, 32], sizes = [8, 32], strides = [1, 1]} : vector<8x128xf32> to vector<8x32xf32>
    %374 = arith.addf %372, %373 : vector<8x32xf32>
    %375 = arith.negf %374 : vector<8x32xf32>
    %376 = math.exp %375 : vector<8x32xf32>
    %cst_70 = arith.constant 1.000000e+00 : f32
    %377 = vector.broadcast %cst_70 : f32 to vector<8x32xf32>
    %378 = arith.addf %377, %376 : vector<8x32xf32>
    %379 = arith.divf %377, %378 : vector<8x32xf32>
    %380 = vector.extract_strided_slice %360 {offsets = [0, 64], sizes = [8, 32], strides = [1, 1]} : vector<8x128xf32> to vector<8x32xf32>
    %381 = vector.extract_strided_slice %363 {offsets = [0, 64], sizes = [8, 32], strides = [1, 1]} : vector<8x128xf32> to vector<8x32xf32>
    %382 = arith.mulf %371, %381 : vector<8x32xf32>
    %383 = arith.addf %380, %382 : vector<8x32xf32>
    %384 = math.tanh %383 : vector<8x32xf32>
    %cst_71 = arith.constant 1.000000e+00 : f32
    %385 = vector.broadcast %cst_71 : f32 to vector<8x32xf32>
    %386 = arith.subf %385, %379 : vector<8x32xf32>
    %387 = arith.mulf %386, %384 : vector<8x32xf32>
    %388 = arith.mulf %379, %357 : vector<8x32xf32>
    %389 = arith.addf %387, %388 : vector<8x32xf32>
    %cst_72 = arith.constant dense<0.000000e+00> : vector<8x128xf32>
    %390 = tpu.matmul %162, %260, %cst_72 {dimension_numbers = #tpu.dot_dimension_numbers<[1], [0], [0], [1], [0, 0, 1, 1], [], []>} : vector<8x32xf32>, vector<32x128xf32>, vector<8x128xf32> -> vector<8x128xf32>
    %391 = vector.broadcast %257 : vector<1x128xf32> to vector<8x128xf32>
    %392 = arith.addf %390, %391 : vector<8x128xf32>
    %cst_73 = arith.constant dense<0.000000e+00> : vector<8x128xf32>
    %393 = tpu.matmul %389, %254, %cst_73 {dimension_numbers = #tpu.dot_dimension_numbers<[1], [0], [0], [1], [0, 0, 1, 1], [], []>} : vector<8x32xf32>, vector<32x128xf32>, vector<8x128xf32> -> vector<8x128xf32>
    %394 = vector.broadcast %258 : vector<1x128xf32> to vector<8x128xf32>
    %395 = arith.addf %393, %394 : vector<8x128xf32>
    %396 = vector.extract_strided_slice %392 {offsets = [0, 0], sizes = [8, 32], strides = [1, 1]} : vector<8x128xf32> to vector<8x32xf32>
    %397 = vector.extract_strided_slice %395 {offsets = [0, 0], sizes = [8, 32], strides = [1, 1]} : vector<8x128xf32> to vector<8x32xf32>
    %398 = arith.addf %396, %397 : vector<8x32xf32>
    %399 = arith.negf %398 : vector<8x32xf32>
    %400 = math.exp %399 : vector<8x32xf32>
    %cst_74 = arith.constant 1.000000e+00 : f32
    %401 = vector.broadcast %cst_74 : f32 to vector<8x32xf32>
    %402 = arith.addf %401, %400 : vector<8x32xf32>
    %403 = arith.divf %401, %402 : vector<8x32xf32>
    %404 = vector.extract_strided_slice %392 {offsets = [0, 32], sizes = [8, 32], strides = [1, 1]} : vector<8x128xf32> to vector<8x32xf32>
    %405 = vector.extract_strided_slice %395 {offsets = [0, 32], sizes = [8, 32], strides = [1, 1]} : vector<8x128xf32> to vector<8x32xf32>
    %406 = arith.addf %404, %405 : vector<8x32xf32>
    %407 = arith.negf %406 : vector<8x32xf32>
    %408 = math.exp %407 : vector<8x32xf32>
    %cst_75 = arith.constant 1.000000e+00 : f32
    %409 = vector.broadcast %cst_75 : f32 to vector<8x32xf32>
    %410 = arith.addf %409, %408 : vector<8x32xf32>
    %411 = arith.divf %409, %410 : vector<8x32xf32>
    %412 = vector.extract_strided_slice %392 {offsets = [0, 64], sizes = [8, 32], strides = [1, 1]} : vector<8x128xf32> to vector<8x32xf32>
    %413 = vector.extract_strided_slice %395 {offsets = [0, 64], sizes = [8, 32], strides = [1, 1]} : vector<8x128xf32> to vector<8x32xf32>
    %414 = arith.mulf %403, %413 : vector<8x32xf32>
    %415 = arith.addf %412, %414 : vector<8x32xf32>
    %416 = math.tanh %415 : vector<8x32xf32>
    %cst_76 = arith.constant 1.000000e+00 : f32
    %417 = vector.broadcast %cst_76 : f32 to vector<8x32xf32>
    %418 = arith.subf %417, %411 : vector<8x32xf32>
    %419 = arith.mulf %418, %416 : vector<8x32xf32>
    %420 = arith.mulf %411, %389 : vector<8x32xf32>
    %421 = arith.addf %419, %420 : vector<8x32xf32>
    %cst_77 = arith.constant dense<0.000000e+00> : vector<8x128xf32>
    %422 = tpu.matmul %192, %260, %cst_77 {dimension_numbers = #tpu.dot_dimension_numbers<[1], [0], [0], [1], [0, 0, 1, 1], [], []>} : vector<8x32xf32>, vector<32x128xf32>, vector<8x128xf32> -> vector<8x128xf32>
    %423 = vector.broadcast %257 : vector<1x128xf32> to vector<8x128xf32>
    %424 = arith.addf %422, %423 : vector<8x128xf32>
    %cst_78 = arith.constant dense<0.000000e+00> : vector<8x128xf32>
    %425 = tpu.matmul %421, %254, %cst_78 {dimension_numbers = #tpu.dot_dimension_numbers<[1], [0], [0], [1], [0, 0, 1, 1], [], []>} : vector<8x32xf32>, vector<32x128xf32>, vector<8x128xf32> -> vector<8x128xf32>
    %426 = vector.broadcast %258 : vector<1x128xf32> to vector<8x128xf32>
    %427 = arith.addf %425, %426 : vector<8x128xf32>
    %428 = vector.extract_strided_slice %424 {offsets = [0, 0], sizes = [8, 32], strides = [1, 1]} : vector<8x128xf32> to vector<8x32xf32>
    %429 = vector.extract_strided_slice %427 {offsets = [0, 0], sizes = [8, 32], strides = [1, 1]} : vector<8x128xf32> to vector<8x32xf32>
    %430 = arith.addf %428, %429 : vector<8x32xf32>
    %431 = arith.negf %430 : vector<8x32xf32>
    %432 = math.exp %431 : vector<8x32xf32>
    %cst_79 = arith.constant 1.000000e+00 : f32
    %433 = vector.broadcast %cst_79 : f32 to vector<8x32xf32>
    %434 = arith.addf %433, %432 : vector<8x32xf32>
    %435 = arith.divf %433, %434 : vector<8x32xf32>
    %436 = vector.extract_strided_slice %424 {offsets = [0, 32], sizes = [8, 32], strides = [1, 1]} : vector<8x128xf32> to vector<8x32xf32>
    %437 = vector.extract_strided_slice %427 {offsets = [0, 32], sizes = [8, 32], strides = [1, 1]} : vector<8x128xf32> to vector<8x32xf32>
    %438 = arith.addf %436, %437 : vector<8x32xf32>
    %439 = arith.negf %438 : vector<8x32xf32>
    %440 = math.exp %439 : vector<8x32xf32>
    %cst_80 = arith.constant 1.000000e+00 : f32
    %441 = vector.broadcast %cst_80 : f32 to vector<8x32xf32>
    %442 = arith.addf %441, %440 : vector<8x32xf32>
    %443 = arith.divf %441, %442 : vector<8x32xf32>
    %444 = vector.extract_strided_slice %424 {offsets = [0, 64], sizes = [8, 32], strides = [1, 1]} : vector<8x128xf32> to vector<8x32xf32>
    %445 = vector.extract_strided_slice %427 {offsets = [0, 64], sizes = [8, 32], strides = [1, 1]} : vector<8x128xf32> to vector<8x32xf32>
    %446 = arith.mulf %435, %445 : vector<8x32xf32>
    %447 = arith.addf %444, %446 : vector<8x32xf32>
    %448 = math.tanh %447 : vector<8x32xf32>
    %cst_81 = arith.constant 1.000000e+00 : f32
    %449 = vector.broadcast %cst_81 : f32 to vector<8x32xf32>
    %450 = arith.subf %449, %443 : vector<8x32xf32>
    %451 = arith.mulf %450, %448 : vector<8x32xf32>
    %452 = arith.mulf %443, %421 : vector<8x32xf32>
    %453 = arith.addf %451, %452 : vector<8x32xf32>
    %cst_82 = arith.constant dense<0.000000e+00> : vector<8x128xf32>
    %454 = tpu.matmul %222, %260, %cst_82 {dimension_numbers = #tpu.dot_dimension_numbers<[1], [0], [0], [1], [0, 0, 1, 1], [], []>} : vector<8x32xf32>, vector<32x128xf32>, vector<8x128xf32> -> vector<8x128xf32>
    %455 = vector.broadcast %257 : vector<1x128xf32> to vector<8x128xf32>
    %456 = arith.addf %454, %455 : vector<8x128xf32>
    %cst_83 = arith.constant dense<0.000000e+00> : vector<8x128xf32>
    %457 = tpu.matmul %453, %254, %cst_83 {dimension_numbers = #tpu.dot_dimension_numbers<[1], [0], [0], [1], [0, 0, 1, 1], [], []>} : vector<8x32xf32>, vector<32x128xf32>, vector<8x128xf32> -> vector<8x128xf32>
    %458 = vector.broadcast %258 : vector<1x128xf32> to vector<8x128xf32>
    %459 = arith.addf %457, %458 : vector<8x128xf32>
    %460 = vector.extract_strided_slice %456 {offsets = [0, 0], sizes = [8, 32], strides = [1, 1]} : vector<8x128xf32> to vector<8x32xf32>
    %461 = vector.extract_strided_slice %459 {offsets = [0, 0], sizes = [8, 32], strides = [1, 1]} : vector<8x128xf32> to vector<8x32xf32>
    %462 = arith.addf %460, %461 : vector<8x32xf32>
    %463 = arith.negf %462 : vector<8x32xf32>
    %464 = math.exp %463 : vector<8x32xf32>
    %cst_84 = arith.constant 1.000000e+00 : f32
    %465 = vector.broadcast %cst_84 : f32 to vector<8x32xf32>
    %466 = arith.addf %465, %464 : vector<8x32xf32>
    %467 = arith.divf %465, %466 : vector<8x32xf32>
    %468 = vector.extract_strided_slice %456 {offsets = [0, 32], sizes = [8, 32], strides = [1, 1]} : vector<8x128xf32> to vector<8x32xf32>
    %469 = vector.extract_strided_slice %459 {offsets = [0, 32], sizes = [8, 32], strides = [1, 1]} : vector<8x128xf32> to vector<8x32xf32>
    %470 = arith.addf %468, %469 : vector<8x32xf32>
    %471 = arith.negf %470 : vector<8x32xf32>
    %472 = math.exp %471 : vector<8x32xf32>
    %cst_85 = arith.constant 1.000000e+00 : f32
    %473 = vector.broadcast %cst_85 : f32 to vector<8x32xf32>
    %474 = arith.addf %473, %472 : vector<8x32xf32>
    %475 = arith.divf %473, %474 : vector<8x32xf32>
    %476 = vector.extract_strided_slice %456 {offsets = [0, 64], sizes = [8, 32], strides = [1, 1]} : vector<8x128xf32> to vector<8x32xf32>
    %477 = vector.extract_strided_slice %459 {offsets = [0, 64], sizes = [8, 32], strides = [1, 1]} : vector<8x128xf32> to vector<8x32xf32>
    %478 = arith.mulf %467, %477 : vector<8x32xf32>
    %479 = arith.addf %476, %478 : vector<8x32xf32>
    %480 = math.tanh %479 : vector<8x32xf32>
    %cst_86 = arith.constant 1.000000e+00 : f32
    %481 = vector.broadcast %cst_86 : f32 to vector<8x32xf32>
    %482 = arith.subf %481, %475 : vector<8x32xf32>
    %483 = arith.mulf %482, %480 : vector<8x32xf32>
    %484 = arith.mulf %475, %453 : vector<8x32xf32>
    %485 = arith.addf %483, %484 : vector<8x32xf32>
    %cst_87 = arith.constant dense<0.000000e+00> : vector<8x128xf32>
    %486 = tpu.matmul %252, %260, %cst_87 {dimension_numbers = #tpu.dot_dimension_numbers<[1], [0], [0], [1], [0, 0, 1, 1], [], []>} : vector<8x32xf32>, vector<32x128xf32>, vector<8x128xf32> -> vector<8x128xf32>
    %487 = vector.broadcast %257 : vector<1x128xf32> to vector<8x128xf32>
    %488 = arith.addf %486, %487 : vector<8x128xf32>
    %cst_88 = arith.constant dense<0.000000e+00> : vector<8x128xf32>
    %489 = tpu.matmul %485, %254, %cst_88 {dimension_numbers = #tpu.dot_dimension_numbers<[1], [0], [0], [1], [0, 0, 1, 1], [], []>} : vector<8x32xf32>, vector<32x128xf32>, vector<8x128xf32> -> vector<8x128xf32>
    %490 = vector.broadcast %258 : vector<1x128xf32> to vector<8x128xf32>
    %491 = arith.addf %489, %490 : vector<8x128xf32>
    %492 = vector.extract_strided_slice %488 {offsets = [0, 0], sizes = [8, 32], strides = [1, 1]} : vector<8x128xf32> to vector<8x32xf32>
    %493 = vector.extract_strided_slice %491 {offsets = [0, 0], sizes = [8, 32], strides = [1, 1]} : vector<8x128xf32> to vector<8x32xf32>
    %494 = arith.addf %492, %493 : vector<8x32xf32>
    %495 = arith.negf %494 : vector<8x32xf32>
    %496 = math.exp %495 : vector<8x32xf32>
    %cst_89 = arith.constant 1.000000e+00 : f32
    %497 = vector.broadcast %cst_89 : f32 to vector<8x32xf32>
    %498 = arith.addf %497, %496 : vector<8x32xf32>
    %499 = arith.divf %497, %498 : vector<8x32xf32>
    %500 = vector.extract_strided_slice %488 {offsets = [0, 32], sizes = [8, 32], strides = [1, 1]} : vector<8x128xf32> to vector<8x32xf32>
    %501 = vector.extract_strided_slice %491 {offsets = [0, 32], sizes = [8, 32], strides = [1, 1]} : vector<8x128xf32> to vector<8x32xf32>
    %502 = arith.addf %500, %501 : vector<8x32xf32>
    %503 = arith.negf %502 : vector<8x32xf32>
    %504 = math.exp %503 : vector<8x32xf32>
    %cst_90 = arith.constant 1.000000e+00 : f32
    %505 = vector.broadcast %cst_90 : f32 to vector<8x32xf32>
    %506 = arith.addf %505, %504 : vector<8x32xf32>
    %507 = arith.divf %505, %506 : vector<8x32xf32>
    %508 = vector.extract_strided_slice %488 {offsets = [0, 64], sizes = [8, 32], strides = [1, 1]} : vector<8x128xf32> to vector<8x32xf32>
    %509 = vector.extract_strided_slice %491 {offsets = [0, 64], sizes = [8, 32], strides = [1, 1]} : vector<8x128xf32> to vector<8x32xf32>
    %510 = arith.mulf %499, %509 : vector<8x32xf32>
    %511 = arith.addf %508, %510 : vector<8x32xf32>
    %512 = math.tanh %511 : vector<8x32xf32>
    %cst_91 = arith.constant 1.000000e+00 : f32
    %513 = vector.broadcast %cst_91 : f32 to vector<8x32xf32>
    %514 = arith.subf %513, %507 : vector<8x32xf32>
    %515 = arith.mulf %514, %512 : vector<8x32xf32>
    %516 = arith.mulf %507, %485 : vector<8x32xf32>
    %517 = arith.addf %515, %516 : vector<8x32xf32>
    %c0_92 = arith.constant 0 : index
    %c0_93 = arith.constant 0 : index
    %518 = vector.load %arg4[%c0_92, %c0_93] : memref<2x32xf32, #tpu.memory_space<vmem>>, vector<2x32xf32>
    %519 = vector.extract_strided_slice %518 {offsets = [0, 0], sizes = [1, 32], strides = [1, 1]} : vector<2x32xf32> to vector<1x32xf32>
    %520 = vector.broadcast %519 : vector<1x32xf32> to vector<8x32xf32>
    %521 = arith.mulf %517, %520 : vector<8x32xf32>
    %cst_94 = arith.constant dense<0.000000e+00> : vector<8xf32>
    %522 = vector.multi_reduction <add>, %521, %cst_94 [1] : vector<8x32xf32> to vector<8xf32>
    %523 = vector.shape_cast %522 : vector<8xf32> to vector<8x1xf32>
    %524 = vector.extract_strided_slice %518 {offsets = [1, 0], sizes = [1, 1], strides = [1, 1]} : vector<2x32xf32> to vector<1x1xf32>
    %525 = vector.broadcast %524 : vector<1x1xf32> to vector<8x1xf32>
    %526 = arith.addf %523, %525 : vector<8x1xf32>
    %c0_95 = arith.constant 0 : index
    %c0_96 = arith.constant 0 : index
    %527 = vector.load %arg5[%c0_95, %c0_96] : memref<8x1xf32, #tpu.memory_space<vmem>>, vector<8x1xf32>
    tpu.vector_store %arg5[%c0_95, %c0_96], %526 {strides = array<i32>} : memref<8x1xf32, #tpu.memory_space<vmem>>, vector<8x1xf32>,
    return
  }
}

</mosaic_0001>

<llo_original>
// kernel: gru_forward.1
$region0: #{gru_forward.1}
  #allocation0 [shape = 'u32[]', space=smem, size = 0x4, offset = 0x4, fixed_abs, tag = 'smem constant byte address 0x4 - core index']
  #allocation1 [shape = 'u32[144,128]{1,0:T(1,128)}', space=vmem, size = 0x12000, scoped, tag = 'internal scratch']
  %s0 = inlined_call_operand.vmem [shape: f32[64,32], index: 0, kind: input, shape index: {}]
  %s1 = inlined_call_operand.vmem [shape: f32[2,32,128], index: 1, kind: input, shape index: {}]
  %s2 = inlined_call_operand.hbm [shape: f32[2,32,128], index: 2, kind: input, shape index: {}]
  %s3 = inlined_call_operand.vmem [shape: f32[2,2,128], index: 3, kind: input, shape index: {}]
  %s4 = inlined_call_operand.vmem [shape: f32[2,32], index: 4, kind: input, shape index: {}]
  %s5 = inlined_call_operand.vmem [shape: f32[8,1], index: 5, kind: output, shape index: {}]
  %s6 = sld [smem:[#allocation0]]
  $region34: #{gru_forward.1} parent=0
    _
  %s8 = ssub.s32 1, %s6
  %s9 = scalar_select 0, %s8, %s6
  $region1: #{gru_forward.1} parent=0
    #allocation2 [shape = 'u8[32768]{0}', space=vmem, size = 0x8000, scoped, tag = 'input window, operand 2, single buffered']
    #allocation3 [shape = 's32[1]{0}', space=sflag, size = 0x4, scoped, tag = 'scoped memory for gru_forward.1']
    %10 = vsyncpa [#allocation3], 0
    // Predicated region
    $region2: #{gru_forward.1} parent=1 // pred_check
      _
    $region3: #{gru_forward.1} parent=1 // pred_check_branch
      %12 = sbr.rel (0) target = $region5
    $region4: #{gru_forward.1} parent=1 // pred_region
      _
    $region5: #{gru_forward.1} parent=1 // pred_fallthru
      _
    // Predicated region
    $region6: #{gru_forward.1} parent=1 // pred_check
      _
    $region7: #{gru_forward.1} parent=1 // pred_check_branch
      %14 = sbr.rel (0) target = $region9
    $region8: #{gru_forward.1} parent=1 // pred_region
      _
    $region9: #{gru_forward.1} parent=1 // pred_fallthru
      _
    // Predicated region
    $region10: #{gru_forward.1} parent=1 // pred_check
      _
    $region11: #{gru_forward.1} parent=1 // pred_check_branch
      %16 = sbr.rel (0) target = $region13
    $region12: #{gru_forward.1} parent=1 // pred_region
      %s18 = ssub.s32 1024, 1024
      %19 = vsyncadd [#allocation3], %s18
      %s20 = sshll.u32 [#allocation2], 4
      %s21 = int_to_ptr.vmem [resolvable:$true] %s20
      %26 = dma.hbm_to_vmem [thread:$0]  %s2, 1024, %s21, [#allocation3], 128, 128, 8
    $region13: #{gru_forward.1} parent=1 // pred_fallthru
      _
    // Predicated region
    $region14: #{gru_forward.1} parent=1 // pred_check
      _
    $region15: #{gru_forward.1} parent=1 // pred_check_branch
      %28 = sbr.rel (0) target = $region17
    $region16: #{gru_forward.1} parent=1 // pred_region
      _
    $region17: #{gru_forward.1} parent=1 // pred_fallthru
      _
    // Predicated region
    $region18: #{gru_forward.1} parent=1 // pred_check
      _
    $region19: #{gru_forward.1} parent=1 // pred_check_branch
      %30 = sbr.rel (0) target = $region21
    $region20: #{gru_forward.1} parent=1 // pred_region
      _
    $region21: #{gru_forward.1} parent=1 // pred_fallthru
      _
    // Predicated region
    $region22: #{gru_forward.1} parent=1 // pred_check
      _
    $region23: #{gru_forward.1} parent=1 // pred_check_branch
      %32 = sbr.rel (0) target = $region25
    $region24: #{gru_forward.1} parent=1 // pred_region
      %33 = dma.done [#allocation3], 1024
    $region25: #{gru_forward.1} parent=1 // pred_fallthru
      _
    %v34 = vld [vmem:[#allocation2] sm:$0xff]
    %v35 = vld [vmem:[#allocation2 + $0x8] sm:$0xff]
    %v36 = vld [vmem:[#allocation2 + $0x10] sm:$0xff]
    %v37 = vld [vmem:[#allocation2 + $0x18] sm:$0xff]
    %v38 = vld [vmem:[%s3] sm:$0x3]
    %v39 = vld [vmem:[%s0] sm:$0xff]
    %v40 = vld [vmem:[%s0 + $0x8] sm:$0xff]
    %v41 = vld [vmem:[%s0 + $0x10] sm:$0xff]
    %v42 = vld [vmem:[%s0 + $0x18] sm:$0xff]
    %v43 = vld [vmem:[%s0 + $0x20] sm:$0xff]
    %v44 = vld [vmem:[%s0 + $0x28] sm:$0xff]
    %v45 = vld [vmem:[%s0 + $0x30] sm:$0xff]
    %v46 = vld [vmem:[%s0 + $0x38] sm:$0xff]
    %v47 = vld [vmem:[%s1] sm:$0xff]
    %v48 = vld [vmem:[%s1 + $0x8] sm:$0xff]
    %v49 = vld [vmem:[%s1 + $0x10] sm:$0xff]
    %v50 = vld [vmem:[%s1 + $0x18] sm:$0xff]
    %v51 = vlaneseq
    %v52 = vshrl.u32 %v51, 7
    %v53 = vsub.s32 0, %v52
    %v54 = vrot.slane %v38, %v53
    %vm55 = vcmask 261120
    %v57 = vsel %vm55, %v39, 0
    %v60 = vsel %vm55, %v40, 0
    %v63 = vsel %vm55, %v41, 0
    %v66 = vsel %vm55, %v42, 0
    %v69 = vsel %vm55, %v43, 0
    %v72 = vsel %vm55, %v44, 0
    %v75 = vsel %vm55, %v45, 0
    %v78 = vsel %vm55, %v46, 0
    %80 = vmatprep.subr.mxu0 0.0
    %81 = vmatpush1.msra.mxu0 %v47
    %82 = vmatprep.subr.mxu0 0.0
    %83 = vmatpush1.msra.mxu0 %v48
    %84 = vmatprep.subr.mxu0 0.0
    %85 = vmatpush1.msra.mxu0 %v49
    %86 = vmatprep.subr.mxu0 0.0
    %87 = vmatpush1.msra.mxu0 %v50
    %88 = vmatprep.subr.mxu0 0.0
    %89 = vmatpush1.msra.mxu0 0.0
    %90 = vmatprep.subr.mxu0 0.0
    %91 = vmatpush1.msra.mxu0 0.0
    %92 = vmatprep.subr.mxu0 0.0
    %93 = vmatpush1.msra.mxu0 0.0
    %94 = vmatprep.subr.mxu0 0.0
    %95 = vmatpush1.msra.mxu0 0.0
    %96 = vmatprep.subr.mxu0 0.0
    %97 = vmatpush1.msra.mxu0 0.0
    %98 = vmatprep.subr.mxu0 0.0
    %99 = vmatpush1.msra.mxu0 0.0
    %100 = vmatprep.subr.mxu0 0.0
    %101 = vmatpush1.msra.mxu0 0.0
    %102 = vmatprep.subr.mxu0 0.0
    %103 = vmatpush1.msra.mxu0 0.0
    %104 = vmatprep.subr.mxu0 0.0
    %105 = vmatpush1.msra.mxu0 0.0
    %106 = vmatprep.subr.mxu0 0.0
    %107 = vmatpush1.msra.mxu0 0.0
    %108 = vmatprep.subr.mxu0 0.0
    %109 = vmatpush1.msra.mxu0 0.0
    %110 = vmatprep.subr.mxu0 0.0
    %111 = vmatpush1.msra.mxu0 0.0
    %112 = vmatprep.subr.mxu0 0.0
    %113 = vmatpush1.msra.mxu0 0.0
    %114 = vmatprep.subr.mxu0 0.0
    %115 = vmatpush1.msra.mxu0 0.0
    %116 = vmatprep.subr.mxu0 0.0
    %117 = vmatpush1.msra.mxu0 0.0
    %118 = vmatprep.subr.mxu0 0.0
    %119 = vmatpush1.msra.mxu0 0.0
    %120 = vmatprep.subr.mxu0 0.0
    %121 = vmatpush1.msra.mxu0 0.0
    %122 = vmatprep.subr.mxu0 0.0
    %123 = vmatpush1.msra.mxu0 0.0
    %124 = vmatprep.subr.mxu0 0.0
    %125 = vmatpush1.msra.mxu0 0.0
    %126 = vmatprep.subr.mxu0 0.0
    %127 = vmatpush1.msra.mxu0 0.0
    %128 = vmatprep.subr.mxu0 0.0
    %129 = vmatpush1.msra.mxu0 0.0
    %130 = vmatprep.subr.mxu0 0.0
    %131 = vmatpush1.msra.mxu0 0.0
    %132 = vmatprep.subr.mxu0 0.0
    %133 = vmatpush1.msra.mxu0 0.0
    %134 = vmatprep.subr.mxu0 0.0
    %135 = vmatpush1.msra.mxu0 0.0
    %136 = vmatprep.subr.mxu0 0.0
    %137 = vmatpush1.msra.mxu0 0.0
    %138 = vmatprep.subr.mxu0 0.0
    %139 = vmatpush1.msra.mxu0 0.0
    %140 = vmatprep.subr.mxu0 0.0
    %141 = vmatpush1.msra.mxu0 0.0
    %142 = vmatprep.subr.mxu0 0.0
    %143 = vmatpush1.msra.mxu0 0.0
    %144 = vmatprep.mubr.f32.mxu0 0.0
    %145 = vmatmul.mubr.f32.gmra.mrb[0].mxu0 %v57
    %v146 = vpop.f32.mrb[0].mxu0
    %v147 = vadd.f32 %v54, %v146
    %v148 = vpop.f32.mrb[0].mxu0
    %149 = vmatprep.mubr.f32.mxu0 0.0
    %150 = vmatmul.mubr.f32.gmra.mrb[0].mxu0 %v60
    %v151 = vpop.f32.mrb[0].mxu0
    %v152 = vadd.f32 %v54, %v151
    %v153 = vpop.f32.mrb[0].mxu0
    %154 = vmatprep.mubr.f32.mxu0 0.0
    %155 = vmatmul.mubr.f32.gmra.mrb[0].mxu0 %v63
    %v156 = vpop.f32.mrb[0].mxu0
    %v157 = vadd.f32 %v54, %v156
    %v158 = vpop.f32.mrb[0].mxu0
    %159 = vmatprep.mubr.f32.mxu0 0.0
    %160 = vmatmul.mubr.f32.gmra.mrb[0].mxu0 %v66
    %v161 = vpop.f32.mrb[0].mxu0
    %v162 = vadd.f32 %v54, %v161
    %v163 = vpop.f32.mrb[0].mxu0
    %164 = vmatprep.mubr.f32.mxu0 0.0
    %165 = vmatmul.mubr.f32.gmra.mrb[0].mxu0 %v69
    %v166 = vpop.f32.mrb[0].mxu0
    %v167 = vadd.f32 %v54, %v166
    %v168 = vpop.f32.mrb[0].mxu0
    %169 = vmatprep.mubr.f32.mxu0 0.0
    %170 = vmatmul.mubr.f32.gmra.mrb[0].mxu0 %v72
    %v171 = vpop.f32.mrb[0].mxu0
    %v172 = vadd.f32 %v54, %v171
    %v173 = vpop.f32.mrb[0].mxu0
    %174 = vmatprep.mubr.f32.mxu0 0.0
    %175 = vmatmul.mubr.f32.gmra.mrb[0].mxu0 %v75
    %v176 = vpop.f32.mrb[0].mxu0
    %v177 = vadd.f32 %v54, %v176
    %v178 = vpop.f32.mrb[0].mxu0
    %179 = vmatprep.mubr.f32.mxu0 0.0
    %180 = vmatmul.mubr.f32.gmra.mrb[0].mxu0 %v78
    %v181 = vpop.f32.mrb[0].mxu0
    %v182 = vadd.f32 %v54, %v181
    %v183 = vpop.f32.mrb[0].mxu0
    %184 = vdwg.mxu0
    %v185 = vlaneseq
    %v186 = vshrl.u32 %v185, 7
    %v187 = vsub.s32 1, %v186
    %v188 = vrot.slane %v38, %v187
    %v190 = vsel %vm55, 0.0, 0
    %192 = vmatprep.subr.mxu0 0.0
    %193 = vmatpush1.msra.mxu0 %v34
    %194 = vmatprep.subr.mxu0 0.0
    %195 = vmatpush1.msra.mxu0 %v35
    %196 = vmatprep.subr.mxu0 0.0
    %197 = vmatpush1.msra.mxu0 %v36
    %198 = vmatprep.subr.mxu0 0.0
    %199 = vmatpush1.msra.mxu0 %v37
    %200 = vmatprep.subr.mxu0 0.0
    %201 = vmatpush1.msra.mxu0 0.0
    %202 = vmatprep.subr.mxu0 0.0
    %203 = vmatpush1.msra.mxu0 0.0
    %204 = vmatprep.subr.mxu0 0.0
    %205 = vmatpush1.msra.mxu0 0.0
    %206 = vmatprep.subr.mxu0 0.0
    %207 = vmatpush1.msra.mxu0 0.0
    %208 = vmatprep.subr.mxu0 0.0
    %209 = vmatpush1.msra.mxu0 0.0
    %210 = vmatprep.subr.mxu0 0.0
    %211 = vmatpush1.msra.mxu0 0.0
    %212 = vmatprep.subr.mxu0 0.0
    %213 = vmatpush1.msra.mxu0 0.0
    %214 = vmatprep.subr.mxu0 0.0
    %215 = vmatpush1.msra.mxu0 0.0
    %216 = vmatprep.subr.mxu0 0.0
    %217 = vmatpush1.msra.mxu0 0.0
    %218 = vmatprep.subr.mxu0 0.0
    %219 = vmatpush1.msra.mxu0 0.0
    %220 = vmatprep.subr.mxu0 0.0
    %221 = vmatpush1.msra.mxu0 0.0
    %222 = vmatprep.subr.mxu0 0.0
    %223 = vmatpush1.msra.mxu0 0.0
    %224 = vmatprep.subr.mxu0 0.0
    %225 = vmatpush1.msra.mxu0 0.0
    %226 = vmatprep.subr.mxu0 0.0
    %227 = vmatpush1.msra.mxu0 0.0
    %228 = vmatprep.subr.mxu0 0.0
    %229 = vmatpush1.msra.mxu0 0.0
    %230 = vmatprep.subr.mxu0 0.0
    %231 = vmatpush1.msra.mxu0 0.0
    %232 = vmatprep.subr.mxu0 0.0
    %233 = vmatpush1.msra.mxu0 0.0
    %234 = vmatprep.subr.mxu0 0.0
    %235 = vmatpush1.msra.mxu0 0.0
    %236 = vmatprep.subr.mxu0 0.0
    %237 = vmatpush1.msra.mxu0 0.0
    %238 = vmatprep.subr.mxu0 0.0
    %239 = vmatpush1.msra.mxu0 0.0
    %240 = vmatprep.subr.mxu0 0.0
    %241 = vmatpush1.msra.mxu0 0.0
    %242 = vmatprep.subr.mxu0 0.0
    %243 = vmatpush1.msra.mxu0 0.0
    %244 = vmatprep.subr.mxu0 0.0
    %245 = vmatpush1.msra.mxu0 0.0
    %246 = vmatprep.subr.mxu0 0.0
    %247 = vmatpush1.msra.mxu0 0.0
    %248 = vmatprep.subr.mxu0 0.0
    %249 = vmatpush1.msra.mxu0 0.0
    %250 = vmatprep.subr.mxu0 0.0
    %251 = vmatpush1.msra.mxu0 0.0
    %252 = vmatprep.subr.mxu0 0.0
    %253 = vmatpush1.msra.mxu0 0.0
    %254 = vmatprep.subr.mxu0 0.0
    %255 = vmatpush1.msra.mxu0 0.0
    %256 = vmatprep.mubr.f32.mxu0 0.0
    %257 = vmatmul.mubr.f32.gmra.mrb[0].mxu0 %v190
    %v258 = vpop.f32.mrb[0].mxu0
    %v259 = vadd.f32 %v188, %v258
    %v260 = vpop.f32.mrb[0].mxu0
    %261 = vdwg.mxu0
    %v262 = vadd.f32 %v147, %v259
    %v263 = vxor.u32 %v262, 2147483648
    %v264 = vmul.f32 %v263, 1.442695
    %v265 = vpow.pop %v264
    %v266 = vadd.f32 %v265, 1.0
    %v267 = vrcp.pop %v266
    %v268 = vmul.f32 1.0, %v267
    %270 = vrot.lane.b32.xlu0 %v259, 64
    %v271 = vpop.permute.xlu0 %270
    %v273 = vmul.f32 %v268, %v271
    %275 = vrot.lane.b32.xlu0 %v273, 64
    %v276 = vpop.permute.xlu0 %275
    %v278 = vadd.f32 %v147, %v276
    %v279 = vtanh.pop %v278
    %v280 = vsub.f32 1.0, %v268
    %282 = vrot.lane.b32.xlu0 %v279, 96
    %v283 = vpop.permute.xlu0 %282
    %v285 = vmul.f32 %v280, %v283
    %v286 = vmul.f32 %v268, 0.0
    %v287 = vadd.f32 %v285, %v286
    %289 = vrot.lane.b32.xlu0 %v287, 96
    %v290 = vpop.permute.xlu0 %289
    %v291 = vsel %vm55, %v290, 0
    %293 = vmatprep.subr.mxu0 0.0
    %294 = vmatpush1.msra.mxu0 %v34
    %295 = vmatprep.subr.mxu0 0.0
    %296 = vmatpush1.msra.mxu0 %v35
    %297 = vmatprep.subr.mxu0 0.0
    %298 = vmatpush1.msra.mxu0 %v36
    %299 = vmatprep.subr.mxu0 0.0
    %300 = vmatpush1.msra.mxu0 %v37
    %301 = vmatprep.subr.mxu0 0.0
    %302 = vmatpush1.msra.mxu0 0.0
    %303 = vmatprep.subr.mxu0 0.0
    %304 = vmatpush1.msra.mxu0 0.0
    %305 = vmatprep.subr.mxu0 0.0
    %306 = vmatpush1.msra.mxu0 0.0
    %307 = vmatprep.subr.mxu0 0.0
    %308 = vmatpush1.msra.mxu0 0.0
    %309 = vmatprep.subr.mxu0 0.0
    %310 = vmatpush1.msra.mxu0 0.0
    %311 = vmatprep.subr.mxu0 0.0
    %312 = vmatpush1.msra.mxu0 0.0
    %313 = vmatprep.subr.mxu0 0.0
    %314 = vmatpush1.msra.mxu0 0.0
    %315 = vmatprep.subr.mxu0 0.0
    %316 = vmatpush1.msra.mxu0 0.0
    %317 = vmatprep.subr.mxu0 0.0
    %318 = vmatpush1.msra.mxu0 0.0
    %319 = vmatprep.subr.mxu0 0.0
    %320 = vmatpush1.msra.mxu0 0.0
    %321 = vmatprep.subr.mxu0 0.0
    %322 = vmatpush1.msra.mxu0 0.0
    %323 = vmatprep.subr.mxu0 0.0
    %324 = vmatpush1.msra.mxu0 0.0
    %325 = vmatprep.subr.mxu0 0.0
    %326 = vmatpush1.msra.mxu0 0.0
    %327 = vmatprep.subr.mxu0 0.0
    %328 = vmatpush1.msra.mxu0 0.0
    %329 = vmatprep.subr.mxu0 0.0
    %330 = vmatpush1.msra.mxu0 0.0
    %331 = vmatprep.subr.mxu0 0.0
    %332 = vmatpush1.msra.mxu0 0.0
    %333 = vmatprep.subr.mxu0 0.0
    %334 = vmatpush1.msra.mxu0 0.0
    %335 = vmatprep.subr.mxu0 0.0
    %336 = vmatpush1.msra.mxu0 0.0
    %337 = vmatprep.subr.mxu0 0.0
    %338 = vmatpush1.msra.mxu0 0.0
    %339 = vmatprep.subr.mxu0 0.0
    %340 = vmatpush1.msra.mxu0 0.0
    %341 = vmatprep.subr.mxu0 0.0
    %342 = vmatpush1.msra.mxu0 0.0
    %343 = vmatprep.subr.mxu0 0.0
    %344 = vmatpush1.msra.mxu0 0.0
    %345 = vmatprep.subr.mxu0 0.0
    %346 = vmatpush1.msra.mxu0 0.0
    %347 = vmatprep.subr.mxu0 0.0
    %348 = vmatpush1.msra.mxu0 0.0
    %349 = vmatprep.subr.mxu0 0.0
    %350 = vmatpush1.msra.mxu0 0.0
    %351 = vmatprep.subr.mxu0 0.0
    %352 = vmatpush1.msra.mxu0 0.0
    %353 = vmatprep.subr.mxu0 0.0
    %354 = vmatpush1.msra.mxu0 0.0
    %355 = vmatprep.subr.mxu0 0.0
    %356 = vmatpush1.msra.mxu0 0.0
    %357 = vmatprep.mubr.f32.mxu0 0.0
    %358 = vmatmul.mubr.f32.gmra.mrb[0].mxu0 %v291
    %v359 = vpop.f32.mrb[0].mxu0
    %v360 = vadd.f32 %v188, %v359
    %v361 = vpop.f32.mrb[0].mxu0
    %362 = vdwg.mxu0
    %v363 = vadd.f32 %v152, %v360
    %v364 = vxor.u32 %v363, 2147483648
    %v365 = vmul.f32 %v364, 1.442695
    %v366 = vpow.pop %v365
    %v367 = vadd.f32 %v366, 1.0
    %v368 = vrcp.pop %v367
    %v369 = vmul.f32 1.0, %v368
    %371 = vrot.lane.b32.xlu0 %v360, 64
    %v372 = vpop.permute.xlu0 %371
    %v374 = vmul.f32 %v369, %v372
    %376 = vrot.lane.b32.xlu0 %v374, 64
    %v377 = vpop.permute.xlu0 %376
    %v379 = vadd.f32 %v152, %v377
    %v380 = vtanh.pop %v379
    %v381 = vsub.f32 1.0, %v369
    %383 = vrot.lane.b32.xlu0 %v380, 96
    %v384 = vpop.permute.xlu0 %383
    %v386 = vmul.f32 %v381, %v384
    %v387 = vmul.f32 %v369, %v287
    %v388 = vadd.f32 %v386, %v387
    %390 = vrot.lane.b32.xlu0 %v388, 96
    %v391 = vpop.permute.xlu0 %390
    %v392 = vsel %vm55, %v391, 0
    %394 = vmatprep.subr.mxu0 0.0
    %395 = vmatpush1.msra.mxu0 %v34
    %396 = vmatprep.subr.mxu0 0.0
    %397 = vmatpush1.msra.mxu0 %v35
    %398 = vmatprep.subr.mxu0 0.0
    %399 = vmatpush1.msra.mxu0 %v36
    %400 = vmatprep.subr.mxu0 0.0
    %401 = vmatpush1.msra.mxu0 %v37
    %402 = vmatprep.subr.mxu0 0.0
    %403 = vmatpush1.msra.mxu0 0.0
    %404 = vmatprep.subr.mxu0 0.0
    %405 = vmatpush1.msra.mxu0 0.0
    %406 = vmatprep.subr.mxu0 0.0
    %407 = vmatpush1.msra.mxu0 0.0
    %408 = vmatprep.subr.mxu0 0.0
    %409 = vmatpush1.msra.mxu0 0.0
    %410 = vmatprep.subr.mxu0 0.0
    %411 = vmatpush1.msra.mxu0 0.0
    %412 = vmatprep.subr.mxu0 0.0
    %413 = vmatpush1.msra.mxu0 0.0
    %414 = vmatprep.subr.mxu0 0.0
    %415 = vmatpush1.msra.mxu0 0.0
    %416 = vmatprep.subr.mxu0 0.0
    %417 = vmatpush1.msra.mxu0 0.0
    %418 = vmatprep.subr.mxu0 0.0
    %419 = vmatpush1.msra.mxu0 0.0
    %420 = vmatprep.subr.mxu0 0.0
    %421 = vmatpush1.msra.mxu0 0.0
    %422 = vmatprep.subr.mxu0 0.0
    %423 = vmatpush1.msra.mxu0 0.0
    %424 = vmatprep.subr.mxu0 0.0
    %425 = vmatpush1.msra.mxu0 0.0
    %426 = vmatprep.subr.mxu0 0.0
    %427 = vmatpush1.msra.mxu0 0.0
    %428 = vmatprep.subr.mxu0 0.0
    %429 = vmatpush1.msra.mxu0 0.0
    %430 = vmatprep.subr.mxu0 0.0
    %431 = vmatpush1.msra.mxu0 0.0
    %432 = vmatprep.subr.mxu0 0.0
    %433 = vmatpush1.msra.mxu0 0.0
    %434 = vmatprep.subr.mxu0 0.0
    %435 = vmatpush1.msra.mxu0 0.0
    %436 = vmatprep.subr.mxu0 0.0
    %437 = vmatpush1.msra.mxu0 0.0
    %438 = vmatprep.subr.mxu0 0.0
    %439 = vmatpush1.msra.mxu0 0.0
    %440 = vmatprep.subr.mxu0 0.0
    %441 = vmatpush1.msra.mxu0 0.0
    %442 = vmatprep.subr.mxu0 0.0
    %443 = vmatpush1.msra.mxu0 0.0
    %444 = vmatprep.subr.mxu0 0.0
    %445 = vmatpush1.msra.mxu0 0.0
    %446 = vmatprep.subr.mxu0 0.0
    %447 = vmatpush1.msra.mxu0 0.0
    %448 = vmatprep.subr.mxu0 0.0
    %449 = vmatpush1.msra.mxu0 0.0
    %450 = vmatprep.subr.mxu0 0.0
    %451 = vmatpush1.msra.mxu0 0.0
    %452 = vmatprep.subr.mxu0 0.0
    %453 = vmatpush1.msra.mxu0 0.0
    %454 = vmatprep.subr.mxu0 0.0
    %455 = vmatpush1.msra.mxu0 0.0
    %456 = vmatprep.subr.mxu0 0.0
    %457 = vmatpush1.msra.mxu0 0.0
    %458 = vmatprep.mubr.f32.mxu0 0.0
    %459 = vmatmul.mubr.f32.gmra.mrb[0].mxu0 %v392
    %v460 = vpop.f32.mrb[0].mxu0
    %v461 = vadd.f32 %v188, %v460
    %v462 = vpop.f32.mrb[0].mxu0
    %463 = vdwg.mxu0
    %v464 = vadd.f32 %v157, %v461
    %v465 = vxor.u32 %v464, 2147483648
    %v466 = vmul.f32 %v465, 1.442695
    %v467 = vpow.pop %v466
    %v468 = vadd.f32 %v467, 1.0
    %v469 = vrcp.pop %v468
    %v470 = vmul.f32 1.0, %v469
    %472 = vrot.lane.b32.xlu0 %v461, 64
    %v473 = vpop.permute.xlu0 %472
    %v475 = vmul.f32 %v470, %v473
    %477 = vrot.lane.b32.xlu0 %v475, 64
    %v478 = vpop.permute.xlu0 %477
    %v480 = vadd.f32 %v157, %v478
    %v481 = vtanh.pop %v480
    %v482 = vsub.f32 1.0, %v470
    %484 = vrot.lane.b32.xlu0 %v481, 96
    %v485 = vpop.permute.xlu0 %484
    %v487 = vmul.f32 %v482, %v485
    %v488 = vmul.f32 %v470, %v388
    %v489 = vadd.f32 %v487, %v488
    %491 = vrot.lane.b32.xlu0 %v489, 96
    %v492 = vpop.permute.xlu0 %491
    %v493 = vsel %vm55, %v492, 0
    %495 = vmatprep.subr.mxu0 0.0
    %496 = vmatpush1.msra.mxu0 %v34
    %497 = vmatprep.subr.mxu0 0.0
    %498 = vmatpush1.msra.mxu0 %v35
    %499 = vmatprep.subr.mxu0 0.0
    %500 = vmatpush1.msra.mxu0 %v36
    %501 = vmatprep.subr.mxu0 0.0
    %502 = vmatpush1.msra.mxu0 %v37
    %503 = vmatprep.subr.mxu0 0.0
    %504 = vmatpush1.msra.mxu0 0.0
    %505 = vmatprep.subr.mxu0 0.0
    %506 = vmatpush1.msra.mxu0 0.0
    %507 = vmatprep.subr.mxu0 0.0
    %508 = vmatpush1.msra.mxu0 0.0
    %509 = vmatprep.subr.mxu0 0.0
    %510 = vmatpush1.msra.mxu0 0.0
    %511 = vmatprep.subr.mxu0 0.0
    %512 = vmatpush1.msra.mxu0 0.0
    %513 = vmatprep.subr.mxu0 0.0
    %514 = vmatpush1.msra.mxu0 0.0
    %515 = vmatprep.subr.mxu0 0.0
    %516 = vmatpush1.msra.mxu0 0.0
    %517 = vmatprep.subr.mxu0 0.0
    %518 = vmatpush1.msra.mxu0 0.0
    %519 = vmatprep.subr.mxu0 0.0
    %520 = vmatpush1.msra.mxu0 0.0
    %521 = vmatprep.subr.mxu0 0.0
    %522 = vmatpush1.msra.mxu0 0.0
    %523 = vmatprep.subr.mxu0 0.0
    %524 = vmatpush1.msra.mxu0 0.0
    %525 = vmatprep.subr.mxu0 0.0
    %526 = vmatpush1.msra.mxu0 0.0
    %527 = vmatprep.subr.mxu0 0.0
    %528 = vmatpush1.msra.mxu0 0.0
    %529 = vmatprep.subr.mxu0 0.0
    %530 = vmatpush1.msra.mxu0 0.0
    %531 = vmatprep.subr.mxu0 0.0
    %532 = vmatpush1.msra.mxu0 0.0
    %533 = vmatprep.subr.mxu0 0.0
    %534 = vmatpush1.msra.mxu0 0.0
    %535 = vmatprep.subr.mxu0 0.0
    %536 = vmatpush1.msra.mxu0 0.0
    %537 = vmatprep.subr.mxu0 0.0
    %538 = vmatpush1.msra.mxu0 0.0
    %539 = vmatprep.subr.mxu0 0.0
    %540 = vmatpush1.msra.mxu0 0.0
    %541 = vmatprep.subr.mxu0 0.0
    %542 = vmatpush1.msra.mxu0 0.0
    %543 = vmatprep.subr.mxu0 0.0
    %544 = vmatpush1.msra.mxu0 0.0
    %545 = vmatprep.subr.mxu0 0.0
    %546 = vmatpush1.msra.mxu0 0.0
    %547 = vmatprep.subr.mxu0 0.0
    %548 = vmatpush1.msra.mxu0 0.0
    %549 = vmatprep.subr.mxu0 0.0
    %550 = vmatpush1.msra.mxu0 0.0
    %551 = vmatprep.subr.mxu0 0.0
    %552 = vmatpush1.msra.mxu0 0.0
    %553 = vmatprep.subr.mxu0 0.0
    %554 = vmatpush1.msra.mxu0 0.0
    %555 = vmatprep.subr.mxu0 0.0
    %556 = vmatpush1.msra.mxu0 0.0
    %557 = vmatprep.subr.mxu0 0.0
    %558 = vmatpush1.msra.mxu0 0.0
    %559 = vmatprep.mubr.f32.mxu0 0.0
    %560 = vmatmul.mubr.f32.gmra.mrb[0].mxu0 %v493
    %v561 = vpop.f32.mrb[0].mxu0
    %v562 = vadd.f32 %v188, %v561
    %v563 = vpop.f32.mrb[0].mxu0
    %564 = vdwg.mxu0
    %v565 = vadd.f32 %v162, %v562
    %v566 = vxor.u32 %v565, 2147483648
    %v567 = vmul.f32 %v566, 1.442695
    %v568 = vpow.pop %v567
    %v569 = vadd.f32 %v568, 1.0
    %v570 = vrcp.pop %v569
    %v571 = vmul.f32 1.0, %v570
    %573 = vrot.lane.b32.xlu0 %v562, 64
    %v574 = vpop.permute.xlu0 %573
    %v576 = vmul.f32 %v571, %v574
    %578 = vrot.lane.b32.xlu0 %v576, 64
    %v579 = vpop.permute.xlu0 %578
    %v581 = vadd.f32 %v162, %v579
    %v582 = vtanh.pop %v581
    %v583 = vsub.f32 1.0, %v571
    %585 = vrot.lane.b32.xlu0 %v582, 96
    %v586 = vpop.permute.xlu0 %585
    %v588 = vmul.f32 %v583, %v586
    %v589 = vmul.f32 %v571, %v489
    %v590 = vadd.f32 %v588, %v589
    %592 = vrot.lane.b32.xlu0 %v590, 96
    %v593 = vpop.permute.xlu0 %592
    %v594 = vsel %vm55, %v593, 0
    %596 = vmatprep.subr.mxu0 0.0
    %597 = vmatpush1.msra.mxu0 %v34
    %598 = vmatprep.subr.mxu0 0.0
    %599 = vmatpush1.msra.mxu0 %v35
    %600 = vmatprep.subr.mxu0 0.0
    %601 = vmatpush1.msra.mxu0 %v36
    %602 = vmatprep.subr.mxu0 0.0
    %603 = vmatpush1.msra.mxu0 %v37
    %604 = vmatprep.subr.mxu0 0.0
    %605 = vmatpush1.msra.mxu0 0.0
    %606 = vmatprep.subr.mxu0 0.0
    %607 = vmatpush1.msra.mxu0 0.0
    %608 = vmatprep.subr.mxu0 0.0
    %609 = vmatpush1.msra.mxu0 0.0
    %610 = vmatprep.subr.mxu0 0.0
    %611 = vmatpush1.msra.mxu0 0.0
    %612 = vmatprep.subr.mxu0 0.0
    %613 = vmatpush1.msra.mxu0 0.0
    %614 = vmatprep.subr.mxu0 0.0
    %615 = vmatpush1.msra.mxu0 0.0
    %616 = vmatprep.subr.mxu0 0.0
    %617 = vmatpush1.msra.mxu0 0.0
    %618 = vmatprep.subr.mxu0 0.0
    %619 = vmatpush1.msra.mxu0 0.0
    %620 = vmatprep.subr.mxu0 0.0
    %621 = vmatpush1.msra.mxu0 0.0
    %622 = vmatprep.subr.mxu0 0.0
    %623 = vmatpush1.msra.mxu0 0.0
    %624 = vmatprep.subr.mxu0 0.0
    %625 = vmatpush1.msra.mxu0 0.0
    %626 = vmatprep.subr.mxu0 0.0
    %627 = vmatpush1.msra.mxu0 0.0
    %628 = vmatprep.subr.mxu0 0.0
    %629 = vmatpush1.msra.mxu0 0.0
    %630 = vmatprep.subr.mxu0 0.0
    %631 = vmatpush1.msra.mxu0 0.0
    %632 = vmatprep.subr.mxu0 0.0
    %633 = vmatpush1.msra.mxu0 0.0
    %634 = vmatprep.subr.mxu0 0.0
    %635 = vmatpush1.msra.mxu0 0.0
    %636 = vmatprep.subr.mxu0 0.0
    %637 = vmatpush1.msra.mxu0 0.0
    %638 = vmatprep.subr.mxu0 0.0
    %639 = vmatpush1.msra.mxu0 0.0
    %640 = vmatprep.subr.mxu0 0.0
    %641 = vmatpush1.msra.mxu0 0.0
    %642 = vmatprep.subr.mxu0 0.0
    %643 = vmatpush1.msra.mxu0 0.0
    %644 = vmatprep.subr.mxu0 0.0
    %645 = vmatpush1.msra.mxu0 0.0
    %646 = vmatprep.subr.mxu0 0.0
    %647 = vmatpush1.msra.mxu0 0.0
    %648 = vmatprep.subr.mxu0 0.0
    %649 = vmatpush1.msra.mxu0 0.0
    %650 = vmatprep.subr.mxu0 0.0
    %651 = vmatpush1.msra.mxu0 0.0
    %652 = vmatprep.subr.mxu0 0.0
    %653 = vmatpush1.msra.mxu0 0.0
    %654 = vmatprep.subr.mxu0 0.0
    %655 = vmatpush1.msra.mxu0 0.0
    %656 = vmatprep.subr.mxu0 0.0
    %657 = vmatpush1.msra.mxu0 0.0
    %658 = vmatprep.subr.mxu0 0.0
    %659 = vmatpush1.msra.mxu0 0.0
    %660 = vmatprep.mubr.f32.mxu0 0.0
    %661 = vmatmul.mubr.f32.gmra.mrb[0].mxu0 %v594
    %v662 = vpop.f32.mrb[0].mxu0
    %v663 = vadd.f32 %v188, %v662
    %v664 = vpop.f32.mrb[0].mxu0
    %665 = vdwg.mxu0
    %v666 = vadd.f32 %v167, %v663
    %v667 = vxor.u32 %v666, 2147483648
    %v668 = vmul.f32 %v667, 1.442695
    %v669 = vpow.pop %v668
    %v670 = vadd.f32 %v669, 1.0
    %v671 = vrcp.pop %v670
    %v672 = vmul.f32 1.0, %v671
    %674 = vrot.lane.b32.xlu0 %v663, 64
    %v675 = vpop.permute.xlu0 %674
    %v677 = vmul.f32 %v672, %v675
    %679 = vrot.lane.b32.xlu0 %v677, 64
    %v680 = vpop.permute.xlu0 %679
    %v682 = vadd.f32 %v167, %v680
    %v683 = vtanh.pop %v682
    %v684 = vsub.f32 1.0, %v672
    %686 = vrot.lane.b32.xlu0 %v683, 96
    %v687 = vpop.permute.xlu0 %686
    %v689 = vmul.f32 %v684, %v687
    %v690 = vmul.f32 %v672, %v590
    %v691 = vadd.f32 %v689, %v690
    %693 = vrot.lane.b32.xlu0 %v691, 96
    %v694 = vpop.permute.xlu0 %693
    %v695 = vsel %vm55, %v694, 0
    %697 = vmatprep.subr.mxu0 0.0
    %698 = vmatpush1.msra.mxu0 %v34
    %699 = vmatprep.subr.mxu0 0.0
    %700 = vmatpush1.msra.mxu0 %v35
    %701 = vmatprep.subr.mxu0 0.0
    %702 = vmatpush1.msra.mxu0 %v36
    %703 = vmatprep.subr.mxu0 0.0
    %704 = vmatpush1.msra.mxu0 %v37
    %705 = vmatprep.subr.mxu0 0.0
    %706 = vmatpush1.msra.mxu0 0.0
    %707 = vmatprep.subr.mxu0 0.0
    %708 = vmatpush1.msra.mxu0 0.0
    %709 = vmatprep.subr.mxu0 0.0
    %710 = vmatpush1.msra.mxu0 0.0
    %711 = vmatprep.subr.mxu0 0.0
    %712 = vmatpush1.msra.mxu0 0.0
    %713 = vmatprep.subr.mxu0 0.0
    %714 = vmatpush1.msra.mxu0 0.0
    %715 = vmatprep.subr.mxu0 0.0
    %716 = vmatpush1.msra.mxu0 0.0
    %717 = vmatprep.subr.mxu0 0.0
    %718 = vmatpush1.msra.mxu0 0.0
    %719 = vmatprep.subr.mxu0 0.0
    %720 = vmatpush1.msra.mxu0 0.0
    %721 = vmatprep.subr.mxu0 0.0
    %722 = vmatpush1.msra.mxu0 0.0
    %723 = vmatprep.subr.mxu0 0.0
    %724 = vmatpush1.msra.mxu0 0.0
    %725 = vmatprep.subr.mxu0 0.0
    %726 = vmatpush1.msra.mxu0 0.0
    %727 = vmatprep.subr.mxu0 0.0
    %728 = vmatpush1.msra.mxu0 0.0
    %729 = vmatprep.subr.mxu0 0.0
    %730 = vmatpush1.msra.mxu0 0.0
    %731 = vmatprep.subr.mxu0 0.0
    %732 = vmatpush1.msra.mxu0 0.0
    %733 = vmatprep.subr.mxu0 0.0
    %734 = vmatpush1.msra.mxu0 0.0
    %735 = vmatprep.subr.mxu0 0.0
    %736 = vmatpush1.msra.mxu0 0.0
    %737 = vmatprep.subr.mxu0 0.0
    %738 = vmatpush1.msra.mxu0 0.0
    %739 = vmatprep.subr.mxu0 0.0
    %740 = vmatpush1.msra.mxu0 0.0
    %741 = vmatprep.subr.mxu0 0.0
    %742 = vmatpush1.msra.mxu0 0.0
    %743 = vmatprep.subr.mxu0 0.0
    %744 = vmatpush1.msra.mxu0 0.0
    %745 = vmatprep.subr.mxu0 0.0
    %746 = vmatpush1.msra.mxu0 0.0
    %747 = vmatprep.subr.mxu0 0.0
    %748 = vmatpush1.msra.mxu0 0.0
    %749 = vmatprep.subr.mxu0 0.0
    %750 = vmatpush1.msra.mxu0 0.0
    %751 = vmatprep.subr.mxu0 0.0
    %752 = vmatpush1.msra.mxu0 0.0
    %753 = vmatprep.subr.mxu0 0.0
    %754 = vmatpush1.msra.mxu0 0.0
    %755 = vmatprep.subr.mxu0 0.0
    %756 = vmatpush1.msra.mxu0 0.0
    %757 = vmatprep.subr.mxu0 0.0
    %758 = vmatpush1.msra.mxu0 0.0
    %759 = vmatprep.subr.mxu0 0.0
    %760 = vmatpush1.msra.mxu0 0.0
    %761 = vmatprep.mubr.f32.mxu0 0.0
    %762 = vmatmul.mubr.f32.gmra.mrb[0].mxu0 %v695
    %v763 = vpop.f32.mrb[0].mxu0
    %v764 = vadd.f32 %v188, %v763
    %v765 = vpop.f32.mrb[0].mxu0
    %766 = vdwg.mxu0
    %v767 = vadd.f32 %v172, %v764
    %v768 = vxor.u32 %v767, 2147483648
    %v769 = vmul.f32 %v768, 1.442695
    %v770 = vpow.pop %v769
    %v771 = vadd.f32 %v770, 1.0
    %v772 = vrcp.pop %v771
    %v773 = vmul.f32 1.0, %v772
    %775 = vrot.lane.b32.xlu0 %v764, 64
    %v776 = vpop.permute.xlu0 %775
    %v778 = vmul.f32 %v773, %v776
    %780 = vrot.lane.b32.xlu0 %v778, 64
    %v781 = vpop.permute.xlu0 %780
    %v783 = vadd.f32 %v172, %v781
    %v784 = vtanh.pop %v783
    %v785 = vsub.f32 1.0, %v773
    %787 = vrot.lane.b32.xlu0 %v784, 96
    %v788 = vpop.permute.xlu0 %787
    %v790 = vmul.f32 %v785, %v788
    %v791 = vmul.f32 %v773, %v691
    %v792 = vadd.f32 %v790, %v791
    %794 = vrot.lane.b32.xlu0 %v792, 96
    %v795 = vpop.permute.xlu0 %794
    %v796 = vsel %vm55, %v795, 0
    %798 = vmatprep.subr.mxu0 0.0
    %799 = vmatpush1.msra.mxu0 %v34
    %800 = vmatprep.subr.mxu0 0.0
    %801 = vmatpush1.msra.mxu0 %v35
    %802 = vmatprep.subr.mxu0 0.0
    %803 = vmatpush1.msra.mxu0 %v36
    %804 = vmatprep.subr.mxu0 0.0
    %805 = vmatpush1.msra.mxu0 %v37
    %806 = vmatprep.subr.mxu0 0.0
    %807 = vmatpush1.msra.mxu0 0.0
    %808 = vmatprep.subr.mxu0 0.0
    %809 = vmatpush1.msra.mxu0 0.0
    %810 = vmatprep.subr.mxu0 0.0
    %811 = vmatpush1.msra.mxu0 0.0
    %812 = vmatprep.subr.mxu0 0.0
    %813 = vmatpush1.msra.mxu0 0.0
    %814 = vmatprep.subr.mxu0 0.0
    %815 = vmatpush1.msra.mxu0 0.0
    %816 = vmatprep.subr.mxu0 0.0
    %817 = vmatpush1.msra.mxu0 0.0
    %818 = vmatprep.subr.mxu0 0.0
    %819 = vmatpush1.msra.mxu0 0.0
    %820 = vmatprep.subr.mxu0 0.0
    %821 = vmatpush1.msra.mxu0 0.0
    %822 = vmatprep.subr.mxu0 0.0
    %823 = vmatpush1.msra.mxu0 0.0
    %824 = vmatprep.subr.mxu0 0.0
    %825 = vmatpush1.msra.mxu0 0.0
    %826 = vmatprep.subr.mxu0 0.0
    %827 = vmatpush1.msra.mxu0 0.0
    %828 = vmatprep.subr.mxu0 0.0
    %829 = vmatpush1.msra.mxu0 0.0
    %830 = vmatprep.subr.mxu0 0.0
    %831 = vmatpush1.msra.mxu0 0.0
    %832 = vmatprep.subr.mxu0 0.0
    %833 = vmatpush1.msra.mxu0 0.0
    %834 = vmatprep.subr.mxu0 0.0
    %835 = vmatpush1.msra.mxu0 0.0
    %836 = vmatprep.subr.mxu0 0.0
    %837 = vmatpush1.msra.mxu0 0.0
    %838 = vmatprep.subr.mxu0 0.0
    %839 = vmatpush1.msra.mxu0 0.0
    %840 = vmatprep.subr.mxu0 0.0
    %841 = vmatpush1.msra.mxu0 0.0
    %842 = vmatprep.subr.mxu0 0.0
    %843 = vmatpush1.msra.mxu0 0.0
    %844 = vmatprep.subr.mxu0 0.0
    %845 = vmatpush1.msra.mxu0 0.0
    %846 = vmatprep.subr.mxu0 0.0
    %847 = vmatpush1.msra.mxu0 0.0
    %848 = vmatprep.subr.mxu0 0.0
    %849 = vmatpush1.msra.mxu0 0.0
    %850 = vmatprep.subr.mxu0 0.0
    %851 = vmatpush1.msra.mxu0 0.0
    %852 = vmatprep.subr.mxu0 0.0
    %853 = vmatpush1.msra.mxu0 0.0
    %854 = vmatprep.subr.mxu0 0.0
    %855 = vmatpush1.msra.mxu0 0.0
    %856 = vmatprep.subr.mxu0 0.0
    %857 = vmatpush1.msra.mxu0 0.0
    %858 = vmatprep.subr.mxu0 0.0
    %859 = vmatpush1.msra.mxu0 0.0
    %860 = vmatprep.subr.mxu0 0.0
    %861 = vmatpush1.msra.mxu0 0.0
    %862 = vmatprep.mubr.f32.mxu0 0.0
    %863 = vmatmul.mubr.f32.gmra.mrb[0].mxu0 %v796
    %v864 = vpop.f32.mrb[0].mxu0
    %v865 = vadd.f32 %v188, %v864
    %v866 = vpop.f32.mrb[0].mxu0
    %867 = vdwg.mxu0
    %v868 = vadd.f32 %v177, %v865
    %v869 = vxor.u32 %v868, 2147483648
    %v870 = vmul.f32 %v869, 1.442695
    %v871 = vpow.pop %v870
    %v872 = vadd.f32 %v871, 1.0
    %v873 = vrcp.pop %v872
    %v874 = vmul.f32 1.0, %v873
    %876 = vrot.lane.b32.xlu0 %v865, 64
    %v877 = vpop.permute.xlu0 %876
    %v879 = vmul.f32 %v874, %v877
    %881 = vrot.lane.b32.xlu0 %v879, 64
    %v882 = vpop.permute.xlu0 %881
    %v884 = vadd.f32 %v177, %v882
    %v885 = vtanh.pop %v884
    %v886 = vsub.f32 1.0, %v874
    %888 = vrot.lane.b32.xlu0 %v885, 96
    %v889 = vpop.permute.xlu0 %888
    %v891 = vmul.f32 %v886, %v889
    %v892 = vmul.f32 %v874, %v792
    %v893 = vadd.f32 %v891, %v892
    %895 = vrot.lane.b32.xlu0 %v893, 96
    %v896 = vpop.permute.xlu0 %895
    %v897 = vsel %vm55, %v896, 0
    %899 = vmatprep.subr.mxu0 0.0
    %900 = vmatpush1.msra.mxu0 %v34
    %901 = vmatprep.subr.mxu0 0.0
    %902 = vmatpush1.msra.mxu0 %v35
    %903 = vmatprep.subr.mxu0 0.0
    %904 = vmatpush1.msra.mxu0 %v36
    %905 = vmatprep.subr.mxu0 0.0
    %906 = vmatpush1.msra.mxu0 %v37
    %907 = vmatprep.subr.mxu0 0.0
    %908 = vmatpush1.msra.mxu0 0.0
    %909 = vmatprep.subr.mxu0 0.0
    %910 = vmatpush1.msra.mxu0 0.0
    %911 = vmatprep.subr.mxu0 0.0
    %912 = vmatpush1.msra.mxu0 0.0
    %913 = vmatprep.subr.mxu0 0.0
    %914 = vmatpush1.msra.mxu0 0.0
    %915 = vmatprep.subr.mxu0 0.0
    %916 = vmatpush1.msra.mxu0 0.0
    %917 = vmatprep.subr.mxu0 0.0
    %918 = vmatpush1.msra.mxu0 0.0
    %919 = vmatprep.subr.mxu0 0.0
    %920 = vmatpush1.msra.mxu0 0.0
    %921 = vmatprep.subr.mxu0 0.0
    %922 = vmatpush1.msra.mxu0 0.0
    %923 = vmatprep.subr.mxu0 0.0
    %924 = vmatpush1.msra.mxu0 0.0
    %925 = vmatprep.subr.mxu0 0.0
    %926 = vmatpush1.msra.mxu0 0.0
    %927 = vmatprep.subr.mxu0 0.0
    %928 = vmatpush1.msra.mxu0 0.0
    %929 = vmatprep.subr.mxu0 0.0
    %930 = vmatpush1.msra.mxu0 0.0
    %931 = vmatprep.subr.mxu0 0.0
    %932 = vmatpush1.msra.mxu0 0.0
    %933 = vmatprep.subr.mxu0 0.0
    %934 = vmatpush1.msra.mxu0 0.0
    %935 = vmatprep.subr.mxu0 0.0
    %936 = vmatpush1.msra.mxu0 0.0
    %937 = vmatprep.subr.mxu0 0.0
    %938 = vmatpush1.msra.mxu0 0.0
    %939 = vmatprep.subr.mxu0 0.0
    %940 = vmatpush1.msra.mxu0 0.0
    %941 = vmatprep.subr.mxu0 0.0
    %942 = vmatpush1.msra.mxu0 0.0
    %943 = vmatprep.subr.mxu0 0.0
    %944 = vmatpush1.msra.mxu0 0.0
    %945 = vmatprep.subr.mxu0 0.0
    %946 = vmatpush1.msra.mxu0 0.0
    %947 = vmatprep.subr.mxu0 0.0
    %948 = vmatpush1.msra.mxu0 0.0
    %949 = vmatprep.subr.mxu0 0.0
    %950 = vmatpush1.msra.mxu0 0.0
    %951 = vmatprep.subr.mxu0 0.0
    %952 = vmatpush1.msra.mxu0 0.0
    %953 = vmatprep.subr.mxu0 0.0
    %954 = vmatpush1.msra.mxu0 0.0
    %955 = vmatprep.subr.mxu0 0.0
    %956 = vmatpush1.msra.mxu0 0.0
    %957 = vmatprep.subr.mxu0 0.0
    %958 = vmatpush1.msra.mxu0 0.0
    %959 = vmatprep.subr.mxu0 0.0
    %960 = vmatpush1.msra.mxu0 0.0
    %961 = vmatprep.subr.mxu0 0.0
    %962 = vmatpush1.msra.mxu0 0.0
    %963 = vmatprep.mubr.f32.mxu0 0.0
    %964 = vmatmul.mubr.f32.gmra.mrb[0].mxu0 %v897
    %v965 = vpop.f32.mrb[0].mxu0
    %v966 = vadd.f32 %v188, %v965
    %v967 = vpop.f32.mrb[0].mxu0
    %968 = vdwg.mxu0
    %v969 = vadd.f32 %v182, %v966
    %v970 = vxor.u32 %v969, 2147483648
    %v971 = vmul.f32 %v970, 1.442695
    %v972 = vpow.pop %v971
    %v973 = vadd.f32 %v972, 1.0
    %v974 = vrcp.pop %v973
    %v975 = vmul.f32 1.0, %v974
    %977 = vrot.lane.b32.xlu0 %v966, 64
    %v978 = vpop.permute.xlu0 %977
    %v980 = vmul.f32 %v975, %v978
    %982 = vrot.lane.b32.xlu0 %v980, 64
    %v983 = vpop.permute.xlu0 %982
    %v985 = vadd.f32 %v182, %v983
    %v986 = vtanh.pop %v985
    %v987 = vsub.f32 1.0, %v975
    %989 = vrot.lane.b32.xlu0 %v986, 96
    %v990 = vpop.permute.xlu0 %989
    %v992 = vmul.f32 %v987, %v990
    %v993 = vmul.f32 %v975, %v893
    %v994 = vadd.f32 %v992, %v993
    %s995 = scalar_lea.vmem [#allocation2], 32
    %v996 = vld [vmem:[%s995] sm:$0xff]
    %v997 = vld [vmem:[%s995 + $0x8] sm:$0xff]
    %v998 = vld [vmem:[%s995 + $0x10] sm:$0xff]
    %v999 = vld [vmem:[%s995 + $0x18] sm:$0xff]
    %s1000 = scalar_lea.vmem %s3, 2
    %v1001 = vld [vmem:[%s1000] sm:$0x3]
    %s1002 = scalar_lea.vmem %s1, 32
    %v1003 = vld [vmem:[%s1002] sm:$0xff]
    %v1004 = vld [vmem:[%s1002 + $0x8] sm:$0xff]
    %v1005 = vld [vmem:[%s1002 + $0x10] sm:$0xff]
    %v1006 = vld [vmem:[%s1002 + $0x18] sm:$0xff]
    %v1007 = vlaneseq
    %v1008 = vshrl.u32 %v1007, 7
    %v1009 = vsub.s32 0, %v1008
    %v1010 = vrot.slane %v1001, %v1009
    %1011 = vmatprep.subr.mxu0 0.0
    %1012 = vmatpush1.msra.mxu0 %v1003
    %1013 = vmatprep.subr.mxu0 0.0
    %1014 = vmatpush1.msra.mxu0 %v1004
    %1015 = vmatprep.subr.mxu0 0.0
    %1016 = vmatpush1.msra.mxu0 %v1005
    %1017 = vmatprep.subr.mxu0 0.0
    %1018 = vmatpush1.msra.mxu0 %v1006
    %1019 = vmatprep.subr.mxu0 0.0
    %1020 = vmatpush1.msra.mxu0 0.0
    %1021 = vmatprep.subr.mxu0 0.0
    %1022 = vmatpush1.msra.mxu0 0.0
    %1023 = vmatprep.subr.mxu0 0.0
    %1024 = vmatpush1.msra.mxu0 0.0
    %1025 = vmatprep.subr.mxu0 0.0
    %1026 = vmatpush1.msra.mxu0 0.0
    %1027 = vmatprep.subr.mxu0 0.0
    %1028 = vmatpush1.msra.mxu0 0.0
    %1029 = vmatprep.subr.mxu0 0.0
    %1030 = vmatpush1.msra.mxu0 0.0
    %1031 = vmatprep.subr.mxu0 0.0
    %1032 = vmatpush1.msra.mxu0 0.0
    %1033 = vmatprep.subr.mxu0 0.0
    %1034 = vmatpush1.msra.mxu0 0.0
    %1035 = vmatprep.subr.mxu0 0.0
    %1036 = vmatpush1.msra.mxu0 0.0
    %1037 = vmatprep.subr.mxu0 0.0
    %1038 = vmatpush1.msra.mxu0 0.0
    %1039 = vmatprep.subr.mxu0 0.0
    %1040 = vmatpush1.msra.mxu0 0.0
    %1041 = vmatprep.subr.mxu0 0.0
    %1042 = vmatpush1.msra.mxu0 0.0
    %1043 = vmatprep.subr.mxu0 0.0
    %1044 = vmatpush1.msra.mxu0 0.0
    %1045 = vmatprep.subr.mxu0 0.0
    %1046 = vmatpush1.msra.mxu0 0.0
    %1047 = vmatprep.subr.mxu0 0.0
    %1048 = vmatpush1.msra.mxu0 0.0
    %1049 = vmatprep.subr.mxu0 0.0
    %1050 = vmatpush1.msra.mxu0 0.0
    %1051 = vmatprep.subr.mxu0 0.0
    %1052 = vmatpush1.msra.mxu0 0.0
    %1053 = vmatprep.subr.mxu0 0.0
    %1054 = vmatpush1.msra.mxu0 0.0
    %1055 = vmatprep.subr.mxu0 0.0
    %1056 = vmatpush1.msra.mxu0 0.0
    %1057 = vmatprep.subr.mxu0 0.0
    %1058 = vmatpush1.msra.mxu0 0.0
    %1059 = vmatprep.subr.mxu0 0.0
    %1060 = vmatpush1.msra.mxu0 0.0
    %1061 = vmatprep.subr.mxu0 0.0
    %1062 = vmatpush1.msra.mxu0 0.0
    %1063 = vmatprep.subr.mxu0 0.0
    %1064 = vmatpush1.msra.mxu0 0.0
    %1065 = vmatprep.subr.mxu0 0.0
    %1066 = vmatpush1.msra.mxu0 0.0
    %1067 = vmatprep.subr.mxu0 0.0
    %1068 = vmatpush1.msra.mxu0 0.0
    %1069 = vmatprep.subr.mxu0 0.0
    %1070 = vmatpush1.msra.mxu0 0.0
    %1071 = vmatprep.subr.mxu0 0.0
    %1072 = vmatpush1.msra.mxu0 0.0
    %1073 = vmatprep.subr.mxu0 0.0
    %1074 = vmatpush1.msra.mxu0 0.0
    %1075 = vmatprep.mubr.f32.mxu0 0.0
    %1076 = vmatmul.mubr.f32.gmra.mrb[0].mxu0 %v291
    %v1077 = vpop.f32.mrb[0].mxu0
    %v1078 = vadd.f32 %v1010, %v1077
    %v1079 = vpop.f32.mrb[0].mxu0
    %1080 = vdwg.mxu0
    %v1081 = vlaneseq
    %v1082 = vshrl.u32 %v1081, 7
    %v1083 = vsub.s32 1, %v1082
    %v1084 = vrot.slane %v1001, %v1083
    %1085 = vmatprep.subr.mxu0 0.0
    %1086 = vmatpush1.msra.mxu0 %v996
    %1087 = vmatprep.subr.mxu0 0.0
    %1088 = vmatpush1.msra.mxu0 %v997
    %1089 = vmatprep.subr.mxu0 0.0
    %1090 = vmatpush1.msra.mxu0 %v998
    %1091 = vmatprep.subr.mxu0 0.0
    %1092 = vmatpush1.msra.mxu0 %v999
    %1093 = vmatprep.subr.mxu0 0.0
    %1094 = vmatpush1.msra.mxu0 0.0
    %1095 = vmatprep.subr.mxu0 0.0
    %1096 = vmatpush1.msra.mxu0 0.0
    %1097 = vmatprep.subr.mxu0 0.0
    %1098 = vmatpush1.msra.mxu0 0.0
    %1099 = vmatprep.subr.mxu0 0.0
    %1100 = vmatpush1.msra.mxu0 0.0
    %1101 = vmatprep.subr.mxu0 0.0
    %1102 = vmatpush1.msra.mxu0 0.0
    %1103 = vmatprep.subr.mxu0 0.0
    %1104 = vmatpush1.msra.mxu0 0.0
    %1105 = vmatprep.subr.mxu0 0.0
    %1106 = vmatpush1.msra.mxu0 0.0
    %1107 = vmatprep.subr.mxu0 0.0
    %1108 = vmatpush1.msra.mxu0 0.0
    %1109 = vmatprep.subr.mxu0 0.0
    %1110 = vmatpush1.msra.mxu0 0.0
    %1111 = vmatprep.subr.mxu0 0.0
    %1112 = vmatpush1.msra.mxu0 0.0
    %1113 = vmatprep.subr.mxu0 0.0
    %1114 = vmatpush1.msra.mxu0 0.0
    %1115 = vmatprep.subr.mxu0 0.0
    %1116 = vmatpush1.msra.mxu0 0.0
    %1117 = vmatprep.subr.mxu0 0.0
    %1118 = vmatpush1.msra.mxu0 0.0
    %1119 = vmatprep.subr.mxu0 0.0
    %1120 = vmatpush1.msra.mxu0 0.0
    %1121 = vmatprep.subr.mxu0 0.0
    %1122 = vmatpush1.msra.mxu0 0.0
    %1123 = vmatprep.subr.mxu0 0.0
    %1124 = vmatpush1.msra.mxu0 0.0
    %1125 = vmatprep.subr.mxu0 0.0
    %1126 = vmatpush1.msra.mxu0 0.0
    %1127 = vmatprep.subr.mxu0 0.0
    %1128 = vmatpush1.msra.mxu0 0.0
    %1129 = vmatprep.subr.mxu0 0.0
    %1130 = vmatpush1.msra.mxu0 0.0
    %1131 = vmatprep.subr.mxu0 0.0
    %1132 = vmatpush1.msra.mxu0 0.0
    %1133 = vmatprep.subr.mxu0 0.0
    %1134 = vmatpush1.msra.mxu0 0.0
    %1135 = vmatprep.subr.mxu0 0.0
    %1136 = vmatpush1.msra.mxu0 0.0
    %1137 = vmatprep.subr.mxu0 0.0
    %1138 = vmatpush1.msra.mxu0 0.0
    %1139 = vmatprep.subr.mxu0 0.0
    %1140 = vmatpush1.msra.mxu0 0.0
    %1141 = vmatprep.subr.mxu0 0.0
    %1142 = vmatpush1.msra.mxu0 0.0
    %1143 = vmatprep.subr.mxu0 0.0
    %1144 = vmatpush1.msra.mxu0 0.0
    %1145 = vmatprep.subr.mxu0 0.0
    %1146 = vmatpush1.msra.mxu0 0.0
    %1147 = vmatprep.subr.mxu0 0.0
    %1148 = vmatpush1.msra.mxu0 0.0
    %1149 = vmatprep.mubr.f32.mxu0 0.0
    %1150 = vmatmul.mubr.f32.gmra.mrb[0].mxu0 %v190
    %v1151 = vpop.f32.mrb[0].mxu0
    %v1152 = vadd.f32 %v1084, %v1151
    %v1153 = vpop.f32.mrb[0].mxu0
    %1154 = vdwg.mxu0
    %v1155 = vadd.f32 %v1078, %v1152
    %v1156 = vxor.u32 %v1155, 2147483648
    %v1157 = vmul.f32 %v1156, 1.442695
    %v1158 = vpow.pop %v1157
    %v1159 = vadd.f32 %v1158, 1.0
    %v1160 = vrcp.pop %v1159
    %v1161 = vmul.f32 1.0, %v1160
    %1163 = vrot.lane.b32.xlu0 %v1152, 64
    %v1164 = vpop.permute.xlu0 %1163
    %v1166 = vmul.f32 %v1161, %v1164
    %1168 = vrot.lane.b32.xlu0 %v1166, 64
    %v1169 = vpop.permute.xlu0 %1168
    %v1171 = vadd.f32 %v1078, %v1169
    %v1172 = vtanh.pop %v1171
    %v1173 = vsub.f32 1.0, %v1161
    %1175 = vrot.lane.b32.xlu0 %v1172, 96
    %v1176 = vpop.permute.xlu0 %1175
    %v1178 = vmul.f32 %v1173, %v1176
    %v1179 = vmul.f32 %v1161, 0.0
    %v1180 = vadd.f32 %v1178, %v1179
    %1181 = vmatprep.subr.mxu0 0.0
    %1182 = vmatpush1.msra.mxu0 %v1003
    %1183 = vmatprep.subr.mxu0 0.0
    %1184 = vmatpush1.msra.mxu0 %v1004
    %1185 = vmatprep.subr.mxu0 0.0
    %1186 = vmatpush1.msra.mxu0 %v1005
    %1187 = vmatprep.subr.mxu0 0.0
    %1188 = vmatpush1.msra.mxu0 %v1006
    %1189 = vmatprep.subr.mxu0 0.0
    %1190 = vmatpush1.msra.mxu0 0.0
    %1191 = vmatprep.subr.mxu0 0.0
    %1192 = vmatpush1.msra.mxu0 0.0
    %1193 = vmatprep.subr.mxu0 0.0
    %1194 = vmatpush1.msra.mxu0 0.0
    %1195 = vmatprep.subr.mxu0 0.0
    %1196 = vmatpush1.msra.mxu0 0.0
    %1197 = vmatprep.subr.mxu0 0.0
    %1198 = vmatpush1.msra.mxu0 0.0
    %1199 = vmatprep.subr.mxu0 0.0
    %1200 = vmatpush1.msra.mxu0 0.0
    %1201 = vmatprep.subr.mxu0 0.0
    %1202 = vmatpush1.msra.mxu0 0.0
    %1203 = vmatprep.subr.mxu0 0.0
    %1204 = vmatpush1.msra.mxu0 0.0
    %1205 = vmatprep.subr.mxu0 0.0
    %1206 = vmatpush1.msra.mxu0 0.0
    %1207 = vmatprep.subr.mxu0 0.0
    %1208 = vmatpush1.msra.mxu0 0.0
    %1209 = vmatprep.subr.mxu0 0.0
    %1210 = vmatpush1.msra.mxu0 0.0
    %1211 = vmatprep.subr.mxu0 0.0
    %1212 = vmatpush1.msra.mxu0 0.0
    %1213 = vmatprep.subr.mxu0 0.0
    %1214 = vmatpush1.msra.mxu0 0.0
    %1215 = vmatprep.subr.mxu0 0.0
    %1216 = vmatpush1.msra.mxu0 0.0
    %1217 = vmatprep.subr.mxu0 0.0
    %1218 = vmatpush1.msra.mxu0 0.0
    %1219 = vmatprep.subr.mxu0 0.0
    %1220 = vmatpush1.msra.mxu0 0.0
    %1221 = vmatprep.subr.mxu0 0.0
    %1222 = vmatpush1.msra.mxu0 0.0
    %1223 = vmatprep.subr.mxu0 0.0
    %1224 = vmatpush1.msra.mxu0 0.0
    %1225 = vmatprep.subr.mxu0 0.0
    %1226 = vmatpush1.msra.mxu0 0.0
    %1227 = vmatprep.subr.mxu0 0.0
    %1228 = vmatpush1.msra.mxu0 0.0
    %1229 = vmatprep.subr.mxu0 0.0
    %1230 = vmatpush1.msra.mxu0 0.0
    %1231 = vmatprep.subr.mxu0 0.0
    %1232 = vmatpush1.msra.mxu0 0.0
    %1233 = vmatprep.subr.mxu0 0.0
    %1234 = vmatpush1.msra.mxu0 0.0
    %1235 = vmatprep.subr.mxu0 0.0
    %1236 = vmatpush1.msra.mxu0 0.0
    %1237 = vmatprep.subr.mxu0 0.0
    %1238 = vmatpush1.msra.mxu0 0.0
    %1239 = vmatprep.subr.mxu0 0.0
    %1240 = vmatpush1.msra.mxu0 0.0
    %1241 = vmatprep.subr.mxu0 0.0
    %1242 = vmatpush1.msra.mxu0 0.0
    %1243 = vmatprep.subr.mxu0 0.0
    %1244 = vmatpush1.msra.mxu0 0.0
    %1245 = vmatprep.mubr.f32.mxu0 0.0
    %1246 = vmatmul.mubr.f32.gmra.mrb[0].mxu0 %v392
    %v1247 = vpop.f32.mrb[0].mxu0
    %v1248 = vadd.f32 %v1010, %v1247
    %v1249 = vpop.f32.mrb[0].mxu0
    %1250 = vdwg.mxu0
    %1252 = vrot.lane.b32.xlu0 %v1180, 96
    %v1253 = vpop.permute.xlu0 %1252
    %v1254 = vsel %vm55, %v1253, 0
    %1256 = vmatprep.subr.mxu0 0.0
    %1257 = vmatpush1.msra.mxu0 %v996
    %1258 = vmatprep.subr.mxu0 0.0
    %1259 = vmatpush1.msra.mxu0 %v997
    %1260 = vmatprep.subr.mxu0 0.0
    %1261 = vmatpush1.msra.mxu0 %v998
    %1262 = vmatprep.subr.mxu0 0.0
    %1263 = vmatpush1.msra.mxu0 %v999
    %1264 = vmatprep.subr.mxu0 0.0
    %1265 = vmatpush1.msra.mxu0 0.0
    %1266 = vmatprep.subr.mxu0 0.0
    %1267 = vmatpush1.msra.mxu0 0.0
    %1268 = vmatprep.subr.mxu0 0.0
    %1269 = vmatpush1.msra.mxu0 0.0
    %1270 = vmatprep.subr.mxu0 0.0
    %1271 = vmatpush1.msra.mxu0 0.0
    %1272 = vmatprep.subr.mxu0 0.0
    %1273 = vmatpush1.msra.mxu0 0.0
    %1274 = vmatprep.subr.mxu0 0.0
    %1275 = vmatpush1.msra.mxu0 0.0
    %1276 = vmatprep.subr.mxu0 0.0
    %1277 = vmatpush1.msra.mxu0 0.0
    %1278 = vmatprep.subr.mxu0 0.0
    %1279 = vmatpush1.msra.mxu0 0.0
    %1280 = vmatprep.subr.mxu0 0.0
    %1281 = vmatpush1.msra.mxu0 0.0
    %1282 = vmatprep.subr.mxu0 0.0
    %1283 = vmatpush1.msra.mxu0 0.0
    %1284 = vmatprep.subr.mxu0 0.0
    %1285 = vmatpush1.msra.mxu0 0.0
    %1286 = vmatprep.subr.mxu0 0.0
    %1287 = vmatpush1.msra.mxu0 0.0
    %1288 = vmatprep.subr.mxu0 0.0
    %1289 = vmatpush1.msra.mxu0 0.0
    %1290 = vmatprep.subr.mxu0 0.0
    %1291 = vmatpush1.msra.mxu0 0.0
    %1292 = vmatprep.subr.mxu0 0.0
    %1293 = vmatpush1.msra.mxu0 0.0
    %1294 = vmatprep.subr.mxu0 0.0
    %1295 = vmatpush1.msra.mxu0 0.0
    %1296 = vmatprep.subr.mxu0 0.0
    %1297 = vmatpush1.msra.mxu0 0.0
    %1298 = vmatprep.subr.mxu0 0.0
    %1299 = vmatpush1.msra.mxu0 0.0
    %1300 = vmatprep.subr.mxu0 0.0
    %1301 = vmatpush1.msra.mxu0 0.0
    %1302 = vmatprep.subr.mxu0 0.0
    %1303 = vmatpush1.msra.mxu0 0.0
    %1304 = vmatprep.subr.mxu0 0.0
    %1305 = vmatpush1.msra.mxu0 0.0
    %1306 = vmatprep.subr.mxu0 0.0
    %1307 = vmatpush1.msra.mxu0 0.0
    %1308 = vmatprep.subr.mxu0 0.0
    %1309 = vmatpush1.msra.mxu0 0.0
    %1310 = vmatprep.subr.mxu0 0.0
    %1311 = vmatpush1.msra.mxu0 0.0
    %1312 = vmatprep.subr.mxu0 0.0
    %1313 = vmatpush1.msra.mxu0 0.0
    %1314 = vmatprep.subr.mxu0 0.0
    %1315 = vmatpush1.msra.mxu0 0.0
    %1316 = vmatprep.subr.mxu0 0.0
    %1317 = vmatpush1.msra.mxu0 0.0
    %1318 = vmatprep.subr.mxu0 0.0
    %1319 = vmatpush1.msra.mxu0 0.0
    %1320 = vmatprep.mubr.f32.mxu0 0.0
    %1321 = vmatmul.mubr.f32.gmra.mrb[0].mxu0 %v1254
    %v1322 = vpop.f32.mrb[0].mxu0
    %v1323 = vadd.f32 %v1084, %v1322
    %v1324 = vpop.f32.mrb[0].mxu0
    %1325 = vdwg.mxu0
    %v1326 = vadd.f32 %v1248, %v1323
    %v1327 = vxor.u32 %v1326, 2147483648
    %v1328 = vmul.f32 %v1327, 1.442695
    %v1329 = vpow.pop %v1328
    %v1330 = vadd.f32 %v1329, 1.0
    %v1331 = vrcp.pop %v1330
    %v1332 = vmul.f32 1.0, %v1331
    %1334 = vrot.lane.b32.xlu0 %v1323, 64
    %v1335 = vpop.permute.xlu0 %1334
    %v1337 = vmul.f32 %v1332, %v1335
    %1339 = vrot.lane.b32.xlu0 %v1337, 64
    %v1340 = vpop.permute.xlu0 %1339
    %v1342 = vadd.f32 %v1248, %v1340
    %v1343 = vtanh.pop %v1342
    %v1344 = vsub.f32 1.0, %v1332
    %1346 = vrot.lane.b32.xlu0 %v1343, 96
    %v1347 = vpop.permute.xlu0 %1346
    %v1349 = vmul.f32 %v1344, %v1347
    %v1350 = vmul.f32 %v1332, %v1180
    %v1351 = vadd.f32 %v1349, %v1350
    %1352 = vmatprep.subr.mxu0 0.0
    %1353 = vmatpush1.msra.mxu0 %v1003
    %1354 = vmatprep.subr.mxu0 0.0
    %1355 = vmatpush1.msra.mxu0 %v1004
    %1356 = vmatprep.subr.mxu0 0.0
    %1357 = vmatpush1.msra.mxu0 %v1005
    %1358 = vmatprep.subr.mxu0 0.0
    %1359 = vmatpush1.msra.mxu0 %v1006
    %1360 = vmatprep.subr.mxu0 0.0
    %1361 = vmatpush1.msra.mxu0 0.0
    %1362 = vmatprep.subr.mxu0 0.0
    %1363 = vmatpush1.msra.mxu0 0.0
    %1364 = vmatprep.subr.mxu0 0.0
    %1365 = vmatpush1.msra.mxu0 0.0
    %1366 = vmatprep.subr.mxu0 0.0
    %1367 = vmatpush1.msra.mxu0 0.0
    %1368 = vmatprep.subr.mxu0 0.0
    %1369 = vmatpush1.msra.mxu0 0.0
    %1370 = vmatprep.subr.mxu0 0.0
    %1371 = vmatpush1.msra.mxu0 0.0
    %1372 = vmatprep.subr.mxu0 0.0
    %1373 = vmatpush1.msra.mxu0 0.0
    %1374 = vmatprep.subr.mxu0 0.0
    %1375 = vmatpush1.msra.mxu0 0.0
    %1376 = vmatprep.subr.mxu0 0.0
    %1377 = vmatpush1.msra.mxu0 0.0
    %1378 = vmatprep.subr.mxu0 0.0
    %1379 = vmatpush1.msra.mxu0 0.0
    %1380 = vmatprep.subr.mxu0 0.0
    %1381 = vmatpush1.msra.mxu0 0.0
    %1382 = vmatprep.subr.mxu0 0.0
    %1383 = vmatpush1.msra.mxu0 0.0
    %1384 = vmatprep.subr.mxu0 0.0
    %1385 = vmatpush1.msra.mxu0 0.0
    %1386 = vmatprep.subr.mxu0 0.0
    %1387 = vmatpush1.msra.mxu0 0.0
    %1388 = vmatprep.subr.mxu0 0.0
    %1389 = vmatpush1.msra.mxu0 0.0
    %1390 = vmatprep.subr.mxu0 0.0
    %1391 = vmatpush1.msra.mxu0 0.0
    %1392 = vmatprep.subr.mxu0 0.0
    %1393 = vmatpush1.msra.mxu0 0.0
    %1394 = vmatprep.subr.mxu0 0.0
    %1395 = vmatpush1.msra.mxu0 0.0
    %1396 = vmatprep.subr.mxu0 0.0
    %1397 = vmatpush1.msra.mxu0 0.0
    %1398 = vmatprep.subr.mxu0 0.0
    %1399 = vmatpush1.msra.mxu0 0.0
    %1400 = vmatprep.subr.mxu0 0.0
    %1401 = vmatpush1.msra.mxu0 0.0
    %1402 = vmatprep.subr.mxu0 0.0
    %1403 = vmatpush1.msra.mxu0 0.0
    %1404 = vmatprep.subr.mxu0 0.0
    %1405 = vmatpush1.msra.mxu0 0.0
    %1406 = vmatprep.subr.mxu0 0.0
    %1407 = vmatpush1.msra.mxu0 0.0
    %1408 = vmatprep.subr.mxu0 0.0
    %1409 = vmatpush1.msra.mxu0 0.0
    %1410 = vmatprep.subr.mxu0 0.0
    %1411 = vmatpush1.msra.mxu0 0.0
    %1412 = vmatprep.subr.mxu0 0.0
    %1413 = vmatpush1.msra.mxu0 0.0
    %1414 = vmatprep.subr.mxu0 0.0
    %1415 = vmatpush1.msra.mxu0 0.0
    %1416 = vmatprep.mubr.f32.mxu0 0.0
    %1417 = vmatmul.mubr.f32.gmra.mrb[0].mxu0 %v493
    %v1418 = vpop.f32.mrb[0].mxu0
    %v1419 = vadd.f32 %v1010, %v1418
    %v1420 = vpop.f32.mrb[0].mxu0
    %1421 = vdwg.mxu0
    %1423 = vrot.lane.b32.xlu0 %v1351, 96
    %v1424 = vpop.permute.xlu0 %1423
    %v1425 = vsel %vm55, %v1424, 0
    %1427 = vmatprep.subr.mxu0 0.0
    %1428 = vmatpush1.msra.mxu0 %v996
    %1429 = vmatprep.subr.mxu0 0.0
    %1430 = vmatpush1.msra.mxu0 %v997
    %1431 = vmatprep.subr.mxu0 0.0
    %1432 = vmatpush1.msra.mxu0 %v998
    %1433 = vmatprep.subr.mxu0 0.0
    %1434 = vmatpush1.msra.mxu0 %v999
    %1435 = vmatprep.subr.mxu0 0.0
    %1436 = vmatpush1.msra.mxu0 0.0
    %1437 = vmatprep.subr.mxu0 0.0
    %1438 = vmatpush1.msra.mxu0 0.0
    %1439 = vmatprep.subr.mxu0 0.0
    %1440 = vmatpush1.msra.mxu0 0.0
    %1441 = vmatprep.subr.mxu0 0.0
    %1442 = vmatpush1.msra.mxu0 0.0
    %1443 = vmatprep.subr.mxu0 0.0
    %1444 = vmatpush1.msra.mxu0 0.0
    %1445 = vmatprep.subr.mxu0 0.0
    %1446 = vmatpush1.msra.mxu0 0.0
    %1447 = vmatprep.subr.mxu0 0.0
    %1448 = vmatpush1.msra.mxu0 0.0
    %1449 = vmatprep.subr.mxu0 0.0
    %1450 = vmatpush1.msra.mxu0 0.0
    %1451 = vmatprep.subr.mxu0 0.0
    %1452 = vmatpush1.msra.mxu0 0.0
    %1453 = vmatprep.subr.mxu0 0.0
    %1454 = vmatpush1.msra.mxu0 0.0
    %1455 = vmatprep.subr.mxu0 0.0
    %1456 = vmatpush1.msra.mxu0 0.0
    %1457 = vmatprep.subr.mxu0 0.0
    %1458 = vmatpush1.msra.mxu0 0.0
    %1459 = vmatprep.subr.mxu0 0.0
    %1460 = vmatpush1.msra.mxu0 0.0
    %1461 = vmatprep.subr.mxu0 0.0
    %1462 = vmatpush1.msra.mxu0 0.0
    %1463 = vmatprep.subr.mxu0 0.0
    %1464 = vmatpush1.msra.mxu0 0.0
    %1465 = vmatprep.subr.mxu0 0.0
    %1466 = vmatpush1.msra.mxu0 0.0
    %1467 = vmatprep.subr.mxu0 0.0
    %1468 = vmatpush1.msra.mxu0 0.0
    %1469 = vmatprep.subr.mxu0 0.0
    %1470 = vmatpush1.msra.mxu0 0.0
    %1471 = vmatprep.subr.mxu0 0.0
    %1472 = vmatpush1.msra.mxu0 0.0
    %1473 = vmatprep.subr.mxu0 0.0
    %1474 = vmatpush1.msra.mxu0 0.0
    %1475 = vmatprep.subr.mxu0 0.0
    %1476 = vmatpush1.msra.mxu0 0.0
    %1477 = vmatprep.subr.mxu0 0.0
    %1478 = vmatpush1.msra.mxu0 0.0
    %1479 = vmatprep.subr.mxu0 0.0
    %1480 = vmatpush1.msra.mxu0 0.0
    %1481 = vmatprep.subr.mxu0 0.0
    %1482 = vmatpush1.msra.mxu0 0.0
    %1483 = vmatprep.subr.mxu0 0.0
    %1484 = vmatpush1.msra.mxu0 0.0
    %1485 = vmatprep.subr.mxu0 0.0
    %1486 = vmatpush1.msra.mxu0 0.0
    %1487 = vmatprep.subr.mxu0 0.0
    %1488 = vmatpush1.msra.mxu0 0.0
    %1489 = vmatprep.subr.mxu0 0.0
    %1490 = vmatpush1.msra.mxu0 0.0
    %1491 = vmatprep.mubr.f32.mxu0 0.0
    %1492 = vmatmul.mubr.f32.gmra.mrb[0].mxu0 %v1425
    %v1493 = vpop.f32.mrb[0].mxu0
    %v1494 = vadd.f32 %v1084, %v1493
    %v1495 = vpop.f32.mrb[0].mxu0
    %1496 = vdwg.mxu0
    %v1497 = vadd.f32 %v1419, %v1494
    %v1498 = vxor.u32 %v1497, 2147483648
    %v1499 = vmul.f32 %v1498, 1.442695
    %v1500 = vpow.pop %v1499
    %v1501 = vadd.f32 %v1500, 1.0
    %v1502 = vrcp.pop %v1501
    %v1503 = vmul.f32 1.0, %v1502
    %1505 = vrot.lane.b32.xlu0 %v1494, 64
    %v1506 = vpop.permute.xlu0 %1505
    %v1508 = vmul.f32 %v1503, %v1506
    %1510 = vrot.lane.b32.xlu0 %v1508, 64
    %v1511 = vpop.permute.xlu0 %1510
    %v1513 = vadd.f32 %v1419, %v1511
    %v1514 = vtanh.pop %v1513
    %v1515 = vsub.f32 1.0, %v1503
    %1517 = vrot.lane.b32.xlu0 %v1514, 96
    %v1518 = vpop.permute.xlu0 %1517
    %v1520 = vmul.f32 %v1515, %v1518
    %v1521 = vmul.f32 %v1503, %v1351
    %v1522 = vadd.f32 %v1520, %v1521
    %1523 = vmatprep.subr.mxu0 0.0
    %1524 = vmatpush1.msra.mxu0 %v1003
    %1525 = vmatprep.subr.mxu0 0.0
    %1526 = vmatpush1.msra.mxu0 %v1004
    %1527 = vmatprep.subr.mxu0 0.0
    %1528 = vmatpush1.msra.mxu0 %v1005
    %1529 = vmatprep.subr.mxu0 0.0
    %1530 = vmatpush1.msra.mxu0 %v1006
    %1531 = vmatprep.subr.mxu0 0.0
    %1532 = vmatpush1.msra.mxu0 0.0
    %1533 = vmatprep.subr.mxu0 0.0
    %1534 = vmatpush1.msra.mxu0 0.0
    %1535 = vmatprep.subr.mxu0 0.0
    %1536 = vmatpush1.msra.mxu0 0.0
    %1537 = vmatprep.subr.mxu0 0.0
    %1538 = vmatpush1.msra.mxu0 0.0
    %1539 = vmatprep.subr.mxu0 0.0
    %1540 = vmatpush1.msra.mxu0 0.0
    %1541 = vmatprep.subr.mxu0 0.0
    %1542 = vmatpush1.msra.mxu0 0.0
    %1543 = vmatprep.subr.mxu0 0.0
    %1544 = vmatpush1.msra.mxu0 0.0
    %1545 = vmatprep.subr.mxu0 0.0
    %1546 = vmatpush1.msra.mxu0 0.0
    %1547 = vmatprep.subr.mxu0 0.0
    %1548 = vmatpush1.msra.mxu0 0.0
    %1549 = vmatprep.subr.mxu0 0.0
    %1550 = vmatpush1.msra.mxu0 0.0
    %1551 = vmatprep.subr.mxu0 0.0
    %1552 = vmatpush1.msra.mxu0 0.0
    %1553 = vmatprep.subr.mxu0 0.0
    %1554 = vmatpush1.msra.mxu0 0.0
    %1555 = vmatprep.subr.mxu0 0.0
    %1556 = vmatpush1.msra.mxu0 0.0
    %1557 = vmatprep.subr.mxu0 0.0
    %1558 = vmatpush1.msra.mxu0 0.0
    %1559 = vmatprep.subr.mxu0 0.0
    %1560 = vmatpush1.msra.mxu0 0.0
    %1561 = vmatprep.subr.mxu0 0.0
    %1562 = vmatpush1.msra.mxu0 0.0
    %1563 = vmatprep.subr.mxu0 0.0
    %1564 = vmatpush1.msra.mxu0 0.0
    %1565 = vmatprep.subr.mxu0 0.0
    %1566 = vmatpush1.msra.mxu0 0.0
    %1567 = vmatprep.subr.mxu0 0.0
    %1568 = vmatpush1.msra.mxu0 0.0
    %1569 = vmatprep.subr.mxu0 0.0
    %1570 = vmatpush1.msra.mxu0 0.0
    %1571 = vmatprep.subr.mxu0 0.0
    %1572 = vmatpush1.msra.mxu0 0.0
    %1573 = vmatprep.subr.mxu0 0.0
    %1574 = vmatpush1.msra.mxu0 0.0
    %1575 = vmatprep.subr.mxu0 0.0
    %1576 = vmatpush1.msra.mxu0 0.0
    %1577 = vmatprep.subr.mxu0 0.0
    %1578 = vmatpush1.msra.mxu0 0.0
    %1579 = vmatprep.subr.mxu0 0.0
    %1580 = vmatpush1.msra.mxu0 0.0
    %1581 = vmatprep.subr.mxu0 0.0
    %1582 = vmatpush1.msra.mxu0 0.0
    %1583 = vmatprep.subr.mxu0 0.0
    %1584 = vmatpush1.msra.mxu0 0.0
    %1585 = vmatprep.subr.mxu0 0.0
    %1586 = vmatpush1.msra.mxu0 0.0
    %1587 = vmatprep.mubr.f32.mxu0 0.0
    %1588 = vmatmul.mubr.f32.gmra.mrb[0].mxu0 %v594
    %v1589 = vpop.f32.mrb[0].mxu0
    %v1590 = vadd.f32 %v1010, %v1589
    %v1591 = vpop.f32.mrb[0].mxu0
    %1592 = vdwg.mxu0
    %1594 = vrot.lane.b32.xlu0 %v1522, 96
    %v1595 = vpop.permute.xlu0 %1594
    %v1596 = vsel %vm55, %v1595, 0
    %1598 = vmatprep.subr.mxu0 0.0
    %1599 = vmatpush1.msra.mxu0 %v996
    %1600 = vmatprep.subr.mxu0 0.0
    %1601 = vmatpush1.msra.mxu0 %v997
    %1602 = vmatprep.subr.mxu0 0.0
    %1603 = vmatpush1.msra.mxu0 %v998
    %1604 = vmatprep.subr.mxu0 0.0
    %1605 = vmatpush1.msra.mxu0 %v999
    %1606 = vmatprep.subr.mxu0 0.0
    %1607 = vmatpush1.msra.mxu0 0.0
    %1608 = vmatprep.subr.mxu0 0.0
    %1609 = vmatpush1.msra.mxu0 0.0
    %1610 = vmatprep.subr.mxu0 0.0
    %1611 = vmatpush1.msra.mxu0 0.0
    %1612 = vmatprep.subr.mxu0 0.0
    %1613 = vmatpush1.msra.mxu0 0.0
    %1614 = vmatprep.subr.mxu0 0.0
    %1615 = vmatpush1.msra.mxu0 0.0
    %1616 = vmatprep.subr.mxu0 0.0
    %1617 = vmatpush1.msra.mxu0 0.0
    %1618 = vmatprep.subr.mxu0 0.0
    %1619 = vmatpush1.msra.mxu0 0.0
    %1620 = vmatprep.subr.mxu0 0.0
    %1621 = vmatpush1.msra.mxu0 0.0
    %1622 = vmatprep.subr.mxu0 0.0
    %1623 = vmatpush1.msra.mxu0 0.0
    %1624 = vmatprep.subr.mxu0 0.0
    %1625 = vmatpush1.msra.mxu0 0.0
    %1626 = vmatprep.subr.mxu0 0.0
    %1627 = vmatpush1.msra.mxu0 0.0
    %1628 = vmatprep.subr.mxu0 0.0
    %1629 = vmatpush1.msra.mxu0 0.0
    %1630 = vmatprep.subr.mxu0 0.0
    %1631 = vmatpush1.msra.mxu0 0.0
    %1632 = vmatprep.subr.mxu0 0.0
    %1633 = vmatpush1.msra.mxu0 0.0
    %1634 = vmatprep.subr.mxu0 0.0
    %1635 = vmatpush1.msra.mxu0 0.0
    %1636 = vmatprep.subr.mxu0 0.0
    %1637 = vmatpush1.msra.mxu0 0.0
    %1638 = vmatprep.subr.mxu0 0.0
    %1639 = vmatpush1.msra.mxu0 0.0
    %1640 = vmatprep.subr.mxu0 0.0
    %1641 = vmatpush1.msra.mxu0 0.0
    %1642 = vmatprep.subr.mxu0 0.0
    %1643 = vmatpush1.msra.mxu0 0.0
    %1644 = vmatprep.subr.mxu0 0.0
    %1645 = vmatpush1.msra.mxu0 0.0
    %1646 = vmatprep.subr.mxu0 0.0
    %1647 = vmatpush1.msra.mxu0 0.0
    %1648 = vmatprep.subr.mxu0 0.0
    %1649 = vmatpush1.msra.mxu0 0.0
    %1650 = vmatprep.subr.mxu0 0.0
    %1651 = vmatpush1.msra.mxu0 0.0
    %1652 = vmatprep.subr.mxu0 0.0
    %1653 = vmatpush1.msra.mxu0 0.0
    %1654 = vmatprep.subr.mxu0 0.0
    %1655 = vmatpush1.msra.mxu0 0.0
    %1656 = vmatprep.subr.mxu0 0.0
    %1657 = vmatpush1.msra.mxu0 0.0
    %1658 = vmatprep.subr.mxu0 0.0
    %1659 = vmatpush1.msra.mxu0 0.0
    %1660 = vmatprep.subr.mxu0 0.0
    %1661 = vmatpush1.msra.mxu0 0.0
    %1662 = vmatprep.mubr.f32.mxu0 0.0
    %1663 = vmatmul.mubr.f32.gmra.mrb[0].mxu0 %v1596
    %v1664 = vpop.f32.mrb[0].mxu0
    %v1665 = vadd.f32 %v1084, %v1664
    %v1666 = vpop.f32.mrb[0].mxu0
    %1667 = vdwg.mxu0
    %v1668 = vadd.f32 %v1590, %v1665
    %v1669 = vxor.u32 %v1668, 2147483648
    %v1670 = vmul.f32 %v1669, 1.442695
    %v1671 = vpow.pop %v1670
    %v1672 = vadd.f32 %v1671, 1.0
    %v1673 = vrcp.pop %v1672
    %v1674 = vmul.f32 1.0, %v1673
    %1676 = vrot.lane.b32.xlu0 %v1665, 64
    %v1677 = vpop.permute.xlu0 %1676
    %v1679 = vmul.f32 %v1674, %v1677
    %1681 = vrot.lane.b32.xlu0 %v1679, 64
    %v1682 = vpop.permute.xlu0 %1681
    %v1684 = vadd.f32 %v1590, %v1682
    %v1685 = vtanh.pop %v1684
    %v1686 = vsub.f32 1.0, %v1674
    %1688 = vrot.lane.b32.xlu0 %v1685, 96
    %v1689 = vpop.permute.xlu0 %1688
    %v1691 = vmul.f32 %v1686, %v1689
    %v1692 = vmul.f32 %v1674, %v1522
    %v1693 = vadd.f32 %v1691, %v1692
    %1694 = vmatprep.subr.mxu0 0.0
    %1695 = vmatpush1.msra.mxu0 %v1003
    %1696 = vmatprep.subr.mxu0 0.0
    %1697 = vmatpush1.msra.mxu0 %v1004
    %1698 = vmatprep.subr.mxu0 0.0
    %1699 = vmatpush1.msra.mxu0 %v1005
    %1700 = vmatprep.subr.mxu0 0.0
    %1701 = vmatpush1.msra.mxu0 %v1006
    %1702 = vmatprep.subr.mxu0 0.0
    %1703 = vmatpush1.msra.mxu0 0.0
    %1704 = vmatprep.subr.mxu0 0.0
    %1705 = vmatpush1.msra.mxu0 0.0
    %1706 = vmatprep.subr.mxu0 0.0
    %1707 = vmatpush1.msra.mxu0 0.0
    %1708 = vmatprep.subr.mxu0 0.0
    %1709 = vmatpush1.msra.mxu0 0.0
    %1710 = vmatprep.subr.mxu0 0.0
    %1711 = vmatpush1.msra.mxu0 0.0
    %1712 = vmatprep.subr.mxu0 0.0
    %1713 = vmatpush1.msra.mxu0 0.0
    %1714 = vmatprep.subr.mxu0 0.0
    %1715 = vmatpush1.msra.mxu0 0.0
    %1716 = vmatprep.subr.mxu0 0.0
    %1717 = vmatpush1.msra.mxu0 0.0
    %1718 = vmatprep.subr.mxu0 0.0
    %1719 = vmatpush1.msra.mxu0 0.0
    %1720 = vmatprep.subr.mxu0 0.0
    %1721 = vmatpush1.msra.mxu0 0.0
    %1722 = vmatprep.subr.mxu0 0.0
    %1723 = vmatpush1.msra.mxu0 0.0
    %1724 = vmatprep.subr.mxu0 0.0
    %1725 = vmatpush1.msra.mxu0 0.0
    %1726 = vmatprep.subr.mxu0 0.0
    %1727 = vmatpush1.msra.mxu0 0.0
    %1728 = vmatprep.subr.mxu0 0.0
    %1729 = vmatpush1.msra.mxu0 0.0
    %1730 = vmatprep.subr.mxu0 0.0
    %1731 = vmatpush1.msra.mxu0 0.0
    %1732 = vmatprep.subr.mxu0 0.0
    %1733 = vmatpush1.msra.mxu0 0.0
    %1734 = vmatprep.subr.mxu0 0.0
    %1735 = vmatpush1.msra.mxu0 0.0
    %1736 = vmatprep.subr.mxu0 0.0
    %1737 = vmatpush1.msra.mxu0 0.0
    %1738 = vmatprep.subr.mxu0 0.0
    %1739 = vmatpush1.msra.mxu0 0.0
    %1740 = vmatprep.subr.mxu0 0.0
    %1741 = vmatpush1.msra.mxu0 0.0
    %1742 = vmatprep.subr.mxu0 0.0
    %1743 = vmatpush1.msra.mxu0 0.0
    %1744 = vmatprep.subr.mxu0 0.0
    %1745 = vmatpush1.msra.mxu0 0.0
    %1746 = vmatprep.subr.mxu0 0.0
    %1747 = vmatpush1.msra.mxu0 0.0
    %1748 = vmatprep.subr.mxu0 0.0
    %1749 = vmatpush1.msra.mxu0 0.0
    %1750 = vmatprep.subr.mxu0 0.0
    %1751 = vmatpush1.msra.mxu0 0.0
    %1752 = vmatprep.subr.mxu0 0.0
    %1753 = vmatpush1.msra.mxu0 0.0
    %1754 = vmatprep.subr.mxu0 0.0
    %1755 = vmatpush1.msra.mxu0 0.0
    %1756 = vmatprep.subr.mxu0 0.0
    %1757 = vmatpush1.msra.mxu0 0.0
    %1758 = vmatprep.mubr.f32.mxu0 0.0
    %1759 = vmatmul.mubr.f32.gmra.mrb[0].mxu0 %v695
    %v1760 = vpop.f32.mrb[0].mxu0
    %v1761 = vadd.f32 %v1010, %v1760
    %v1762 = vpop.f32.mrb[0].mxu0
    %1763 = vdwg.mxu0
    %1765 = vrot.lane.b32.xlu0 %v1693, 96
    %v1766 = vpop.permute.xlu0 %1765
    %v1767 = vsel %vm55, %v1766, 0
    %1769 = vmatprep.subr.mxu0 0.0
    %1770 = vmatpush1.msra.mxu0 %v996
    %1771 = vmatprep.subr.mxu0 0.0
    %1772 = vmatpush1.msra.mxu0 %v997
    %1773 = vmatprep.subr.mxu0 0.0
    %1774 = vmatpush1.msra.mxu0 %v998
    %1775 = vmatprep.subr.mxu0 0.0
    %1776 = vmatpush1.msra.mxu0 %v999
    %1777 = vmatprep.subr.mxu0 0.0
    %1778 = vmatpush1.msra.mxu0 0.0
    %1779 = vmatprep.subr.mxu0 0.0
    %1780 = vmatpush1.msra.mxu0 0.0
    %1781 = vmatprep.subr.mxu0 0.0
    %1782 = vmatpush1.msra.mxu0 0.0
    %1783 = vmatprep.subr.mxu0 0.0
    %1784 = vmatpush1.msra.mxu0 0.0
    %1785 = vmatprep.subr.mxu0 0.0
    %1786 = vmatpush1.msra.mxu0 0.0
    %1787 = vmatprep.subr.mxu0 0.0
    %1788 = vmatpush1.msra.mxu0 0.0
    %1789 = vmatprep.subr.mxu0 0.0
    %1790 = vmatpush1.msra.mxu0 0.0
    %1791 = vmatprep.subr.mxu0 0.0
    %1792 = vmatpush1.msra.mxu0 0.0
    %1793 = vmatprep.subr.mxu0 0.0
    %1794 = vmatpush1.msra.mxu0 0.0
    %1795 = vmatprep.subr.mxu0 0.0
    %1796 = vmatpush1.msra.mxu0 0.0
    %1797 = vmatprep.subr.mxu0 0.0
    %1798 = vmatpush1.msra.mxu0 0.0
    %1799 = vmatprep.subr.mxu0 0.0
    %1800 = vmatpush1.msra.mxu0 0.0
    %1801 = vmatprep.subr.mxu0 0.0
    %1802 = vmatpush1.msra.mxu0 0.0
    %1803 = vmatprep.subr.mxu0 0.0
    %1804 = vmatpush1.msra.mxu0 0.0
    %1805 = vmatprep.subr.mxu0 0.0
    %1806 = vmatpush1.msra.mxu0 0.0
    %1807 = vmatprep.subr.mxu0 0.0
    %1808 = vmatpush1.msra.mxu0 0.0
    %1809 = vmatprep.subr.mxu0 0.0
    %1810 = vmatpush1.msra.mxu0 0.0
    %1811 = vmatprep.subr.mxu0 0.0
    %1812 = vmatpush1.msra.mxu0 0.0
    %1813 = vmatprep.subr.mxu0 0.0
    %1814 = vmatpush1.msra.mxu0 0.0
    %1815 = vmatprep.subr.mxu0 0.0
    %1816 = vmatpush1.msra.mxu0 0.0
    %1817 = vmatprep.subr.mxu0 0.0
    %1818 = vmatpush1.msra.mxu0 0.0
    %1819 = vmatprep.subr.mxu0 0.0
    %1820 = vmatpush1.msra.mxu0 0.0
    %1821 = vmatprep.subr.mxu0 0.0
    %1822 = vmatpush1.msra.mxu0 0.0
    %1823 = vmatprep.subr.mxu0 0.0
    %1824 = vmatpush1.msra.mxu0 0.0
    %1825 = vmatprep.subr.mxu0 0.0
    %1826 = vmatpush1.msra.mxu0 0.0
    %1827 = vmatprep.subr.mxu0 0.0
    %1828 = vmatpush1.msra.mxu0 0.0
    %1829 = vmatprep.subr.mxu0 0.0
    %1830 = vmatpush1.msra.mxu0 0.0
    %1831 = vmatprep.subr.mxu0 0.0
    %1832 = vmatpush1.msra.mxu0 0.0
    %1833 = vmatprep.mubr.f32.mxu0 0.0
    %1834 = vmatmul.mubr.f32.gmra.mrb[0].mxu0 %v1767
    %v1835 = vpop.f32.mrb[0].mxu0
    %v1836 = vadd.f32 %v1084, %v1835
    %v1837 = vpop.f32.mrb[0].mxu0
    %1838 = vdwg.mxu0
    %v1839 = vadd.f32 %v1761, %v1836
    %v1840 = vxor.u32 %v1839, 2147483648
    %v1841 = vmul.f32 %v1840, 1.442695
    %v1842 = vpow.pop %v1841
    %v1843 = vadd.f32 %v1842, 1.0
    %v1844 = vrcp.pop %v1843
    %v1845 = vmul.f32 1.0, %v1844
    %1847 = vrot.lane.b32.xlu0 %v1836, 64
    %v1848 = vpop.permute.xlu0 %1847
    %v1850 = vmul.f32 %v1845, %v1848
    %1852 = vrot.lane.b32.xlu0 %v1850, 64
    %v1853 = vpop.permute.xlu0 %1852
    %v1855 = vadd.f32 %v1761, %v1853
    %v1856 = vtanh.pop %v1855
    %v1857 = vsub.f32 1.0, %v1845
    %1859 = vrot.lane.b32.xlu0 %v1856, 96
    %v1860 = vpop.permute.xlu0 %1859
    %v1862 = vmul.f32 %v1857, %v1860
    %v1863 = vmul.f32 %v1845, %v1693
    %v1864 = vadd.f32 %v1862, %v1863
    %1865 = vmatprep.subr.mxu0 0.0
    %1866 = vmatpush1.msra.mxu0 %v1003
    %1867 = vmatprep.subr.mxu0 0.0
    %1868 = vmatpush1.msra.mxu0 %v1004
    %1869 = vmatprep.subr.mxu0 0.0
    %1870 = vmatpush1.msra.mxu0 %v1005
    %1871 = vmatprep.subr.mxu0 0.0
    %1872 = vmatpush1.msra.mxu0 %v1006
    %1873 = vmatprep.subr.mxu0 0.0
    %1874 = vmatpush1.msra.mxu0 0.0
    %1875 = vmatprep.subr.mxu0 0.0
    %1876 = vmatpush1.msra.mxu0 0.0
    %1877 = vmatprep.subr.mxu0 0.0
    %1878 = vmatpush1.msra.mxu0 0.0
    %1879 = vmatprep.subr.mxu0 0.0
    %1880 = vmatpush1.msra.mxu0 0.0
    %1881 = vmatprep.subr.mxu0 0.0
    %1882 = vmatpush1.msra.mxu0 0.0
    %1883 = vmatprep.subr.mxu0 0.0
    %1884 = vmatpush1.msra.mxu0 0.0
    %1885 = vmatprep.subr.mxu0 0.0
    %1886 = vmatpush1.msra.mxu0 0.0
    %1887 = vmatprep.subr.mxu0 0.0
    %1888 = vmatpush1.msra.mxu0 0.0
    %1889 = vmatprep.subr.mxu0 0.0
    %1890 = vmatpush1.msra.mxu0 0.0
    %1891 = vmatprep.subr.mxu0 0.0
    %1892 = vmatpush1.msra.mxu0 0.0
    %1893 = vmatprep.subr.mxu0 0.0
    %1894 = vmatpush1.msra.mxu0 0.0
    %1895 = vmatprep.subr.mxu0 0.0
    %1896 = vmatpush1.msra.mxu0 0.0
    %1897 = vmatprep.subr.mxu0 0.0
    %1898 = vmatpush1.msra.mxu0 0.0
    %1899 = vmatprep.subr.mxu0 0.0
    %1900 = vmatpush1.msra.mxu0 0.0
    %1901 = vmatprep.subr.mxu0 0.0
    %1902 = vmatpush1.msra.mxu0 0.0
    %1903 = vmatprep.subr.mxu0 0.0
    %1904 = vmatpush1.msra.mxu0 0.0
    %1905 = vmatprep.subr.mxu0 0.0
    %1906 = vmatpush1.msra.mxu0 0.0
    %1907 = vmatprep.subr.mxu0 0.0
    %1908 = vmatpush1.msra.mxu0 0.0
    %1909 = vmatprep.subr.mxu0 0.0
    %1910 = vmatpush1.msra.mxu0 0.0
    %1911 = vmatprep.subr.mxu0 0.0
    %1912 = vmatpush1.msra.mxu0 0.0
    %1913 = vmatprep.subr.mxu0 0.0
    %1914 = vmatpush1.msra.mxu0 0.0
    %1915 = vmatprep.subr.mxu0 0.0
    %1916 = vmatpush1.msra.mxu0 0.0
    %1917 = vmatprep.subr.mxu0 0.0
    %1918 = vmatpush1.msra.mxu0 0.0
    %1919 = vmatprep.subr.mxu0 0.0
    %1920 = vmatpush1.msra.mxu0 0.0
    %1921 = vmatprep.subr.mxu0 0.0
    %1922 = vmatpush1.msra.mxu0 0.0
    %1923 = vmatprep.subr.mxu0 0.0
    %1924 = vmatpush1.msra.mxu0 0.0
    %1925 = vmatprep.subr.mxu0 0.0
    %1926 = vmatpush1.msra.mxu0 0.0
    %1927 = vmatprep.subr.mxu0 0.0
    %1928 = vmatpush1.msra.mxu0 0.0
    %1929 = vmatprep.mubr.f32.mxu0 0.0
    %1930 = vmatmul.mubr.f32.gmra.mrb[0].mxu0 %v796
    %v1931 = vpop.f32.mrb[0].mxu0
    %v1932 = vadd.f32 %v1010, %v1931
    %v1933 = vpop.f32.mrb[0].mxu0
    %1934 = vdwg.mxu0
    %1936 = vrot.lane.b32.xlu0 %v1864, 96
    %v1937 = vpop.permute.xlu0 %1936
    %v1938 = vsel %vm55, %v1937, 0
    %1940 = vmatprep.subr.mxu0 0.0
    %1941 = vmatpush1.msra.mxu0 %v996
    %1942 = vmatprep.subr.mxu0 0.0
    %1943 = vmatpush1.msra.mxu0 %v997
    %1944 = vmatprep.subr.mxu0 0.0
    %1945 = vmatpush1.msra.mxu0 %v998
    %1946 = vmatprep.subr.mxu0 0.0
    %1947 = vmatpush1.msra.mxu0 %v999
    %1948 = vmatprep.subr.mxu0 0.0
    %1949 = vmatpush1.msra.mxu0 0.0
    %1950 = vmatprep.subr.mxu0 0.0
    %1951 = vmatpush1.msra.mxu0 0.0
    %1952 = vmatprep.subr.mxu0 0.0
    %1953 = vmatpush1.msra.mxu0 0.0
    %1954 = vmatprep.subr.mxu0 0.0
    %1955 = vmatpush1.msra.mxu0 0.0
    %1956 = vmatprep.subr.mxu0 0.0
    %1957 = vmatpush1.msra.mxu0 0.0
    %1958 = vmatprep.subr.mxu0 0.0
    %1959 = vmatpush1.msra.mxu0 0.0
    %1960 = vmatprep.subr.mxu0 0.0
    %1961 = vmatpush1.msra.mxu0 0.0
    %1962 = vmatprep.subr.mxu0 0.0
    %1963 = vmatpush1.msra.mxu0 0.0
    %1964 = vmatprep.subr.mxu0 0.0
    %1965 = vmatpush1.msra.mxu0 0.0
    %1966 = vmatprep.subr.mxu0 0.0
    %1967 = vmatpush1.msra.mxu0 0.0
    %1968 = vmatprep.subr.mxu0 0.0
    %1969 = vmatpush1.msra.mxu0 0.0
    %1970 = vmatprep.subr.mxu0 0.0
    %1971 = vmatpush1.msra.mxu0 0.0
    %1972 = vmatprep.subr.mxu0 0.0
    %1973 = vmatpush1.msra.mxu0 0.0
    %1974 = vmatprep.subr.mxu0 0.0
    %1975 = vmatpush1.msra.mxu0 0.0
    %1976 = vmatprep.subr.mxu0 0.0
    %1977 = vmatpush1.msra.mxu0 0.0
    %1978 = vmatprep.subr.mxu0 0.0
    %1979 = vmatpush1.msra.mxu0 0.0
    %1980 = vmatprep.subr.mxu0 0.0
    %1981 = vmatpush1.msra.mxu0 0.0
    %1982 = vmatprep.subr.mxu0 0.0
    %1983 = vmatpush1.msra.mxu0 0.0
    %1984 = vmatprep.subr.mxu0 0.0
    %1985 = vmatpush1.msra.mxu0 0.0
    %1986 = vmatprep.subr.mxu0 0.0
    %1987 = vmatpush1.msra.mxu0 0.0
    %1988 = vmatprep.subr.mxu0 0.0
    %1989 = vmatpush1.msra.mxu0 0.0
    %1990 = vmatprep.subr.mxu0 0.0
    %1991 = vmatpush1.msra.mxu0 0.0
    %1992 = vmatprep.subr.mxu0 0.0
    %1993 = vmatpush1.msra.mxu0 0.0
    %1994 = vmatprep.subr.mxu0 0.0
    %1995 = vmatpush1.msra.mxu0 0.0
    %1996 = vmatprep.subr.mxu0 0.0
    %1997 = vmatpush1.msra.mxu0 0.0
    %1998 = vmatprep.subr.mxu0 0.0
    %1999 = vmatpush1.msra.mxu0 0.0
    %2000 = vmatprep.subr.mxu0 0.0
    %2001 = vmatpush1.msra.mxu0 0.0
    %2002 = vmatprep.subr.mxu0 0.0
    %2003 = vmatpush1.msra.mxu0 0.0
    %2004 = vmatprep.mubr.f32.mxu0 0.0
    %2005 = vmatmul.mubr.f32.gmra.mrb[0].mxu0 %v1938
    %v2006 = vpop.f32.mrb[0].mxu0
    %v2007 = vadd.f32 %v1084, %v2006
    %v2008 = vpop.f32.mrb[0].mxu0
    %2009 = vdwg.mxu0
    %v2010 = vadd.f32 %v1932, %v2007
    %v2011 = vxor.u32 %v2010, 2147483648
    %v2012 = vmul.f32 %v2011, 1.442695
    %v2013 = vpow.pop %v2012
    %v2014 = vadd.f32 %v2013, 1.0
    %v2015 = vrcp.pop %v2014
    %v2016 = vmul.f32 1.0, %v2015
    %2018 = vrot.lane.b32.xlu0 %v2007, 64
    %v2019 = vpop.permute.xlu0 %2018
    %v2021 = vmul.f32 %v2016, %v2019
    %2023 = vrot.lane.b32.xlu0 %v2021, 64
    %v2024 = vpop.permute.xlu0 %2023
    %v2026 = vadd.f32 %v1932, %v2024
    %v2027 = vtanh.pop %v2026
    %v2028 = vsub.f32 1.0, %v2016
    %2030 = vrot.lane.b32.xlu0 %v2027, 96
    %v2031 = vpop.permute.xlu0 %2030
    %v2033 = vmul.f32 %v2028, %v2031
    %v2034 = vmul.f32 %v2016, %v1864
    %v2035 = vadd.f32 %v2033, %v2034
    %2036 = vmatprep.subr.mxu0 0.0
    %2037 = vmatpush1.msra.mxu0 %v1003
    %2038 = vmatprep.subr.mxu0 0.0
    %2039 = vmatpush1.msra.mxu0 %v1004
    %2040 = vmatprep.subr.mxu0 0.0
    %2041 = vmatpush1.msra.mxu0 %v1005
    %2042 = vmatprep.subr.mxu0 0.0
    %2043 = vmatpush1.msra.mxu0 %v1006
    %2044 = vmatprep.subr.mxu0 0.0
    %2045 = vmatpush1.msra.mxu0 0.0
    %2046 = vmatprep.subr.mxu0 0.0
    %2047 = vmatpush1.msra.mxu0 0.0
    %2048 = vmatprep.subr.mxu0 0.0
    %2049 = vmatpush1.msra.mxu0 0.0
    %2050 = vmatprep.subr.mxu0 0.0
    %2051 = vmatpush1.msra.mxu0 0.0
    %2052 = vmatprep.subr.mxu0 0.0
    %2053 = vmatpush1.msra.mxu0 0.0
    %2054 = vmatprep.subr.mxu0 0.0
    %2055 = vmatpush1.msra.mxu0 0.0
    %2056 = vmatprep.subr.mxu0 0.0
    %2057 = vmatpush1.msra.mxu0 0.0
    %2058 = vmatprep.subr.mxu0 0.0
    %2059 = vmatpush1.msra.mxu0 0.0
    %2060 = vmatprep.subr.mxu0 0.0
    %2061 = vmatpush1.msra.mxu0 0.0
    %2062 = vmatprep.subr.mxu0 0.0
    %2063 = vmatpush1.msra.mxu0 0.0
    %2064 = vmatprep.subr.mxu0 0.0
    %2065 = vmatpush1.msra.mxu0 0.0
    %2066 = vmatprep.subr.mxu0 0.0
    %2067 = vmatpush1.msra.mxu0 0.0
    %2068 = vmatprep.subr.mxu0 0.0
    %2069 = vmatpush1.msra.mxu0 0.0
    %2070 = vmatprep.subr.mxu0 0.0
    %2071 = vmatpush1.msra.mxu0 0.0
    %2072 = vmatprep.subr.mxu0 0.0
    %2073 = vmatpush1.msra.mxu0 0.0
    %2074 = vmatprep.subr.mxu0 0.0
    %2075 = vmatpush1.msra.mxu0 0.0
    %2076 = vmatprep.subr.mxu0 0.0
    %2077 = vmatpush1.msra.mxu0 0.0
    %2078 = vmatprep.subr.mxu0 0.0
    %2079 = vmatpush1.msra.mxu0 0.0
    %2080 = vmatprep.subr.mxu0 0.0
    %2081 = vmatpush1.msra.mxu0 0.0
    %2082 = vmatprep.subr.mxu0 0.0
    %2083 = vmatpush1.msra.mxu0 0.0
    %2084 = vmatprep.subr.mxu0 0.0
    %2085 = vmatpush1.msra.mxu0 0.0
    %2086 = vmatprep.subr.mxu0 0.0
    %2087 = vmatpush1.msra.mxu0 0.0
    %2088 = vmatprep.subr.mxu0 0.0
    %2089 = vmatpush1.msra.mxu0 0.0
    %2090 = vmatprep.subr.mxu0 0.0
    %2091 = vmatpush1.msra.mxu0 0.0
    %2092 = vmatprep.subr.mxu0 0.0
    %2093 = vmatpush1.msra.mxu0 0.0
    %2094 = vmatprep.subr.mxu0 0.0
    %2095 = vmatpush1.msra.mxu0 0.0
    %2096 = vmatprep.subr.mxu0 0.0
    %2097 = vmatpush1.msra.mxu0 0.0
    %2098 = vmatprep.subr.mxu0 0.0
    %2099 = vmatpush1.msra.mxu0 0.0
    %2100 = vmatprep.mubr.f32.mxu0 0.0
    %2101 = vmatmul.mubr.f32.gmra.mrb[0].mxu0 %v897
    %v2102 = vpop.f32.mrb[0].mxu0
    %v2103 = vadd.f32 %v1010, %v2102
    %v2104 = vpop.f32.mrb[0].mxu0
    %2105 = vdwg.mxu0
    %2107 = vrot.lane.b32.xlu0 %v2035, 96
    %v2108 = vpop.permute.xlu0 %2107
    %v2109 = vsel %vm55, %v2108, 0
    %2111 = vmatprep.subr.mxu0 0.0
    %2112 = vmatpush1.msra.mxu0 %v996
    %2113 = vmatprep.subr.mxu0 0.0
    %2114 = vmatpush1.msra.mxu0 %v997
    %2115 = vmatprep.subr.mxu0 0.0
    %2116 = vmatpush1.msra.mxu0 %v998
    %2117 = vmatprep.subr.mxu0 0.0
    %2118 = vmatpush1.msra.mxu0 %v999
    %2119 = vmatprep.subr.mxu0 0.0
    %2120 = vmatpush1.msra.mxu0 0.0
    %2121 = vmatprep.subr.mxu0 0.0
    %2122 = vmatpush1.msra.mxu0 0.0
    %2123 = vmatprep.subr.mxu0 0.0
    %2124 = vmatpush1.msra.mxu0 0.0
    %2125 = vmatprep.subr.mxu0 0.0
    %2126 = vmatpush1.msra.mxu0 0.0
    %2127 = vmatprep.subr.mxu0 0.0
    %2128 = vmatpush1.msra.mxu0 0.0
    %2129 = vmatprep.subr.mxu0 0.0
    %2130 = vmatpush1.msra.mxu0 0.0
    %2131 = vmatprep.subr.mxu0 0.0
    %2132 = vmatpush1.msra.mxu0 0.0
    %2133 = vmatprep.subr.mxu0 0.0
    %2134 = vmatpush1.msra.mxu0 0.0
    %2135 = vmatprep.subr.mxu0 0.0
    %2136 = vmatpush1.msra.mxu0 0.0
    %2137 = vmatprep.subr.mxu0 0.0
    %2138 = vmatpush1.msra.mxu0 0.0
    %2139 = vmatprep.subr.mxu0 0.0
    %2140 = vmatpush1.msra.mxu0 0.0
    %2141 = vmatprep.subr.mxu0 0.0
    %2142 = vmatpush1.msra.mxu0 0.0
    %2143 = vmatprep.subr.mxu0 0.0
    %2144 = vmatpush1.msra.mxu0 0.0
    %2145 = vmatprep.subr.mxu0 0.0
    %2146 = vmatpush1.msra.mxu0 0.0
    %2147 = vmatprep.subr.mxu0 0.0
    %2148 = vmatpush1.msra.mxu0 0.0
    %2149 = vmatprep.subr.mxu0 0.0
    %2150 = vmatpush1.msra.mxu0 0.0
    %2151 = vmatprep.subr.mxu0 0.0
    %2152 = vmatpush1.msra.mxu0 0.0
    %2153 = vmatprep.subr.mxu0 0.0
    %2154 = vmatpush1.msra.mxu0 0.0
    %2155 = vmatprep.subr.mxu0 0.0
    %2156 = vmatpush1.msra.mxu0 0.0
    %2157 = vmatprep.subr.mxu0 0.0
    %2158 = vmatpush1.msra.mxu0 0.0
    %2159 = vmatprep.subr.mxu0 0.0
    %2160 = vmatpush1.msra.mxu0 0.0
    %2161 = vmatprep.subr.mxu0 0.0
    %2162 = vmatpush1.msra.mxu0 0.0
    %2163 = vmatprep.subr.mxu0 0.0
    %2164 = vmatpush1.msra.mxu0 0.0
    %2165 = vmatprep.subr.mxu0 0.0
    %2166 = vmatpush1.msra.mxu0 0.0
    %2167 = vmatprep.subr.mxu0 0.0
    %2168 = vmatpush1.msra.mxu0 0.0
    %2169 = vmatprep.subr.mxu0 0.0
    %2170 = vmatpush1.msra.mxu0 0.0
    %2171 = vmatprep.subr.mxu0 0.0
    %2172 = vmatpush1.msra.mxu0 0.0
    %2173 = vmatprep.subr.mxu0 0.0
    %2174 = vmatpush1.msra.mxu0 0.0
    %2175 = vmatprep.mubr.f32.mxu0 0.0
    %2176 = vmatmul.mubr.f32.gmra.mrb[0].mxu0 %v2109
    %v2177 = vpop.f32.mrb[0].mxu0
    %v2178 = vadd.f32 %v1084, %v2177
    %v2179 = vpop.f32.mrb[0].mxu0
    %2180 = vdwg.mxu0
    %v2181 = vadd.f32 %v2103, %v2178
    %v2182 = vxor.u32 %v2181, 2147483648
    %v2183 = vmul.f32 %v2182, 1.442695
    %v2184 = vpow.pop %v2183
    %v2185 = vadd.f32 %v2184, 1.0
    %v2186 = vrcp.pop %v2185
    %v2187 = vmul.f32 1.0, %v2186
    %2189 = vrot.lane.b32.xlu0 %v2178, 64
    %v2190 = vpop.permute.xlu0 %2189
    %v2192 = vmul.f32 %v2187, %v2190
    %2194 = vrot.lane.b32.xlu0 %v2192, 64
    %v2195 = vpop.permute.xlu0 %2194
    %v2197 = vadd.f32 %v2103, %v2195
    %v2198 = vtanh.pop %v2197
    %v2199 = vsub.f32 1.0, %v2187
    %2201 = vrot.lane.b32.xlu0 %v2198, 96
    %v2202 = vpop.permute.xlu0 %2201
    %v2204 = vmul.f32 %v2199, %v2202
    %v2205 = vmul.f32 %v2187, %v2035
    %v2206 = vadd.f32 %v2204, %v2205
    %2208 = vrot.lane.b32.xlu0 %v994, 96
    %v2209 = vpop.permute.xlu0 %2208
    %v2210 = vsel %vm55, %v2209, 0
    %2212 = vmatprep.subr.mxu0 0.0
    %2213 = vmatpush1.msra.mxu0 %v1003
    %2214 = vmatprep.subr.mxu0 0.0
    %2215 = vmatpush1.msra.mxu0 %v1004
    %2216 = vmatprep.subr.mxu0 0.0
    %2217 = vmatpush1.msra.mxu0 %v1005
    %2218 = vmatprep.subr.mxu0 0.0
    %2219 = vmatpush1.msra.mxu0 %v1006
    %2220 = vmatprep.subr.mxu0 0.0
    %2221 = vmatpush1.msra.mxu0 0.0
    %2222 = vmatprep.subr.mxu0 0.0
    %2223 = vmatpush1.msra.mxu0 0.0
    %2224 = vmatprep.subr.mxu0 0.0
    %2225 = vmatpush1.msra.mxu0 0.0
    %2226 = vmatprep.subr.mxu0 0.0
    %2227 = vmatpush1.msra.mxu0 0.0
    %2228 = vmatprep.subr.mxu0 0.0
    %2229 = vmatpush1.msra.mxu0 0.0
    %2230 = vmatprep.subr.mxu0 0.0
    %2231 = vmatpush1.msra.mxu0 0.0
    %2232 = vmatprep.subr.mxu0 0.0
    %2233 = vmatpush1.msra.mxu0 0.0
    %2234 = vmatprep.subr.mxu0 0.0
    %2235 = vmatpush1.msra.mxu0 0.0
    %2236 = vmatprep.subr.mxu0 0.0
    %2237 = vmatpush1.msra.mxu0 0.0
    %2238 = vmatprep.subr.mxu0 0.0
    %2239 = vmatpush1.msra.mxu0 0.0
    %2240 = vmatprep.subr.mxu0 0.0
    %2241 = vmatpush1.msra.mxu0 0.0
    %2242 = vmatprep.subr.mxu0 0.0
    %2243 = vmatpush1.msra.mxu0 0.0
    %2244 = vmatprep.subr.mxu0 0.0
    %2245 = vmatpush1.msra.mxu0 0.0
    %2246 = vmatprep.subr.mxu0 0.0
    %2247 = vmatpush1.msra.mxu0 0.0
    %2248 = vmatprep.subr.mxu0 0.0
    %2249 = vmatpush1.msra.mxu0 0.0
    %2250 = vmatprep.subr.mxu0 0.0
    %2251 = vmatpush1.msra.mxu0 0.0
    %2252 = vmatprep.subr.mxu0 0.0
    %2253 = vmatpush1.msra.mxu0 0.0
    %2254 = vmatprep.subr.mxu0 0.0
    %2255 = vmatpush1.msra.mxu0 0.0
    %2256 = vmatprep.subr.mxu0 0.0
    %2257 = vmatpush1.msra.mxu0 0.0
    %2258 = vmatprep.subr.mxu0 0.0
    %2259 = vmatpush1.msra.mxu0 0.0
    %2260 = vmatprep.subr.mxu0 0.0
    %2261 = vmatpush1.msra.mxu0 0.0
    %2262 = vmatprep.subr.mxu0 0.0
    %2263 = vmatpush1.msra.mxu0 0.0
    %2264 = vmatprep.subr.mxu0 0.0
    %2265 = vmatpush1.msra.mxu0 0.0
    %2266 = vmatprep.subr.mxu0 0.0
    %2267 = vmatpush1.msra.mxu0 0.0
    %2268 = vmatprep.subr.mxu0 0.0
    %2269 = vmatpush1.msra.mxu0 0.0
    %2270 = vmatprep.subr.mxu0 0.0
    %2271 = vmatpush1.msra.mxu0 0.0
    %2272 = vmatprep.subr.mxu0 0.0
    %2273 = vmatpush1.msra.mxu0 0.0
    %2274 = vmatprep.subr.mxu0 0.0
    %2275 = vmatpush1.msra.mxu0 0.0
    %2276 = vmatprep.mubr.f32.mxu0 0.0
    %2277 = vmatmul.mubr.f32.gmra.mrb[0].mxu0 %v2210
    %v2278 = vpop.f32.mrb[0].mxu0
    %v2279 = vadd.f32 %v1010, %v2278
    %v2280 = vpop.f32.mrb[0].mxu0
    %2281 = vdwg.mxu0
    %2283 = vrot.lane.b32.xlu0 %v2206, 96
    %v2284 = vpop.permute.xlu0 %2283
    %v2285 = vsel %vm55, %v2284, 0
    %2287 = vmatprep.subr.mxu0 0.0
    %2288 = vmatpush1.msra.mxu0 %v996
    %2289 = vmatprep.subr.mxu0 0.0
    %2290 = vmatpush1.msra.mxu0 %v997
    %2291 = vmatprep.subr.mxu0 0.0
    %2292 = vmatpush1.msra.mxu0 %v998
    %2293 = vmatprep.subr.mxu0 0.0
    %2294 = vmatpush1.msra.mxu0 %v999
    %2295 = vmatprep.subr.mxu0 0.0
    %2296 = vmatpush1.msra.mxu0 0.0
    %2297 = vmatprep.subr.mxu0 0.0
    %2298 = vmatpush1.msra.mxu0 0.0
    %2299 = vmatprep.subr.mxu0 0.0
    %2300 = vmatpush1.msra.mxu0 0.0
    %2301 = vmatprep.subr.mxu0 0.0
    %2302 = vmatpush1.msra.mxu0 0.0
    %2303 = vmatprep.subr.mxu0 0.0
    %2304 = vmatpush1.msra.mxu0 0.0
    %2305 = vmatprep.subr.mxu0 0.0
    %2306 = vmatpush1.msra.mxu0 0.0
    %2307 = vmatprep.subr.mxu0 0.0
    %2308 = vmatpush1.msra.mxu0 0.0
    %2309 = vmatprep.subr.mxu0 0.0
    %2310 = vmatpush1.msra.mxu0 0.0
    %2311 = vmatprep.subr.mxu0 0.0
    %2312 = vmatpush1.msra.mxu0 0.0
    %2313 = vmatprep.subr.mxu0 0.0
    %2314 = vmatpush1.msra.mxu0 0.0
    %2315 = vmatprep.subr.mxu0 0.0
    %2316 = vmatpush1.msra.mxu0 0.0
    %2317 = vmatprep.subr.mxu0 0.0
    %2318 = vmatpush1.msra.mxu0 0.0
    %2319 = vmatprep.subr.mxu0 0.0
    %2320 = vmatpush1.msra.mxu0 0.0
    %2321 = vmatprep.subr.mxu0 0.0
    %2322 = vmatpush1.msra.mxu0 0.0
    %2323 = vmatprep.subr.mxu0 0.0
    %2324 = vmatpush1.msra.mxu0 0.0
    %2325 = vmatprep.subr.mxu0 0.0
    %2326 = vmatpush1.msra.mxu0 0.0
    %2327 = vmatprep.subr.mxu0 0.0
    %2328 = vmatpush1.msra.mxu0 0.0
    %2329 = vmatprep.subr.mxu0 0.0
    %2330 = vmatpush1.msra.mxu0 0.0
    %2331 = vmatprep.subr.mxu0 0.0
    %2332 = vmatpush1.msra.mxu0 0.0
    %2333 = vmatprep.subr.mxu0 0.0
    %2334 = vmatpush1.msra.mxu0 0.0
    %2335 = vmatprep.subr.mxu0 0.0
    %2336 = vmatpush1.msra.mxu0 0.0
    %2337 = vmatprep.subr.mxu0 0.0
    %2338 = vmatpush1.msra.mxu0 0.0
    %2339 = vmatprep.subr.mxu0 0.0
    %2340 = vmatpush1.msra.mxu0 0.0
    %2341 = vmatprep.subr.mxu0 0.0
    %2342 = vmatpush1.msra.mxu0 0.0
    %2343 = vmatprep.subr.mxu0 0.0
    %2344 = vmatpush1.msra.mxu0 0.0
    %2345 = vmatprep.subr.mxu0 0.0
    %2346 = vmatpush1.msra.mxu0 0.0
    %2347 = vmatprep.subr.mxu0 0.0
    %2348 = vmatpush1.msra.mxu0 0.0
    %2349 = vmatprep.subr.mxu0 0.0
    %2350 = vmatpush1.msra.mxu0 0.0
    %2351 = vmatprep.mubr.f32.mxu0 0.0
    %2352 = vmatmul.mubr.f32.gmra.mrb[0].mxu0 %v2285
    %v2353 = vpop.f32.mrb[0].mxu0
    %v2354 = vadd.f32 %v1084, %v2353
    %v2355 = vpop.f32.mrb[0].mxu0
    %2356 = vdwg.mxu0
    %v2357 = vadd.f32 %v2279, %v2354
    %v2358 = vxor.u32 %v2357, 2147483648
    %v2359 = vmul.f32 %v2358, 1.442695
    %v2360 = vpow.pop %v2359
    %v2361 = vadd.f32 %v2360, 1.0
    %v2362 = vrcp.pop %v2361
    %v2363 = vmul.f32 1.0, %v2362
    %2365 = vrot.lane.b32.xlu0 %v2354, 64
    %v2366 = vpop.permute.xlu0 %2365
    %v2368 = vmul.f32 %v2363, %v2366
    %2370 = vrot.lane.b32.xlu0 %v2368, 64
    %v2371 = vpop.permute.xlu0 %2370
    %v2373 = vadd.f32 %v2279, %v2371
    %v2374 = vtanh.pop %v2373
    %v2375 = vsub.f32 1.0, %v2363
    %2377 = vrot.lane.b32.xlu0 %v2374, 96
    %v2378 = vpop.permute.xlu0 %2377
    %v2380 = vmul.f32 %v2375, %v2378
    %v2381 = vmul.f32 %v2363, %v2206
    %v2382 = vadd.f32 %v2380, %v2381
    %v2383 = vld [vmem:[%s4] sm:$0x3]
    %v2384 = vlaneseq
    %v2385 = vshrl.u32 %v2384, 7
    %v2386 = vsub.s32 0, %v2385
    %v2387 = vrot.slane %v2383, %v2386
    %2389 = vrot.lane.b32.xlu0 %v2387, 32
    %v2390 = vpop.permute.xlu0 %2389
    %v2392 = vmul.f32 %v2382, %v2390
    %2394 = vrot.lane.b32.xlu0 %v2392, 96
    %v2395 = vpop.permute.xlu0 %2394
    %v2397 = vsel %vm55, %v2395, 0.0
    %2398 = vadd.xlane.f32.xlu0 %v2397
    %v2399 = vpop.xlane.xlu0 %2398
    %v2400 = vlaneseq
    %v2401 = vshrl.u32 %v2400, 7
    %v2402 = vsub.s32 1, %v2401
    %v2403 = vrot.slane %v2383, %v2402
    %v2404 = vadd.f32 %v2399, %v2403
    %vm2405 = vcmask 7168
    %2406 = vst.msk [vmem:[%s5] sm:$0xff] %vm2405, %v2404
    // Predicated region
    $region26: #{gru_forward.1} parent=1 // pred_check
      _
    $region27: #{gru_forward.1} parent=1 // pred_check_branch
      %2408 = sbr.rel (0) target = $region29
    $region28: #{gru_forward.1} parent=1 // pred_region
      _
    $region29: #{gru_forward.1} parent=1 // pred_fallthru
      _
    // Predicated region
    $region30: #{gru_forward.1} parent=1 // pred_check
      _
    $region31: #{gru_forward.1} parent=1 // pred_check_branch
      %2410 = sbr.rel (0) target = $region33
    $region32: #{gru_forward.1} parent=1 // pred_region
      _
    $region33: #{gru_forward.1} parent=1 // pred_fallthru
      _
    %2411 = vsyncpa [#allocation3], 1

</llo_original>
